<compile_context>
chip_gen: v7x
topology: tpu7x:2x2x1
jax: 0.10.0
libtpu: 0.0.40
codegen_flags: <defaults>
</compile_context>

<pallas_src>
import numpy as np
import jax
import jax.numpy as jnp
from jax.experimental import pallas as pl
from jax.experimental.pallas import tpu as pltpu

# ---------------- configuration: SKConv_7(16, M=2, G=16, r=4, L=32) ----------
FEATURES = 16
M = 2                     # branches
G = 16                    # conv groups (depthwise here)
R = 4
L = 32
D = max(FEATURES // R, L)             # d = 32
EPS = 1e-5
KSIZE = 7                              # 7x7 taps
PAD = (KSIZE // 2) * M                 # 'same' height pad at the largest dilation


# ------------------------------ parameter setup ------------------------------
def init_params(key):
    ks = jax.random.split(key, 12)
    p = {}
    p["wg"] = 0.1 * jax.random.normal(
        ks[0], (M, FEATURES, FEATURES // G, KSIZE, KSIZE), jnp.float32)
    p["conv_gamma"] = 1.0 + 0.1 * jax.random.normal(ks[1], (M, FEATURES), jnp.float32)
    p["conv_beta"] = 0.1 * jax.random.normal(ks[2], (M, FEATURES), jnp.float32)
    p["conv_rmean"] = 0.1 * jax.random.normal(ks[3], (M, FEATURES), jnp.float32)
    p["conv_rvar"] = jax.random.uniform(ks[4], (M, FEATURES), jnp.float32, 0.5, 1.5)
    p["wfc_raw"] = 0.1 * jax.random.normal(ks[5], (D, FEATURES), jnp.float32)
    p["fc_gamma"] = 1.0 + 0.1 * jax.random.normal(ks[6], (D,), jnp.float32)
    p["fc_beta"] = 0.1 * jax.random.normal(ks[7], (D,), jnp.float32)
    p["fc_rmean"] = 0.1 * jax.random.normal(ks[8], (D,), jnp.float32)
    p["fc_rvar"] = jax.random.uniform(ks[9], (D,), jnp.float32, 0.5, 1.5)
    p["watt_raw"] = 0.1 * jax.random.normal(ks[10], (M, FEATURES, D), jnp.float32)
    p["batt_raw"] = 0.1 * jax.random.normal(ks[11], (M, FEATURES), jnp.float32)
    return p


def _expand_group_weight(wg, groups):
    """(Cout, Cin//G, kh, kw) grouped weight -> dense block-diag (Cout, Cin, kh, kw)."""
    c_out, cg_in, kh, kw = wg.shape
    cg_out = c_out // groups
    dense = jnp.zeros((c_out, groups * cg_in, kh, kw), wg.dtype)
    for g in range(groups):
        dense = dense.at[g * cg_out:(g + 1) * cg_out,
                         g * cg_in:(g + 1) * cg_in].set(wg[g * cg_out:(g + 1) * cg_out])
    return dense


def make_kernel_params(p, W):
    """Fold BN into the conv weights, bake the grouped structure and the width
    'same' padding into banded (W*C, W*C) blocks, and pre-tile the fc /
    attention parameters over the (width, channel) lane layout so the kernel
    never needs lane reshapes."""
    C = FEATURES
    WC = W * C
    mid = KSIZE // 2
    conv_scale = p["conv_gamma"] / jnp.sqrt(p["conv_rvar"] + EPS)      # (M, C)
    conv_shift = p["conv_beta"] - conv_scale * p["conv_rmean"]         # (M, C)
    fc_scale = p["fc_gamma"] / jnp.sqrt(p["fc_rvar"] + EPS)            # (d,)
    fc_shift = p["fc_beta"] - fc_scale * p["fc_rmean"]                 # (d,)

    # Banded width-conv blocks: one (W*Cin, W*Cout) matrix per (branch, kh),
    # encoding the KSIZE width taps, zero 'same' width padding and the grouped
    # block-diagonal channel structure, BN scale folded in.
    # TODO(synk): width-tile into a block-banded form for large W (O(W) storage
    #             / MXU work instead of O(W^2)).
    blocks = []
    for m in range(M):
        dil = m + 1
        dense = _expand_group_weight(p["wg"][m], G)                    # (Co, Ci, 7, 7)
        dense = dense * conv_scale[m][:, None, None, None]             # fold BN scale
        for kh in range(KSIZE):
            a_blk = jnp.zeros((WC, WC), jnp.float32)
            for kw in range(KSIZE):
                shift = np.zeros((W, W), np.float32)
                for w_out in range(W):
                    w_in = w_out + (kw - mid) * dil
                    if 0 <= w_in < W:
                        shift[w_in, w_out] = 1.0
                if not shift.any():
                    continue
                a_blk = a_blk + jnp.kron(jnp.asarray(shift), dense[:, :, kh, kw].T)
            blocks.append(a_blk)
    wband = jnp.concatenate(blocks, axis=1)                            # (WC, M*K*WC)

    # Fused attention heads: (d, M*WC), column (m*WC + w*C + c) = watt[m][c, :].
    watt_t = jnp.transpose(p["watt_raw"], (0, 2, 1))                   # (M, d, C)
    watt_cat = jnp.concatenate([jnp.tile(watt_t[m], (1, W)) for m in range(M)],
                               axis=1)                                 # (d, M*WC)
    batt_cat = jnp.tile(p["batt_raw"], (1, W)).reshape(1, M * WC)      # (1, M*WC)

    return {
        "wband": wband.astype(jnp.bfloat16),                           # (WC, M*K*WC)
        "bconv": jnp.tile(conv_shift, (1, W))[:, None, :],             # (M, 1, WC) f32
        "wfc": jnp.tile((p["wfc_raw"] * fc_scale[:, None]).T,
                        (W, 1)).astype(jnp.bfloat16),                  # (WC, d)
        "bfc": fc_shift[None, :],                                      # (1, d) f32
        "watt": watt_cat.astype(jnp.bfloat16),                         # (d, M*WC)
        "batt": batt_cat,                                              # (1, M*WC) f32
    }


def _make_height_combine(H, hp_al):
    """0/1 shift-sum matrices: hcomb[blk, h, r] = 1 iff padded input row r feeds
    output row h for tap block blk = (branch, kh)."""
    mid = KSIZE // 2
    hc = np.zeros((M * KSIZE, H, hp_al), np.float32)
    for m in range(M):
        dil = m + 1
        for kh in range(KSIZE):
            r0 = PAD + (kh - mid) * dil
            blk = m * KSIZE + kh
            for h in range(H):
                hc[blk, h, r0 + h] = 1.0
    return jnp.asarray(hc)


# -------------------------------- Pallas kernel -------------------------------
def _make_skconv_kernel(H, W, C, hp_al, n_branches, ksize):
    WC = W * C
    nblk = n_branches * ksize
    inv_hw = 1.0 / float(H * W)

    def kernel(x_ref, wband_ref, bconv_ref, hcomb_ref, wfc_ref, bfc_ref,
               watt_ref, batt_ref, out_ref):
        bt = x_ref.shape[0]

        # (Bt, Hp, W*C) -> (Bt*Hp, W*C); hp_al is a multiple of 16, so this
        # collapse is layout-preserving for bf16 (no copy).
        x = x_ref[...].reshape(bt * hp_al, WC)

        # ONE MXU contraction: for every padded input row, the width-convolved
        # (BN-scale folded) partial of every (branch, kh) tap.
        partials = jnp.dot(x, wband_ref[...],
                           preferred_element_type=jnp.float32)         # (Bt*Hp, nblk*WC)
        partials = partials.reshape(bt, hp_al, nblk * WC)

        # Height-tap combine as small MXU contractions with 0/1 shift-sum
        # matrices (consumes the zero height padding).  All slices below are
        # lane-aligned; no misaligned sublane slices -> no relayout copies.
        feats = []
        u = None
        for m in range(n_branches):
            acc = None
            for kh in range(ksize):
                blk = m * ksize + kh
                block = partials[:, :, blk * WC:(blk + 1) * WC]        # (Bt, Hp, WC)
                hc = jnp.broadcast_to(hcomb_ref[blk][None], (bt, H, hp_al))
                contrib = jax.lax.dot_general(
                    hc, block, (((2,), (1,)), ((0,), (0,))),
                    preferred_element_type=jnp.float32)                # (Bt, H, WC)
                acc = contrib if acc is None else acc + contrib
            f = jnp.maximum(acc + bconv_ref[m], 0.0)                   # BN shift + ReLU
            u = f if u is None else u + f                              # branch sum (f32)
            feats.append(f.astype(jnp.bfloat16))                       # bf16 residents

        # Global average pool over rows; the per-width lane groups are folded
        # by the W-tiled fc weight, so no lane reshapes are needed.
        s = jnp.sum(u, axis=1) * inv_hw                                # (Bt, WC) f32

        # fc (1x1 conv C->d) + folded BN + ReLU.
        z = jnp.dot(s.astype(jnp.bfloat16), wfc_ref[...],
                    preferred_element_type=jnp.float32) + bfc_ref[...]
        zb = jnp.maximum(z, 0.0).astype(jnp.bfloat16)                  # (Bt, d)

        # All M attention heads in ONE matmul (lane-dense M*WC columns), then
        # softmax over the branch axis.
        logits = jnp.dot(zb, watt_ref[...],
                         preferred_element_type=jnp.float32) + batt_ref[...]
        per_br = [logits[:, m * WC:(m + 1) * WC] for m in range(n_branches)]
        mx = per_br[0]
        for m in range(1, n_branches):
            mx = jnp.maximum(mx, per_br[m])
        exps = [jnp.exp(lg - mx) for lg in per_br]
        denom = exps[0]
        for m in range(1, n_branches):
            denom = denom + exps[m]
        inv = pl.reciprocal(denom, approx=True)                        # EUP vrcp

        # Attention-weighted branch sum; lane-dense bf16 store.
        out = feats[0] * (exps[0] * inv)[:, None, :]
        for m in range(1, n_branches):
            out = out + feats[m] * (exps[m] * inv)[:, None, :]
        out_ref[...] = out.astype(out_ref.dtype)

    return kernel


# ---------------------------------- wrapper -----------------------------------
def skconv_pallas(x_nhwc, kp):
    B, H, W, C = x_nhwc.shape
    assert C == FEATURES
    WC = W * C
    hp = H + 2 * PAD
    hp_al = ((hp + 15) // 16) * 16        # bf16 sublane pack -> copy-free collapse

    # Batch tile: target >=256 LHS rows (fills the v6e/v7x 256-wide MXU; 128 is
    # already enough for v5e), but keep the grid at >=2 steps so pipelining and
    # v7x dual-TC sharding stay alive.
    target_rows = 256
    bt_cap = max(1, B // 2)
    bt_pref = max(1, target_rows // hp_al)
    bt = 1
    for t in range(min(B, bt_cap, bt_pref), 0, -1):
        if B % t == 0:
            bt = t
            break

    # Pad ONLY the height (the 'same' width padding lives in the banded
    # weights), flatten (W, C) into one lane-dense axis, cast bf16.
    x = jnp.pad(x_nhwc.astype(jnp.bfloat16),
                ((0, 0), (PAD, PAD + hp_al - hp), (0, 0), (0, 0)))
    x = x.reshape(B, hp_al, WC)

    hcomb = _make_height_combine(H, hp_al)
    nblk = M * KSIZE
    d = kp["wfc"].shape[1]
    kernel = _make_skconv_kernel(H, W, C, hp_al, M, KSIZE)

    weight_bytes = sum(int(np.prod(a.shape)) * a.dtype.itemsize
                       for a in (kp["wband"], kp["bconv"], hcomb, kp["wfc"],
                                 kp["bfc"], kp["watt"], kp["batt"]))
    block_bytes = bt * hp_al * WC * 2 + bt * H * WC * 2
    partial_bytes = bt * hp_al * nblk * WC * 4
    vmem_limit = int(np.clip(2 * (weight_bytes + block_bytes)
                             + 2 * partial_bytes + (8 << 20),
                             32 << 20, 64 << 20))      # stay inside v7x physical

    flops = (2 * B * hp_al * WC * nblk * WC            # banded width conv
             + 2 * B * nblk * H * hp_al * WC           # height-tap combine
             + 2 * B * WC * d + 2 * B * d * M * WC)    # fc + fused attention
    cost = pl.CostEstimate(
        flops=int(flops),
        transcendentals=int(B * M * WC),
        bytes_accessed=int(B * hp_al * WC * 2 + B * H * WC * 2 + weight_bytes))

    out = pl.pallas_call(
        kernel,
        out_shape=jax.ShapeDtypeStruct((B, H, WC), jnp.bfloat16),      # bf16 writeback
        grid_spec=pltpu.PrefetchScalarGridSpec(
            num_scalar_prefetch=0,
            grid=(B // bt,),
            in_specs=[
                pl.BlockSpec((bt, hp_al, WC), lambda b: (b, 0, 0)),    # activations
                pl.BlockSpec((WC, nblk * WC), lambda b: (0, 0)),       # banded conv weights
                pl.BlockSpec((M, 1, WC), lambda b: (0, 0, 0)),         # conv BN shift
                pl.BlockSpec((nblk, H, hp_al), lambda b: (0, 0, 0)),   # height shift-sum
                pl.BlockSpec((WC, d), lambda b: (0, 0)),               # fc weight
                pl.BlockSpec((1, d), lambda b: (0, 0)),                # fc BN shift
                pl.BlockSpec((d, M * WC), lambda b: (0, 0)),           # fused attention W
                pl.BlockSpec((1, M * WC), lambda b: (0, 0)),           # fused attention b
            ],
            out_specs=pl.BlockSpec((bt, H, WC), lambda b: (b, 0, 0)),
        ),
        compiler_params=pltpu.CompilerParams(
            dimension_semantics=("parallel",),         # batch axis -> 2nd TC on v7x
            vmem_limit_bytes=vmem_limit),
        cost_estimate=cost,
    )(x, kp["wband"], kp["bconv"], hcomb, kp["wfc"], kp["bfc"],
      kp["watt"], kp["batt"])

    return out.reshape(B, H, W, C)                     # NHWC, bf16


# -------------------------- pure-JAX reference (NCHW) --------------------------
def skconv_ref(x_nchw, p):
    conv_scale = p["conv_gamma"] / jnp.sqrt(p["conv_rvar"] + EPS)
    conv_shift = p["conv_beta"] - conv_scale * p["conv_rmean"]
    fc_scale = p["fc_gamma"] / jnp.sqrt(p["fc_rvar"] + EPS)
    fc_shift = p["fc_beta"] - fc_scale * p["fc_rmean"]
    HIGHEST = jax.lax.Precision.HIGHEST
    half = KSIZE // 2

    feats = []
    for m in range(M):
        dil = m + 1
        y = jax.lax.conv_general_dilated(
            x_nchw, p["wg"][m], window_strides=(1, 1),
            padding=((half * dil, half * dil), (half * dil, half * dil)),
            rhs_dilation=(dil, dil), feature_group_count=G,
            dimension_numbers=("NCHW", "OIHW", "NCHW"), precision=HIGHEST)
        y = y * conv_scale[m][None, :, None, None] + conv_shift[m][None, :, None, None]
        feats.append(jnp.maximum(y, 0.0))
    feats = jnp.stack(feats, axis=1)                                   # (B, M, C, H, W)
    U = jnp.sum(feats, axis=1)
    S = jnp.mean(U, axis=(2, 3))                                       # (B, C)
    Z = jnp.maximum(jnp.dot(S, (p["wfc_raw"] * fc_scale[:, None]).T,
                            precision=HIGHEST) + fc_shift, 0.0)        # (B, d)
    logits = jnp.stack(
        [jnp.dot(Z, p["watt_raw"][m].T, precision=HIGHEST) + p["batt_raw"][m]
         for m in range(M)], axis=1)                                   # (B, M, C)
    att = jax.nn.softmax(logits, axis=1)
    return jnp.sum(feats * att[:, :, :, None, None], axis=1)


# ------------------------------------- main ------------------------------------
if __name__ == "__main__":
    B, H, W = 2, 16, 16
    key = jax.random.PRNGKey(0)
    kx, kparam = jax.random.split(key)
    x_nchw = jax.random.normal(kx, (B, FEATURES, H, W), jnp.float32)   # NCHW like PyTorch

    params = init_params(kparam)
    kernel_params = make_kernel_params(params, W)

    x_nhwc = jnp.transpose(x_nchw, (0, 2, 3, 1))                       # test-harness only
    run = jax.jit(skconv_pallas)
    out = run(x_nhwc, kernel_params)
    out = jax.block_until_ready(out)

    ref = jnp.transpose(skconv_ref(x_nchw, params), (0, 2, 3, 1))
    # bf16 activations/weights/feats/output + approx reciprocal vs. an f32
    # HIGHEST-precision reference -> loose inference-level tolerance.
    np.testing.assert_allclose(np.asarray(out.astype(jnp.float32)),
                               np.asarray(ref), rtol=3e-2, atol=3e-2)

    print("KERNEL_OK")
</pallas_src>

<mosaic_0001>
module attributes {stable_mosaic.version = 11 : i64} {
  func.func @kernel(%arg0: i32, %arg1: memref<1x32x256xbf16, #tpu.memory_space<vmem>>, %arg2: memref<256x3584xbf16, #tpu.memory_space<vmem>>, %arg3: memref<2x1x256xf32, #tpu.memory_space<vmem>>, %arg4: memref<14x16x32xf32, #tpu.memory_space<vmem>>, %arg5: memref<256x32xbf16, #tpu.memory_space<vmem>>, %arg6: memref<1x32xf32, #tpu.memory_space<vmem>>, %arg7: memref<32x512xbf16, #tpu.memory_space<vmem>>, %arg8: memref<1x512xf32, #tpu.memory_space<vmem>>, %arg9: memref<1x16x256xbf16, #tpu.memory_space<vmem>>) attributes {dimension_semantics = [#tpu.dimension_semantics<parallel>], iteration_bounds = array<i64: 2>, scalar_prefetch = 0 : i64, scratch_operands = 0 : i64, tpu.core_type = #tpu.core_type<tc>, window_params = [{transform_indices = @transform_0, window_bounds = array<i64: 1, 32, 256>}, {pipeline_mode = #tpu.pipeline_mode<synchronous>, transform_indices = @transform_1, window_bounds = array<i64: 256, 3584>}, {pipeline_mode = #tpu.pipeline_mode<synchronous>, transform_indices = @transform_2, window_bounds = array<i64: 2, 1, 256>}, {pipeline_mode = #tpu.pipeline_mode<synchronous>, transform_indices = @transform_3, window_bounds = array<i64: 14, 16, 32>}, {pipeline_mode = #tpu.pipeline_mode<synchronous>, transform_indices = @transform_4, window_bounds = array<i64: 256, 32>}, {pipeline_mode = #tpu.pipeline_mode<synchronous>, transform_indices = @transform_5, window_bounds = array<i64: 1, 32>}, {pipeline_mode = #tpu.pipeline_mode<synchronous>, transform_indices = @transform_6, window_bounds = array<i64: 32, 512>}, {pipeline_mode = #tpu.pipeline_mode<synchronous>, transform_indices = @transform_7, window_bounds = array<i64: 1, 512>}, {transform_indices = @transform_8, window_bounds = array<i64: 1, 16, 256>}]} {
    %c0 = arith.constant 0 : index
    %c0_0 = arith.constant 0 : index
    %c0_1 = arith.constant 0 : index
    %0 = vector.load %arg1[%c0, %c0_0, %c0_1] : memref<1x32x256xbf16, #tpu.memory_space<vmem>>, vector<1x32x256xbf16>
    %1 = vector.shape_cast %0 : vector<1x32x256xbf16> to vector<32x256xbf16>
    %c0_2 = arith.constant 0 : index
    %c0_3 = arith.constant 0 : index
    %2 = vector.load %arg2[%c0_2, %c0_3] : memref<256x3584xbf16, #tpu.memory_space<vmem>>, vector<256x3584xbf16>
    %cst = arith.constant dense<0.000000e+00> : vector<32x3584xf32>
    %3 = tpu.matmul %1, %2, %cst {dimension_numbers = #tpu.dot_dimension_numbers<[1], [0], [0], [1], [0, 0, 1, 1], [], []>} : vector<32x256xbf16>, vector<256x3584xbf16>, vector<32x3584xf32> -> vector<32x3584xf32>
    %4 = vector.shape_cast %3 : vector<32x3584xf32> to vector<1x32x3584xf32>
    %5 = vector.extract_strided_slice %4 {offsets = [0, 0, 0], sizes = [1, 32, 256], strides = [1, 1, 1]} : vector<1x32x3584xf32> to vector<1x32x256xf32>
    %c0_4 = arith.constant 0 : index
    %c0_5 = arith.constant 0 : index
    %c0_6 = arith.constant 0 : index
    %6 = vector.load %arg4[%c0_4, %c0_5, %c0_6] : memref<14x16x32xf32, #tpu.memory_space<vmem>>, vector<1x16x32xf32>
    %7 = vector.shape_cast %6 : vector<1x16x32xf32> to vector<16x32xf32>
    %8 = vector.shape_cast %7 : vector<16x32xf32> to vector<1x16x32xf32>
    %cst_7 = arith.constant dense<0.000000e+00> : vector<1x16x256xf32>
    %9 = tpu.matmul %8, %5, %cst_7 {dimension_numbers = #tpu.dot_dimension_numbers<[2], [1], [1], [2], [0, 0, 0, 1, 1, 2], [0], [0]>} : vector<1x16x32xf32>, vector<1x32x256xf32>, vector<1x16x256xf32> -> vector<1x16x256xf32>
    %10 = vector.extract_strided_slice %4 {offsets = [0, 0, 256], sizes = [1, 32, 256], strides = [1, 1, 1]} : vector<1x32x3584xf32> to vector<1x32x256xf32>
    %c1 = arith.constant 1 : index
    %c0_8 = arith.constant 0 : index
    %c0_9 = arith.constant 0 : index
    %11 = vector.load %arg4[%c1, %c0_8, %c0_9] : memref<14x16x32xf32, #tpu.memory_space<vmem>>, vector<1x16x32xf32>
    %12 = vector.shape_cast %11 : vector<1x16x32xf32> to vector<16x32xf32>
    %13 = vector.shape_cast %12 : vector<16x32xf32> to vector<1x16x32xf32>
    %cst_10 = arith.constant dense<0.000000e+00> : vector<1x16x256xf32>
    %14 = tpu.matmul %13, %10, %cst_10 {dimension_numbers = #tpu.dot_dimension_numbers<[2], [1], [1], [2], [0, 0, 0, 1, 1, 2], [0], [0]>} : vector<1x16x32xf32>, vector<1x32x256xf32>, vector<1x16x256xf32> -> vector<1x16x256xf32>
    %15 = arith.addf %9, %14 : vector<1x16x256xf32>
    %16 = vector.extract_strided_slice %4 {offsets = [0, 0, 512], sizes = [1, 32, 256], strides = [1, 1, 1]} : vector<1x32x3584xf32> to vector<1x32x256xf32>
    %c2 = arith.constant 2 : index
    %c0_11 = arith.constant 0 : index
    %c0_12 = arith.constant 0 : index
    %17 = vector.load %arg4[%c2, %c0_11, %c0_12] : memref<14x16x32xf32, #tpu.memory_space<vmem>>, vector<1x16x32xf32>
    %18 = vector.shape_cast %17 : vector<1x16x32xf32> to vector<16x32xf32>
    %19 = vector.shape_cast %18 : vector<16x32xf32> to vector<1x16x32xf32>
    %cst_13 = arith.constant dense<0.000000e+00> : vector<1x16x256xf32>
    %20 = tpu.matmul %19, %16, %cst_13 {dimension_numbers = #tpu.dot_dimension_numbers<[2], [1], [1], [2], [0, 0, 0, 1, 1, 2], [0], [0]>} : vector<1x16x32xf32>, vector<1x32x256xf32>, vector<1x16x256xf32> -> vector<1x16x256xf32>
    %21 = arith.addf %15, %20 : vector<1x16x256xf32>
    %22 = vector.extract_strided_slice %4 {offsets = [0, 0, 768], sizes = [1, 32, 256], strides = [1, 1, 1]} : vector<1x32x3584xf32> to vector<1x32x256xf32>
    %c3 = arith.constant 3 : index
    %c0_14 = arith.constant 0 : index
    %c0_15 = arith.constant 0 : index
    %23 = vector.load %arg4[%c3, %c0_14, %c0_15] : memref<14x16x32xf32, #tpu.memory_space<vmem>>, vector<1x16x32xf32>
    %24 = vector.shape_cast %23 : vector<1x16x32xf32> to vector<16x32xf32>
    %25 = vector.shape_cast %24 : vector<16x32xf32> to vector<1x16x32xf32>
    %cst_16 = arith.constant dense<0.000000e+00> : vector<1x16x256xf32>
    %26 = tpu.matmul %25, %22, %cst_16 {dimension_numbers = #tpu.dot_dimension_numbers<[2], [1], [1], [2], [0, 0, 0, 1, 1, 2], [0], [0]>} : vector<1x16x32xf32>, vector<1x32x256xf32>, vector<1x16x256xf32> -> vector<1x16x256xf32>
    %27 = arith.addf %21, %26 : vector<1x16x256xf32>
    %28 = vector.extract_strided_slice %4 {offsets = [0, 0, 1024], sizes = [1, 32, 256], strides = [1, 1, 1]} : vector<1x32x3584xf32> to vector<1x32x256xf32>
    %c4 = arith.constant 4 : index
    %c0_17 = arith.constant 0 : index
    %c0_18 = arith.constant 0 : index
    %29 = vector.load %arg4[%c4, %c0_17, %c0_18] : memref<14x16x32xf32, #tpu.memory_space<vmem>>, vector<1x16x32xf32>
    %30 = vector.shape_cast %29 : vector<1x16x32xf32> to vector<16x32xf32>
    %31 = vector.shape_cast %30 : vector<16x32xf32> to vector<1x16x32xf32>
    %cst_19 = arith.constant dense<0.000000e+00> : vector<1x16x256xf32>
    %32 = tpu.matmul %31, %28, %cst_19 {dimension_numbers = #tpu.dot_dimension_numbers<[2], [1], [1], [2], [0, 0, 0, 1, 1, 2], [0], [0]>} : vector<1x16x32xf32>, vector<1x32x256xf32>, vector<1x16x256xf32> -> vector<1x16x256xf32>
    %33 = arith.addf %27, %32 : vector<1x16x256xf32>
    %34 = vector.extract_strided_slice %4 {offsets = [0, 0, 1280], sizes = [1, 32, 256], strides = [1, 1, 1]} : vector<1x32x3584xf32> to vector<1x32x256xf32>
    %c5 = arith.constant 5 : index
    %c0_20 = arith.constant 0 : index
    %c0_21 = arith.constant 0 : index
    %35 = vector.load %arg4[%c5, %c0_20, %c0_21] : memref<14x16x32xf32, #tpu.memory_space<vmem>>, vector<1x16x32xf32>
    %36 = vector.shape_cast %35 : vector<1x16x32xf32> to vector<16x32xf32>
    %37 = vector.shape_cast %36 : vector<16x32xf32> to vector<1x16x32xf32>
    %cst_22 = arith.constant dense<0.000000e+00> : vector<1x16x256xf32>
    %38 = tpu.matmul %37, %34, %cst_22 {dimension_numbers = #tpu.dot_dimension_numbers<[2], [1], [1], [2], [0, 0, 0, 1, 1, 2], [0], [0]>} : vector<1x16x32xf32>, vector<1x32x256xf32>, vector<1x16x256xf32> -> vector<1x16x256xf32>
    %39 = arith.addf %33, %38 : vector<1x16x256xf32>
    %40 = vector.extract_strided_slice %4 {offsets = [0, 0, 1536], sizes = [1, 32, 256], strides = [1, 1, 1]} : vector<1x32x3584xf32> to vector<1x32x256xf32>
    %c6 = arith.constant 6 : index
    %c0_23 = arith.constant 0 : index
    %c0_24 = arith.constant 0 : index
    %41 = vector.load %arg4[%c6, %c0_23, %c0_24] : memref<14x16x32xf32, #tpu.memory_space<vmem>>, vector<1x16x32xf32>
    %42 = vector.shape_cast %41 : vector<1x16x32xf32> to vector<16x32xf32>
    %43 = vector.shape_cast %42 : vector<16x32xf32> to vector<1x16x32xf32>
    %cst_25 = arith.constant dense<0.000000e+00> : vector<1x16x256xf32>
    %44 = tpu.matmul %43, %40, %cst_25 {dimension_numbers = #tpu.dot_dimension_numbers<[2], [1], [1], [2], [0, 0, 0, 1, 1, 2], [0], [0]>} : vector<1x16x32xf32>, vector<1x32x256xf32>, vector<1x16x256xf32> -> vector<1x16x256xf32>
    %45 = arith.addf %39, %44 : vector<1x16x256xf32>
    %c0_26 = arith.constant 0 : index
    %c0_27 = arith.constant 0 : index
    %c0_28 = arith.constant 0 : index
    %46 = vector.load %arg3[%c0_26, %c0_27, %c0_28] : memref<2x1x256xf32, #tpu.memory_space<vmem>>, vector<1x1x256xf32>
    %47 = vector.shape_cast %46 : vector<1x1x256xf32> to vector<1x256xf32>
    %48 = vector.shape_cast %47 : vector<1x256xf32> to vector<1x1x256xf32>
    %49 = vector.broadcast %48 : vector<1x1x256xf32> to vector<1x16x256xf32>
    %50 = arith.addf %45, %49 : vector<1x16x256xf32>
    %cst_29 = arith.constant 0.000000e+00 : f32
    %51 = vector.broadcast %cst_29 : f32 to vector<1x16x256xf32>
    %52 = arith.maximumf %50, %51 : vector<1x16x256xf32>
    %53 = arith.truncf %52 : vector<1x16x256xf32> to vector<1x16x256xbf16>
    %54 = vector.extract_strided_slice %4 {offsets = [0, 0, 1792], sizes = [1, 32, 256], strides = [1, 1, 1]} : vector<1x32x3584xf32> to vector<1x32x256xf32>
    %c7 = arith.constant 7 : index
    %c0_30 = arith.constant 0 : index
    %c0_31 = arith.constant 0 : index
    %55 = vector.load %arg4[%c7, %c0_30, %c0_31] : memref<14x16x32xf32, #tpu.memory_space<vmem>>, vector<1x16x32xf32>
    %56 = vector.shape_cast %55 : vector<1x16x32xf32> to vector<16x32xf32>
    %57 = vector.shape_cast %56 : vector<16x32xf32> to vector<1x16x32xf32>
    %cst_32 = arith.constant dense<0.000000e+00> : vector<1x16x256xf32>
    %58 = tpu.matmul %57, %54, %cst_32 {dimension_numbers = #tpu.dot_dimension_numbers<[2], [1], [1], [2], [0, 0, 0, 1, 1, 2], [0], [0]>} : vector<1x16x32xf32>, vector<1x32x256xf32>, vector<1x16x256xf32> -> vector<1x16x256xf32>
    %59 = vector.extract_strided_slice %4 {offsets = [0, 0, 2048], sizes = [1, 32, 256], strides = [1, 1, 1]} : vector<1x32x3584xf32> to vector<1x32x256xf32>
    %c8 = arith.constant 8 : index
    %c0_33 = arith.constant 0 : index
    %c0_34 = arith.constant 0 : index
    %60 = vector.load %arg4[%c8, %c0_33, %c0_34] : memref<14x16x32xf32, #tpu.memory_space<vmem>>, vector<1x16x32xf32>
    %61 = vector.shape_cast %60 : vector<1x16x32xf32> to vector<16x32xf32>
    %62 = vector.shape_cast %61 : vector<16x32xf32> to vector<1x16x32xf32>
    %cst_35 = arith.constant dense<0.000000e+00> : vector<1x16x256xf32>
    %63 = tpu.matmul %62, %59, %cst_35 {dimension_numbers = #tpu.dot_dimension_numbers<[2], [1], [1], [2], [0, 0, 0, 1, 1, 2], [0], [0]>} : vector<1x16x32xf32>, vector<1x32x256xf32>, vector<1x16x256xf32> -> vector<1x16x256xf32>
    %64 = arith.addf %58, %63 : vector<1x16x256xf32>
    %65 = vector.extract_strided_slice %4 {offsets = [0, 0, 2304], sizes = [1, 32, 256], strides = [1, 1, 1]} : vector<1x32x3584xf32> to vector<1x32x256xf32>
    %c9 = arith.constant 9 : index
    %c0_36 = arith.constant 0 : index
    %c0_37 = arith.constant 0 : index
    %66 = vector.load %arg4[%c9, %c0_36, %c0_37] : memref<14x16x32xf32, #tpu.memory_space<vmem>>, vector<1x16x32xf32>
    %67 = vector.shape_cast %66 : vector<1x16x32xf32> to vector<16x32xf32>
    %68 = vector.shape_cast %67 : vector<16x32xf32> to vector<1x16x32xf32>
    %cst_38 = arith.constant dense<0.000000e+00> : vector<1x16x256xf32>
    %69 = tpu.matmul %68, %65, %cst_38 {dimension_numbers = #tpu.dot_dimension_numbers<[2], [1], [1], [2], [0, 0, 0, 1, 1, 2], [0], [0]>} : vector<1x16x32xf32>, vector<1x32x256xf32>, vector<1x16x256xf32> -> vector<1x16x256xf32>
    %70 = arith.addf %64, %69 : vector<1x16x256xf32>
    %71 = vector.extract_strided_slice %4 {offsets = [0, 0, 2560], sizes = [1, 32, 256], strides = [1, 1, 1]} : vector<1x32x3584xf32> to vector<1x32x256xf32>
    %c10 = arith.constant 10 : index
    %c0_39 = arith.constant 0 : index
    %c0_40 = arith.constant 0 : index
    %72 = vector.load %arg4[%c10, %c0_39, %c0_40] : memref<14x16x32xf32, #tpu.memory_space<vmem>>, vector<1x16x32xf32>
    %73 = vector.shape_cast %72 : vector<1x16x32xf32> to vector<16x32xf32>
    %74 = vector.shape_cast %73 : vector<16x32xf32> to vector<1x16x32xf32>
    %cst_41 = arith.constant dense<0.000000e+00> : vector<1x16x256xf32>
    %75 = tpu.matmul %74, %71, %cst_41 {dimension_numbers = #tpu.dot_dimension_numbers<[2], [1], [1], [2], [0, 0, 0, 1, 1, 2], [0], [0]>} : vector<1x16x32xf32>, vector<1x32x256xf32>, vector<1x16x256xf32> -> vector<1x16x256xf32>
    %76 = arith.addf %70, %75 : vector<1x16x256xf32>
    %77 = vector.extract_strided_slice %4 {offsets = [0, 0, 2816], sizes = [1, 32, 256], strides = [1, 1, 1]} : vector<1x32x3584xf32> to vector<1x32x256xf32>
    %c11 = arith.constant 11 : index
    %c0_42 = arith.constant 0 : index
    %c0_43 = arith.constant 0 : index
    %78 = vector.load %arg4[%c11, %c0_42, %c0_43] : memref<14x16x32xf32, #tpu.memory_space<vmem>>, vector<1x16x32xf32>
    %79 = vector.shape_cast %78 : vector<1x16x32xf32> to vector<16x32xf32>
    %80 = vector.shape_cast %79 : vector<16x32xf32> to vector<1x16x32xf32>
    %cst_44 = arith.constant dense<0.000000e+00> : vector<1x16x256xf32>
    %81 = tpu.matmul %80, %77, %cst_44 {dimension_numbers = #tpu.dot_dimension_numbers<[2], [1], [1], [2], [0, 0, 0, 1, 1, 2], [0], [0]>} : vector<1x16x32xf32>, vector<1x32x256xf32>, vector<1x16x256xf32> -> vector<1x16x256xf32>
    %82 = arith.addf %76, %81 : vector<1x16x256xf32>
    %83 = vector.extract_strided_slice %4 {offsets = [0, 0, 3072], sizes = [1, 32, 256], strides = [1, 1, 1]} : vector<1x32x3584xf32> to vector<1x32x256xf32>
    %c12 = arith.constant 12 : index
    %c0_45 = arith.constant 0 : index
    %c0_46 = arith.constant 0 : index
    %84 = vector.load %arg4[%c12, %c0_45, %c0_46] : memref<14x16x32xf32, #tpu.memory_space<vmem>>, vector<1x16x32xf32>
    %85 = vector.shape_cast %84 : vector<1x16x32xf32> to vector<16x32xf32>
    %86 = vector.shape_cast %85 : vector<16x32xf32> to vector<1x16x32xf32>
    %cst_47 = arith.constant dense<0.000000e+00> : vector<1x16x256xf32>
    %87 = tpu.matmul %86, %83, %cst_47 {dimension_numbers = #tpu.dot_dimension_numbers<[2], [1], [1], [2], [0, 0, 0, 1, 1, 2], [0], [0]>} : vector<1x16x32xf32>, vector<1x32x256xf32>, vector<1x16x256xf32> -> vector<1x16x256xf32>
    %88 = arith.addf %82, %87 : vector<1x16x256xf32>
    %89 = vector.extract_strided_slice %4 {offsets = [0, 0, 3328], sizes = [1, 32, 256], strides = [1, 1, 1]} : vector<1x32x3584xf32> to vector<1x32x256xf32>
    %c13 = arith.constant 13 : index
    %c0_48 = arith.constant 0 : index
    %c0_49 = arith.constant 0 : index
    %90 = vector.load %arg4[%c13, %c0_48, %c0_49] : memref<14x16x32xf32, #tpu.memory_space<vmem>>, vector<1x16x32xf32>
    %91 = vector.shape_cast %90 : vector<1x16x32xf32> to vector<16x32xf32>
    %92 = vector.shape_cast %91 : vector<16x32xf32> to vector<1x16x32xf32>
    %cst_50 = arith.constant dense<0.000000e+00> : vector<1x16x256xf32>
    %93 = tpu.matmul %92, %89, %cst_50 {dimension_numbers = #tpu.dot_dimension_numbers<[2], [1], [1], [2], [0, 0, 0, 1, 1, 2], [0], [0]>} : vector<1x16x32xf32>, vector<1x32x256xf32>, vector<1x16x256xf32> -> vector<1x16x256xf32>
    %94 = arith.addf %88, %93 : vector<1x16x256xf32>
    %c1_51 = arith.constant 1 : index
    %c0_52 = arith.constant 0 : index
    %c0_53 = arith.constant 0 : index
    %95 = vector.load %arg3[%c1_51, %c0_52, %c0_53] : memref<2x1x256xf32, #tpu.memory_space<vmem>>, vector<1x1x256xf32>
    %96 = vector.shape_cast %95 : vector<1x1x256xf32> to vector<1x256xf32>
    %97 = vector.shape_cast %96 : vector<1x256xf32> to vector<1x1x256xf32>
    %98 = vector.broadcast %97 : vector<1x1x256xf32> to vector<1x16x256xf32>
    %99 = arith.addf %94, %98 : vector<1x16x256xf32>
    %cst_54 = arith.constant 0.000000e+00 : f32
    %100 = vector.broadcast %cst_54 : f32 to vector<1x16x256xf32>
    %101 = arith.maximumf %99, %100 : vector<1x16x256xf32>
    %102 = arith.addf %52, %101 : vector<1x16x256xf32>
    %103 = arith.truncf %101 : vector<1x16x256xf32> to vector<1x16x256xbf16>
    %cst_55 = arith.constant dense<0.000000e+00> : vector<1x256xf32>
    %104 = vector.multi_reduction <add>, %102, %cst_55 [1] : vector<1x16x256xf32> to vector<1x256xf32>
    %cst_56 = arith.constant 3.906250e-03 : f32
    %105 = vector.broadcast %cst_56 : f32 to vector<1x256xf32>
    %106 = arith.mulf %104, %105 : vector<1x256xf32>
    %107 = arith.truncf %106 : vector<1x256xf32> to vector<1x256xbf16>
    %c0_57 = arith.constant 0 : index
    %c0_58 = arith.constant 0 : index
    %108 = vector.load %arg5[%c0_57, %c0_58] : memref<256x32xbf16, #tpu.memory_space<vmem>>, vector<256x32xbf16>
    %cst_59 = arith.constant dense<0.000000e+00> : vector<1x32xf32>
    %109 = tpu.matmul %107, %108, %cst_59 {dimension_numbers = #tpu.dot_dimension_numbers<[1], [0], [0], [1], [0, 0, 1, 1], [], []>} : vector<1x256xbf16>, vector<256x32xbf16>, vector<1x32xf32> -> vector<1x32xf32>
    %c0_60 = arith.constant 0 : index
    %c0_61 = arith.constant 0 : index
    %110 = vector.load %arg6[%c0_60, %c0_61] : memref<1x32xf32, #tpu.memory_space<vmem>>, vector<1x32xf32>
    %111 = arith.addf %109, %110 : vector<1x32xf32>
    %cst_62 = arith.constant 0.000000e+00 : f32
    %112 = vector.broadcast %cst_62 : f32 to vector<1x32xf32>
    %113 = arith.maximumf %111, %112 : vector<1x32xf32>
    %114 = arith.truncf %113 : vector<1x32xf32> to vector<1x32xbf16>
    %c0_63 = arith.constant 0 : index
    %c0_64 = arith.constant 0 : index
    %115 = vector.load %arg7[%c0_63, %c0_64] : memref<32x512xbf16, #tpu.memory_space<vmem>>, vector<32x512xbf16>
    %cst_65 = arith.constant dense<0.000000e+00> : vector<1x512xf32>
    %116 = tpu.matmul %114, %115, %cst_65 {dimension_numbers = #tpu.dot_dimension_numbers<[1], [0], [0], [1], [0, 0, 1, 1], [], []>} : vector<1x32xbf16>, vector<32x512xbf16>, vector<1x512xf32> -> vector<1x512xf32>
    %c0_66 = arith.constant 0 : index
    %c0_67 = arith.constant 0 : index
    %117 = vector.load %arg8[%c0_66, %c0_67] : memref<1x512xf32, #tpu.memory_space<vmem>>, vector<1x512xf32>
    %118 = arith.addf %116, %117 : vector<1x512xf32>
    %119 = vector.extract_strided_slice %118 {offsets = [0, 0], sizes = [1, 256], strides = [1, 1]} : vector<1x512xf32> to vector<1x256xf32>
    %120 = vector.extract_strided_slice %118 {offsets = [0, 256], sizes = [1, 256], strides = [1, 1]} : vector<1x512xf32> to vector<1x256xf32>
    %121 = arith.maximumf %119, %120 : vector<1x256xf32>
    %122 = arith.subf %119, %121 : vector<1x256xf32>
    %123 = math.exp %122 : vector<1x256xf32>
    %124 = arith.subf %120, %121 : vector<1x256xf32>
    %125 = math.exp %124 : vector<1x256xf32>
    %126 = arith.addf %123, %125 : vector<1x256xf32>
    %127 = tpu.reciprocal %126 {approx = true} : vector<1x256xf32> -> vector<1x256xf32>
    %128 = arith.mulf %123, %127 : vector<1x256xf32>
    %129 = vector.shape_cast %128 : vector<1x256xf32> to vector<1x1x256xf32>
    %130 = arith.extf %53 : vector<1x16x256xbf16> to vector<1x16x256xf32>
    %131 = vector.broadcast %129 : vector<1x1x256xf32> to vector<1x16x256xf32>
    %132 = arith.mulf %130, %131 : vector<1x16x256xf32>
    %133 = arith.mulf %125, %127 : vector<1x256xf32>
    %134 = vector.shape_cast %133 : vector<1x256xf32> to vector<1x1x256xf32>
    %135 = arith.extf %103 : vector<1x16x256xbf16> to vector<1x16x256xf32>
    %136 = vector.broadcast %134 : vector<1x1x256xf32> to vector<1x16x256xf32>
    %137 = arith.mulf %135, %136 : vector<1x16x256xf32>
    %138 = arith.addf %132, %137 : vector<1x16x256xf32>
    %139 = arith.truncf %138 : vector<1x16x256xf32> to vector<1x16x256xbf16>
    %c0_68 = arith.constant 0 : index
    %c0_69 = arith.constant 0 : index
    %c0_70 = arith.constant 0 : index
    %140 = vector.load %arg9[%c0_68, %c0_69, %c0_70] : memref<1x16x256xbf16, #tpu.memory_space<vmem>>, vector<1x16x256xbf16>
    tpu.vector_store %arg9[%c0_68, %c0_69, %c0_70], %139 {strides = array<i32>} : memref<1x16x256xbf16, #tpu.memory_space<vmem>>, vector<1x16x256xbf16>,
    return
  }
  func.func @transform_0(%arg0: i32) -> (i32, i32, i32) {
    %c0_i32 = arith.constant 0 : i32
    %c0_i32_0 = arith.constant 0 : i32
    %c0_i32_1 = arith.constant 0 : i32
    return %arg0, %c0_i32, %c0_i32_0 : i32, i32, i32
  }
  func.func @transform_1(%arg0: i32) -> (i32, i32) {
    %c0_i32 = arith.constant 0 : i32
    %c0_i32_0 = arith.constant 0 : i32
    %c0_i32_1 = arith.constant 0 : i32
    return %c0_i32, %c0_i32_0 : i32, i32
  }
  func.func @transform_2(%arg0: i32) -> (i32, i32, i32) {
    %c0_i32 = arith.constant 0 : i32
    %c0_i32_0 = arith.constant 0 : i32
    %c0_i32_1 = arith.constant 0 : i32
    %c0_i32_2 = arith.constant 0 : i32
    return %c0_i32, %c0_i32_0, %c0_i32_1 : i32, i32, i32
  }
  func.func @transform_3(%arg0: i32) -> (i32, i32, i32) {
    %c0_i32 = arith.constant 0 : i32
    %c0_i32_0 = arith.constant 0 : i32
    %c0_i32_1 = arith.constant 0 : i32
    %c0_i32_2 = arith.constant 0 : i32
    return %c0_i32, %c0_i32_0, %c0_i32_1 : i32, i32, i32
  }
  func.func @transform_4(%arg0: i32) -> (i32, i32) {
    %c0_i32 = arith.constant 0 : i32
    %c0_i32_0 = arith.constant 0 : i32
    %c0_i32_1 = arith.constant 0 : i32
    return %c0_i32, %c0_i32_0 : i32, i32
  }
  func.func @transform_5(%arg0: i32) -> (i32, i32) {
    %c0_i32 = arith.constant 0 : i32
    %c0_i32_0 = arith.constant 0 : i32
    %c0_i32_1 = arith.constant 0 : i32
    return %c0_i32, %c0_i32_0 : i32, i32
  }
  func.func @transform_6(%arg0: i32) -> (i32, i32) {
    %c0_i32 = arith.constant 0 : i32
    %c0_i32_0 = arith.constant 0 : i32
    %c0_i32_1 = arith.constant 0 : i32
    return %c0_i32, %c0_i32_0 : i32, i32
  }
  func.func @transform_7(%arg0: i32) -> (i32, i32) {
    %c0_i32 = arith.constant 0 : i32
    %c0_i32_0 = arith.constant 0 : i32
    %c0_i32_1 = arith.constant 0 : i32
    return %c0_i32, %c0_i32_0 : i32, i32
  }
  func.func @transform_8(%arg0: i32) -> (i32, i32, i32) {
    %c0_i32 = arith.constant 0 : i32
    %c0_i32_0 = arith.constant 0 : i32
    %c0_i32_1 = arith.constant 0 : i32
    return %arg0, %c0_i32, %c0_i32_0 : i32, i32, i32
  }
}

</mosaic_0001>

<llo_original>
// kernel: skconv_pallas.1
$region0: #{skconv_pallas.1}
  #allocation0 [shape = 'u32[]', space=smem, size = 0x4, offset = 0x4, fixed_abs, tag = 'smem constant byte address 0x4 - core index']
  #allocation1 [shape = 'u32[144,128]{1,0:T(1,128)}', space=vmem, size = 0x12000, scoped, tag = 'internal scratch']
  %s0 = inlined_call_operand.vmem [shape: bf16[2,32,256], index: 0, kind: input, shape index: {}]
  %s1 = inlined_call_operand.hbm [shape: bf16[256,3584], index: 1, kind: input, shape index: {}]
  %s2 = inlined_call_operand.hbm [shape: f32[2,1,256], index: 2, kind: input, shape index: {}]
  %s3 = inlined_call_operand.hbm [shape: f32[14,16,32], index: 3, kind: input, shape index: {}]
  %s4 = inlined_call_operand.vmem [shape: bf16[256,32], index: 4, kind: input, shape index: {}]
  %s5 = inlined_call_operand.hbm [shape: f32[1,32], index: 5, kind: input, shape index: {}]
  %s6 = inlined_call_operand.hbm [shape: bf16[32,512], index: 6, kind: input, shape index: {}]
  %s7 = inlined_call_operand.hbm [shape: f32[1,512], index: 7, kind: input, shape index: {}]
  %s8 = inlined_call_operand.vmem [shape: bf16[2,16,256], index: 8, kind: output, shape index: {}]
  %s9 = sld [smem:[#allocation0]]
  $region89: #{skconv_pallas.1} parent=0
    _
  %s11 = ssub.s32 1, %s9
  %s12 = scalar_select 0, %s11, %s9
  $region1: #{skconv_pallas.1} parent=0
    #allocation2 [shape = 'u8[1835008]{0}', space=vmem, size = 0x1c0000, scoped, tag = 'input window, operand 1, single buffered']
    #allocation3 [shape = 's32[2]{0}', space=sflag, size = 0x8, scoped, tag = 'scoped memory for skconv_pallas.1']
    #allocation4 [shape = 'u8[2048]{0}', space=vmem, size = 0x800, scoped, tag = 'input window, operand 2, single buffered']
    #allocation5 [shape = 's32[1]{0}', space=sflag, size = 0x4, scoped, tag = 'scoped memory for skconv_pallas.1']
    #allocation6 [shape = 'u8[114688]{0}', space=vmem, size = 0x1c000, scoped, tag = 'input window, operand 3, single buffered']
    #allocation7 [shape = 'u8[512]{0}', space=vmem, size = 0x400, scoped, tag = 'input window, operand 5, single buffered']
    #allocation8 [shape = 's32[1]{0}', space=sflag, size = 0x4, scoped, tag = 'scoped memory for skconv_pallas.1']
    #allocation9 [shape = 'u8[32768]{0}', space=vmem, size = 0x8000, scoped, tag = 'input window, operand 6, single buffered']
    #allocation10 [shape = 'u8[2048]{0}', space=vmem, size = 0x800, scoped, tag = 'input window, operand 7, single buffered']
    #allocation11 [shape = 's32[1]{0}', space=sflag, size = 0x4, scoped, tag = 'scoped memory for skconv_pallas.1']
    %13 = vsyncpa [#allocation3], 0
    %14 = vsyncpa [#allocation5], 0
    %15 = vsyncpa [#allocation8], 0
    %16 = vsyncpa [#allocation11], 0
    loop: start=0, step=1, limit=4
    $region2: #{skconv_pallas.1} parent=1 // loop_pre_header
      _
    $region3: #{skconv_pallas.1} parent=1 // loop_header
      %s18 = sphi 0, %s22
      %p19 = scmp.ge.s32.totalorder %s18, 4
      %s28 = sphi 0, %s30
      %s31 = sphi 0, %s28
      %s32 = sphi 0, %s31
      %s48 = sphi 0, %s32
      %s52 = sphi 0, %s52
      %s54 = sphi 0, %s52
      %s55 = sphi 0, %s54
      %s69 = sphi 0, %s55
      %s73 = sphi 0, %s73
      %s75 = sphi 0, %s73
      %s76 = sphi 0, %s75
      %s90 = sphi 0, %s76
      %s94 = sphi 0, %s94
      %s96 = sphi 0, %s94
      %s97 = sphi 0, %s96
      %s111 = sphi 0, %s97
      %s115 = sphi 0, %s115
      %s117 = sphi 0, %s115
      %s118 = sphi 0, %s117
      %s132 = sphi 0, %s118
      %s136 = sphi 0, %s136
      %s138 = sphi 0, %s136
      %s139 = sphi 0, %s138
      %s153 = sphi 0, %s139
      %s157 = sphi 0, %s157
      %s159 = sphi 0, %s157
      %s160 = sphi 0, %s159
      %s174 = sphi 0, %s160
      %s178 = sphi 0, %s178
      %s180 = sphi 0, %s178
      %s181 = sphi 0, %s180
      %s195 = sphi 0, %s181
      %s201 = sphi 0, %s203
      %s204 = sphi 0, %s201
      %s205 = sphi 0, %s204
      %s221 = sphi 0, %s205
    $region4: #{skconv_pallas.1} parent=1 // loop_header_branch
      %21 = sbr.rel (%p19) target = $region8
    $region5: #{skconv_pallas.1} parent=1 // loop_body
      %s23 = ssub.s32 %s18, 1
      %s24 = ssub.s32 %s18, 2
      %s25 = sadd.s32 %s18, 1
      %s26 = ssub.s32 %s18, %s25
      %p27 = scmp.eq.s32.totalorder %s26, 0
      %s29 = sadd.s32 %s28, 1
      %s30 = scalar_select %p27, %s28, %s29
      %p33 = pneg %p27
      %p34 = scmp.eq.s32.totalorder %s18, 1
      %p35 = por %p33, %p34
      %p36 = scmp.ne.s32.totalorder %s28, %s31
      %p37 = scmp.eq.s32.totalorder %s18, 0
      %p38 = por %p36, %p37
      %p39 = scmp.ne.s32.totalorder %s28, %s31
      %p40 = scmp.eq.s32.totalorder %s23, 1
      %p41 = por %p39, %p40
      %p42 = scmp.ne.s32.totalorder %s31, %s32
      %p43 = scmp.eq.s32.totalorder %s23, 0
      %p44 = por %p42, %p43
      %p45 = scmp.ne.s32.totalorder %s31, %s32
      %p46 = scmp.eq.s32.totalorder %s24, 1
      %p47 = por %p45, %p46
      %p49 = scmp.ne.s32.totalorder %s32, %s48
      %p50 = scmp.eq.s32.totalorder %s24, 0
      %p51 = por %p49, %p50
      %s53 = sadd.s32 %s52, 1
      %p56 = scmp.eq.s32.totalorder %s18, 1
      %p57 = scmp.ne.s32.totalorder %s52, %s54
      %p58 = scmp.eq.s32.totalorder %s18, 0
      %p59 = por %p57, %p58
      %p60 = scmp.ne.s32.totalorder %s52, %s54
      %p61 = scmp.eq.s32.totalorder %s23, 1
      %p62 = por %p60, %p61
      %p63 = scmp.ne.s32.totalorder %s54, %s55
      %p64 = scmp.eq.s32.totalorder %s23, 0
      %p65 = por %p63, %p64
      %p66 = scmp.ne.s32.totalorder %s54, %s55
      %p67 = scmp.eq.s32.totalorder %s24, 1
      %p68 = por %p66, %p67
      %p70 = scmp.ne.s32.totalorder %s55, %s69
      %p71 = scmp.eq.s32.totalorder %s24, 0
      %p72 = por %p70, %p71
      %s74 = sadd.s32 %s73, 1
      %p77 = scmp.eq.s32.totalorder %s18, 1
      %p78 = scmp.ne.s32.totalorder %s73, %s75
      %p79 = scmp.eq.s32.totalorder %s18, 0
      %p80 = por %p78, %p79
      %p81 = scmp.ne.s32.totalorder %s73, %s75
      %p82 = scmp.eq.s32.totalorder %s23, 1
      %p83 = por %p81, %p82
      %p84 = scmp.ne.s32.totalorder %s75, %s76
      %p85 = scmp.eq.s32.totalorder %s23, 0
      %p86 = por %p84, %p85
      %p87 = scmp.ne.s32.totalorder %s75, %s76
      %p88 = scmp.eq.s32.totalorder %s24, 1
      %p89 = por %p87, %p88
      %p91 = scmp.ne.s32.totalorder %s76, %s90
      %p92 = scmp.eq.s32.totalorder %s24, 0
      %p93 = por %p91, %p92
      %s95 = sadd.s32 %s94, 1
      %p98 = scmp.eq.s32.totalorder %s18, 1
      %p99 = scmp.ne.s32.totalorder %s94, %s96
      %p100 = scmp.eq.s32.totalorder %s18, 0
      %p101 = por %p99, %p100
      %p102 = scmp.ne.s32.totalorder %s94, %s96
      %p103 = scmp.eq.s32.totalorder %s23, 1
      %p104 = por %p102, %p103
      %p105 = scmp.ne.s32.totalorder %s96, %s97
      %p106 = scmp.eq.s32.totalorder %s23, 0
      %p107 = por %p105, %p106
      %p108 = scmp.ne.s32.totalorder %s96, %s97
      %p109 = scmp.eq.s32.totalorder %s24, 1
      %p110 = por %p108, %p109
      %p112 = scmp.ne.s32.totalorder %s97, %s111
      %p113 = scmp.eq.s32.totalorder %s24, 0
      %p114 = por %p112, %p113
      %s116 = sadd.s32 %s115, 1
      %p119 = scmp.eq.s32.totalorder %s18, 1
      %p120 = scmp.ne.s32.totalorder %s115, %s117
      %p121 = scmp.eq.s32.totalorder %s18, 0
      %p122 = por %p120, %p121
      %p123 = scmp.ne.s32.totalorder %s115, %s117
      %p124 = scmp.eq.s32.totalorder %s23, 1
      %p125 = por %p123, %p124
      %p126 = scmp.ne.s32.totalorder %s117, %s118
      %p127 = scmp.eq.s32.totalorder %s23, 0
      %p128 = por %p126, %p127
      %p129 = scmp.ne.s32.totalorder %s117, %s118
      %p130 = scmp.eq.s32.totalorder %s24, 1
      %p131 = por %p129, %p130
      %p133 = scmp.ne.s32.totalorder %s118, %s132
      %p134 = scmp.eq.s32.totalorder %s24, 0
      %p135 = por %p133, %p134
      %s137 = sadd.s32 %s136, 1
      %p140 = scmp.eq.s32.totalorder %s18, 1
      %p141 = scmp.ne.s32.totalorder %s136, %s138
      %p142 = scmp.eq.s32.totalorder %s18, 0
      %p143 = por %p141, %p142
      %p144 = scmp.ne.s32.totalorder %s136, %s138
      %p145 = scmp.eq.s32.totalorder %s23, 1
      %p146 = por %p144, %p145
      %p147 = scmp.ne.s32.totalorder %s138, %s139
      %p148 = scmp.eq.s32.totalorder %s23, 0
      %p149 = por %p147, %p148
      %p150 = scmp.ne.s32.totalorder %s138, %s139
      %p151 = scmp.eq.s32.totalorder %s24, 1
      %p152 = por %p150, %p151
      %p154 = scmp.ne.s32.totalorder %s139, %s153
      %p155 = scmp.eq.s32.totalorder %s24, 0
      %p156 = por %p154, %p155
      %s158 = sadd.s32 %s157, 1
      %p161 = scmp.eq.s32.totalorder %s18, 1
      %p162 = scmp.ne.s32.totalorder %s157, %s159
      %p163 = scmp.eq.s32.totalorder %s18, 0
      %p164 = por %p162, %p163
      %p165 = scmp.ne.s32.totalorder %s157, %s159
      %p166 = scmp.eq.s32.totalorder %s23, 1
      %p167 = por %p165, %p166
      %p168 = scmp.ne.s32.totalorder %s159, %s160
      %p169 = scmp.eq.s32.totalorder %s23, 0
      %p170 = por %p168, %p169
      %p171 = scmp.ne.s32.totalorder %s159, %s160
      %p172 = scmp.eq.s32.totalorder %s24, 1
      %p173 = por %p171, %p172
      %p175 = scmp.ne.s32.totalorder %s160, %s174
      %p176 = scmp.eq.s32.totalorder %s24, 0
      %p177 = por %p175, %p176
      %s179 = sadd.s32 %s178, 1
      %p182 = scmp.eq.s32.totalorder %s18, 1
      %p183 = scmp.ne.s32.totalorder %s178, %s180
      %p184 = scmp.eq.s32.totalorder %s18, 0
      %p185 = por %p183, %p184
      %p186 = scmp.ne.s32.totalorder %s178, %s180
      %p187 = scmp.eq.s32.totalorder %s23, 1
      %p188 = por %p186, %p187
      %p189 = scmp.ne.s32.totalorder %s180, %s181
      %p190 = scmp.eq.s32.totalorder %s23, 0
      %p191 = por %p189, %p190
      %p192 = scmp.ne.s32.totalorder %s180, %s181
      %p193 = scmp.eq.s32.totalorder %s24, 1
      %p194 = por %p192, %p193
      %p196 = scmp.ne.s32.totalorder %s181, %s195
      %p197 = scmp.eq.s32.totalorder %s24, 0
      %p198 = por %p196, %p197
      %s199 = ssub.s32 %s18, %s25
      %p200 = scmp.eq.s32.totalorder %s199, 0
      %s202 = sadd.s32 %s201, 1
      %s203 = scalar_select %p200, %s201, %s202
      %p206 = pneg %p200
      %p207 = scmp.eq.s32.totalorder %s18, 1
      %p208 = por %p206, %p207
      %p209 = scmp.ne.s32.totalorder %s201, %s204
      %p210 = scmp.eq.s32.totalorder %s18, 0
      %p211 = por %p209, %p210
      %p212 = scmp.ne.s32.totalorder %s201, %s204
      %p213 = scmp.eq.s32.totalorder %s23, 1
      %p214 = por %p212, %p213
      %p215 = scmp.ne.s32.totalorder %s204, %s205
      %p216 = scmp.eq.s32.totalorder %s23, 0
      %p217 = por %p215, %p216
      %p218 = scmp.ne.s32.totalorder %s204, %s205
      %p219 = scmp.eq.s32.totalorder %s24, 1
      %p220 = por %p218, %p219
      %p222 = scmp.ne.s32.totalorder %s205, %s221
      %p223 = scmp.eq.s32.totalorder %s24, 0
      %p224 = por %p222, %p223
      %p225 = scmp.le.s32.totalorder 1, %s18
      %p226 = scmp.lt.s32.totalorder %s18, 3
      %p227 = pnand %p225, %p226
      %p228 = pneg %p227
      // Predicated region
      $region9: #{skconv_pallas.1} parent=5 // pred_check
        _
      $region10: #{skconv_pallas.1} parent=5 // pred_check_branch
        %230 = sbr.rel (%p227) target = $region12
      $region11: #{skconv_pallas.1} parent=5 // pred_region
        %s231 = ssub.s32 %s18, 1
        // Predicated region
        $region13: #{skconv_pallas.1} parent=11 // pred_check
          %p232 = pneg %p65
        $region14: #{skconv_pallas.1} parent=11 // pred_check_branch
          %234 = sbr.rel (%p232) target = $region16
        $region15: #{skconv_pallas.1} parent=11 // pred_region
          %s236 = ssub.s32 57344, 57344
          %237 = vsyncadd [#allocation3], %s236
          %s238 = sshll.u32 [#allocation2], 4
          %s239 = int_to_ptr.vmem [resolvable:$true] %s238
          %244 = dma.hbm_to_vmem [thread:$0]  %s1, 57344, %s239, [#allocation3], 1792, 1792, 112
        $region16: #{skconv_pallas.1} parent=11 // pred_fallthru
          _
        // Predicated region
        $region17: #{skconv_pallas.1} parent=11 // pred_check
          %p245 = pneg %p86
        $region18: #{skconv_pallas.1} parent=11 // pred_check_branch
          %247 = sbr.rel (%p245) target = $region20
        $region19: #{skconv_pallas.1} parent=11 // pred_region
          %s249 = ssub.s32 64, 64
          %250 = vsyncadd [#allocation5], %s249
          %s251 = sshll.u32 [#allocation4], 4
          %s252 = int_to_ptr.vmem [resolvable:$true] %s251
          %257 = dma.hbm_to_vmem [thread:$0]  %s2, 64, %s252, [#allocation5], 32, 32, 2
        $region20: #{skconv_pallas.1} parent=11 // pred_fallthru
          _
        // Predicated region
        $region21: #{skconv_pallas.1} parent=11 // pred_check
          %p258 = pneg %p107
        $region22: #{skconv_pallas.1} parent=11 // pred_check_branch
          %260 = sbr.rel (%p258) target = $region24
        $region23: #{skconv_pallas.1} parent=11 // pred_region
          %s262 = ssub.s32 3584, 3584
          %263 = vsyncadd [#allocation5], %s262
          %s264 = sshll.u32 [#allocation6], 4
          %s265 = int_to_ptr.vmem [resolvable:$true] %s264
          %270 = dma.hbm_to_vmem [thread:$0]  %s3, 3584, %s265, [#allocation5], 128, 128, 8
        $region24: #{skconv_pallas.1} parent=11 // pred_fallthru
          _
        // Predicated region
        $region25: #{skconv_pallas.1} parent=11 // pred_check
          %p271 = pneg %p128
        $region26: #{skconv_pallas.1} parent=11 // pred_check_branch
          %273 = sbr.rel (%p271) target = $region28
        $region27: #{skconv_pallas.1} parent=11 // pred_region
          _
        $region28: #{skconv_pallas.1} parent=11 // pred_fallthru
          _
        // Predicated region
        $region29: #{skconv_pallas.1} parent=11 // pred_check
          %p274 = pneg %p149
        $region30: #{skconv_pallas.1} parent=11 // pred_check_branch
          %276 = sbr.rel (%p274) target = $region32
        $region31: #{skconv_pallas.1} parent=11 // pred_region
          %s278 = ssub.s32 16, 16
          %279 = vsyncadd [#allocation8], %s278
          %s281 = sshll.u32 [#allocation7], 4
          %s282 = int_to_ptr.vmem [resolvable:$true] %s281
          %284 = dma.hbm_to_vmem [thread:$0]  %s5, 16, %s282, [#allocation8]
        $region32: #{skconv_pallas.1} parent=11 // pred_fallthru
          _
        // Predicated region
        $region33: #{skconv_pallas.1} parent=11 // pred_check
          %p285 = pneg %p170
        $region34: #{skconv_pallas.1} parent=11 // pred_check_branch
          %287 = sbr.rel (%p285) target = $region36
        $region35: #{skconv_pallas.1} parent=11 // pred_region
          %s289 = ssub.s32 1024, 1024
          %290 = vsyncadd [#allocation8], %s289
          %s291 = sshll.u32 [#allocation9], 4
          %s292 = int_to_ptr.vmem [resolvable:$true] %s291
          %297 = dma.hbm_to_vmem [thread:$0]  %s6, 1024, %s292, [#allocation8], 256, 256, 16
        $region36: #{skconv_pallas.1} parent=11 // pred_fallthru
          _
        // Predicated region
        $region37: #{skconv_pallas.1} parent=11 // pred_check
          %p298 = pneg %p191
        $region38: #{skconv_pallas.1} parent=11 // pred_check_branch
          %300 = sbr.rel (%p298) target = $region40
        $region39: #{skconv_pallas.1} parent=11 // pred_region
          %s302 = ssub.s32 64, 64
          %303 = vsyncadd [#allocation11], %s302
          %s305 = sshll.u32 [#allocation10], 4
          %s306 = int_to_ptr.vmem [resolvable:$true] %s305
          %308 = dma.hbm_to_vmem [thread:$0]  %s7, 64, %s306, [#allocation11]
        $region40: #{skconv_pallas.1} parent=11 // pred_fallthru
          _
      $region12: #{skconv_pallas.1} parent=5 // pred_fallthru
        _
      %p309 = scmp.lt.s32.totalorder %s18, 2
      // Predicated region
      $region41: #{skconv_pallas.1} parent=5 // pred_check
        %p310 = pneg %p309
      $region42: #{skconv_pallas.1} parent=5 // pred_check_branch
        %312 = sbr.rel (%p310) target = $region44
      $region43: #{skconv_pallas.1} parent=5 // pred_region
        // Predicated region
        $region45: #{skconv_pallas.1} parent=43 // pred_check
          %p313 = pneg %p38
        $region46: #{skconv_pallas.1} parent=43 // pred_check_branch
          %315 = sbr.rel (%p313) target = $region48
        $region47: #{skconv_pallas.1} parent=43 // pred_region
          %p316 = scmp.lt.s32.totalorder %s18, 1
          %s317 = scalar_select %p316, %s18, 1
          %s318 = smul.addr %s317, 8
          %s319 = smul.addr %s318, 4
          %s320 = scalar_lea.vmem %s0, %s319
        $region48: #{skconv_pallas.1} parent=43 // pred_fallthru
          _
      $region44: #{skconv_pallas.1} parent=5 // pred_fallthru
        _
      %p321 = scmp.le.s32.totalorder 1, %s18
      %p322 = scmp.lt.s32.totalorder %s18, 3
      %p323 = pnand %p321, %p322
      %p324 = pneg %p323
      // Predicated region
      $region49: #{skconv_pallas.1} parent=5 // pred_check
        _
      $region50: #{skconv_pallas.1} parent=5 // pred_check_branch
        %326 = sbr.rel (%p323) target = $region52
      $region51: #{skconv_pallas.1} parent=5 // pred_region
        %s327 = ssub.s32 %s18, 1
        // Predicated region
        $region53: #{skconv_pallas.1} parent=51 // pred_check
          %p328 = pneg %p65
        $region54: #{skconv_pallas.1} parent=51 // pred_check_branch
          %330 = sbr.rel (%p328) target = $region56
        $region55: #{skconv_pallas.1} parent=51 // pred_region
          %331 = dma.done [#allocation3], 57344
        $region56: #{skconv_pallas.1} parent=51 // pred_fallthru
          _
        // Predicated region
        $region57: #{skconv_pallas.1} parent=51 // pred_check
          %p332 = pneg %p86
        $region58: #{skconv_pallas.1} parent=51 // pred_check_branch
          %334 = sbr.rel (%p332) target = $region60
        $region59: #{skconv_pallas.1} parent=51 // pred_region
          %335 = dma.done [#allocation5], 64
        $region60: #{skconv_pallas.1} parent=51 // pred_fallthru
          _
        // Predicated region
        $region61: #{skconv_pallas.1} parent=51 // pred_check
          %p336 = pneg %p107
        $region62: #{skconv_pallas.1} parent=51 // pred_check_branch
          %338 = sbr.rel (%p336) target = $region64
        $region63: #{skconv_pallas.1} parent=51 // pred_region
          %339 = dma.done [#allocation5], 3584
        $region64: #{skconv_pallas.1} parent=51 // pred_fallthru
          _
        // Predicated region
        $region65: #{skconv_pallas.1} parent=51 // pred_check
          %p340 = pneg %p149
        $region66: #{skconv_pallas.1} parent=51 // pred_check_branch
          %342 = sbr.rel (%p340) target = $region68
        $region67: #{skconv_pallas.1} parent=51 // pred_region
          %343 = dma.done [#allocation8], 16
        $region68: #{skconv_pallas.1} parent=51 // pred_fallthru
          _
        // Predicated region
        $region69: #{skconv_pallas.1} parent=51 // pred_check
          %p344 = pneg %p170
        $region70: #{skconv_pallas.1} parent=51 // pred_check_branch
          %346 = sbr.rel (%p344) target = $region72
        $region71: #{skconv_pallas.1} parent=51 // pred_region
          %347 = dma.done [#allocation8], 1024
        $region72: #{skconv_pallas.1} parent=51 // pred_fallthru
          _
        // Predicated region
        $region73: #{skconv_pallas.1} parent=51 // pred_check
          %p348 = pneg %p191
        $region74: #{skconv_pallas.1} parent=51 // pred_check_branch
          %350 = sbr.rel (%p348) target = $region76
        $region75: #{skconv_pallas.1} parent=51 // pred_region
          %351 = dma.done [#allocation11], 64
        $region76: #{skconv_pallas.1} parent=51 // pred_fallthru
          _
        %p352 = scmp.lt.s32.totalorder %s23, 1
        %s353 = scalar_select %p352, %s23, 1
        %s354 = smul.addr %s353, 8
        %s355 = smul.addr %s354, 4
        %s356 = scalar_lea.vmem %s0, %s355
        %p357 = pneg %p44
        %p358 = pneg %p41
        %p359 = pneg %p65
        %p360 = pneg %p62
        %p361 = pneg %p86
        %p362 = pneg %p83
        %p363 = pneg %p107
        %p364 = pneg %p104
        %p365 = pneg %p128
        %p366 = pneg %p125
        %p367 = pneg %p149
        %p368 = pneg %p146
        %p369 = pneg %p170
        %p370 = pneg %p167
        %p371 = pneg %p191
        %p372 = pneg %p188
        %p373 = pneg %p217
        %p374 = pneg %p214
        %p375 = scmp.lt.s32.totalorder %s23, 1
        %s376 = scalar_select %p375, %s23, 1
        %s377 = smul.addr %s376, 4
        %s378 = smul.addr %s377, 4
        %s379 = scalar_lea.vmem %s8, %s378
        %p380 = scmp.lt.s32.totalorder %s23, 1
        %s381 = scalar_select %p380, %s23, 1
        %s382 = smul.addr %s381, 8
        %s383 = smul.addr %s382, 4
        %s384 = scalar_lea.vmem %s0, %s383
        %p385 = scmp.lt.s32.totalorder %s23, 1
        %s386 = scalar_select %p385, %s23, 1
        %s387 = smul.addr %s386, 4
        %s388 = smul.addr %s387, 4
        %s389 = scalar_lea.vmem %s8, %s388
        %v391 = vld [vmem:[%s384] sm:$0xff]
        %v392 = vld [vmem:[%s384 + $0x8] sm:$0xff]
        %v393 = vld [vmem:[%s384 + $0x10] sm:$0xff]
        %v394 = vld [vmem:[%s384 + $0x18] sm:$0xff]
        %v395 = vld [vmem:[#allocation2] sm:$0xff]
        %v396 = vld [vmem:[#allocation2 + $0x8] sm:$0xff]
        %v397 = vld [vmem:[#allocation2 + $0x10] sm:$0xff]
        %v398 = vld [vmem:[#allocation2 + $0x18] sm:$0xff]
        %v399 = vld [vmem:[#allocation2 + $0x20] sm:$0xff]
        %v400 = vld [vmem:[#allocation2 + $0x28] sm:$0xff]
        %v401 = vld [vmem:[#allocation2 + $0x30] sm:$0xff]
        %v402 = vld [vmem:[#allocation2 + $0x38] sm:$0xff]
        %v403 = vld [vmem:[#allocation2 + $0x40] sm:$0xff]
        %v404 = vld [vmem:[#allocation2 + $0x48] sm:$0xff]
        %v405 = vld [vmem:[#allocation2 + $0x50] sm:$0xff]
        %v406 = vld [vmem:[#allocation2 + $0x58] sm:$0xff]
        %v407 = vld [vmem:[#allocation2 + $0x60] sm:$0xff]
        %v408 = vld [vmem:[#allocation2 + $0x68] sm:$0xff]
        %v409 = vld [vmem:[#allocation2 + $0x70] sm:$0xff]
        %v410 = vld [vmem:[#allocation2 + $0x78] sm:$0xff]
        %v411 = vld [vmem:[#allocation2 + $0x80] sm:$0xff]
        %v412 = vld [vmem:[#allocation2 + $0x88] sm:$0xff]
        %v413 = vld [vmem:[#allocation2 + $0x90] sm:$0xff]
        %v414 = vld [vmem:[#allocation2 + $0x98] sm:$0xff]
        %v415 = vld [vmem:[#allocation2 + $0xa0] sm:$0xff]
        %v416 = vld [vmem:[#allocation2 + $0xa8] sm:$0xff]
        %v417 = vld [vmem:[#allocation2 + $0xb0] sm:$0xff]
        %v418 = vld [vmem:[#allocation2 + $0xb8] sm:$0xff]
        %v419 = vld [vmem:[#allocation2 + $0xc0] sm:$0xff]
        %v420 = vld [vmem:[#allocation2 + $0xc8] sm:$0xff]
        %v421 = vld [vmem:[#allocation2 + $0xd0] sm:$0xff]
        %v422 = vld [vmem:[#allocation2 + $0xd8] sm:$0xff]
        %v423 = vld [vmem:[#allocation2 + $0xe0] sm:$0xff]
        %v424 = vld [vmem:[#allocation2 + $0xe8] sm:$0xff]
        %v425 = vld [vmem:[#allocation2 + $0xf0] sm:$0xff]
        %v426 = vld [vmem:[#allocation2 + $0xf8] sm:$0xff]
        %v427 = vld [vmem:[#allocation2 + $0x100] sm:$0xff]
        %v428 = vld [vmem:[#allocation2 + $0x108] sm:$0xff]
        %v429 = vld [vmem:[#allocation2 + $0x110] sm:$0xff]
        %v430 = vld [vmem:[#allocation2 + $0x118] sm:$0xff]
        %v431 = vld [vmem:[#allocation2 + $0x120] sm:$0xff]
        %v432 = vld [vmem:[#allocation2 + $0x128] sm:$0xff]
        %v433 = vld [vmem:[#allocation2 + $0x130] sm:$0xff]
        %v434 = vld [vmem:[#allocation2 + $0x138] sm:$0xff]
        %v435 = vld [vmem:[#allocation2 + $0x140] sm:$0xff]
        %v436 = vld [vmem:[#allocation2 + $0x148] sm:$0xff]
        %v437 = vld [vmem:[#allocation2 + $0x150] sm:$0xff]
        %v438 = vld [vmem:[#allocation2 + $0x158] sm:$0xff]
        %v439 = vld [vmem:[#allocation2 + $0x160] sm:$0xff]
        %v440 = vld [vmem:[#allocation2 + $0x168] sm:$0xff]
        %v441 = vld [vmem:[#allocation2 + $0x170] sm:$0xff]
        %v442 = vld [vmem:[#allocation2 + $0x178] sm:$0xff]
        %v443 = vld [vmem:[#allocation2 + $0x180] sm:$0xff]
        %v444 = vld [vmem:[#allocation2 + $0x188] sm:$0xff]
        %v445 = vld [vmem:[#allocation2 + $0x190] sm:$0xff]
        %v446 = vld [vmem:[#allocation2 + $0x198] sm:$0xff]
        %v447 = vld [vmem:[#allocation2 + $0x1a0] sm:$0xff]
        %v448 = vld [vmem:[#allocation2 + $0x1a8] sm:$0xff]
        %v449 = vld [vmem:[#allocation2 + $0x1b0] sm:$0xff]
        %v450 = vld [vmem:[#allocation2 + $0x1b8] sm:$0xff]
        %v451 = vld [vmem:[#allocation2 + $0x1c0] sm:$0xff]
        %v452 = vld [vmem:[#allocation2 + $0x1c8] sm:$0xff]
        %v453 = vld [vmem:[#allocation2 + $0x1d0] sm:$0xff]
        %v454 = vld [vmem:[#allocation2 + $0x1d8] sm:$0xff]
        %v455 = vld [vmem:[#allocation2 + $0x1e0] sm:$0xff]
        %v456 = vld [vmem:[#allocation2 + $0x1e8] sm:$0xff]
        %v457 = vld [vmem:[#allocation2 + $0x1f0] sm:$0xff]
        %v458 = vld [vmem:[#allocation2 + $0x1f8] sm:$0xff]
        %v459 = vld [vmem:[#allocation2 + $0x200] sm:$0xff]
        %v460 = vld [vmem:[#allocation2 + $0x208] sm:$0xff]
        %v461 = vld [vmem:[#allocation2 + $0x210] sm:$0xff]
        %v462 = vld [vmem:[#allocation2 + $0x218] sm:$0xff]
        %v463 = vld [vmem:[#allocation2 + $0x220] sm:$0xff]
        %v464 = vld [vmem:[#allocation2 + $0x228] sm:$0xff]
        %v465 = vld [vmem:[#allocation2 + $0x230] sm:$0xff]
        %v466 = vld [vmem:[#allocation2 + $0x238] sm:$0xff]
        %v467 = vld [vmem:[#allocation2 + $0x240] sm:$0xff]
        %v468 = vld [vmem:[#allocation2 + $0x248] sm:$0xff]
        %v469 = vld [vmem:[#allocation2 + $0x250] sm:$0xff]
        %v470 = vld [vmem:[#allocation2 + $0x258] sm:$0xff]
        %v471 = vld [vmem:[#allocation2 + $0x260] sm:$0xff]
        %v472 = vld [vmem:[#allocation2 + $0x268] sm:$0xff]
        %v473 = vld [vmem:[#allocation2 + $0x270] sm:$0xff]
        %v474 = vld [vmem:[#allocation2 + $0x278] sm:$0xff]
        %v475 = vld [vmem:[#allocation2 + $0x280] sm:$0xff]
        %v476 = vld [vmem:[#allocation2 + $0x288] sm:$0xff]
        %v477 = vld [vmem:[#allocation2 + $0x290] sm:$0xff]
        %v478 = vld [vmem:[#allocation2 + $0x298] sm:$0xff]
        %v479 = vld [vmem:[#allocation2 + $0x2a0] sm:$0xff]
        %v480 = vld [vmem:[#allocation2 + $0x2a8] sm:$0xff]
        %v481 = vld [vmem:[#allocation2 + $0x2b0] sm:$0xff]
        %v482 = vld [vmem:[#allocation2 + $0x2b8] sm:$0xff]
        %v483 = vld [vmem:[#allocation2 + $0x2c0] sm:$0xff]
        %v484 = vld [vmem:[#allocation2 + $0x2c8] sm:$0xff]
        %v485 = vld [vmem:[#allocation2 + $0x2d0] sm:$0xff]
        %v486 = vld [vmem:[#allocation2 + $0x2d8] sm:$0xff]
        %v487 = vld [vmem:[#allocation2 + $0x2e0] sm:$0xff]
        %v488 = vld [vmem:[#allocation2 + $0x2e8] sm:$0xff]
        %v489 = vld [vmem:[#allocation2 + $0x2f0] sm:$0xff]
        %v490 = vld [vmem:[#allocation2 + $0x2f8] sm:$0xff]
        %v491 = vld [vmem:[#allocation2 + $0x300] sm:$0xff]
        %v492 = vld [vmem:[#allocation2 + $0x308] sm:$0xff]
        %v493 = vld [vmem:[#allocation2 + $0x310] sm:$0xff]
        %v494 = vld [vmem:[#allocation2 + $0x318] sm:$0xff]
        %v495 = vld [vmem:[#allocation2 + $0x320] sm:$0xff]
        %v496 = vld [vmem:[#allocation2 + $0x328] sm:$0xff]
        %v497 = vld [vmem:[#allocation2 + $0x330] sm:$0xff]
        %v498 = vld [vmem:[#allocation2 + $0x338] sm:$0xff]
        %v499 = vld [vmem:[#allocation2 + $0x340] sm:$0xff]
        %v500 = vld [vmem:[#allocation2 + $0x348] sm:$0xff]
        %v501 = vld [vmem:[#allocation2 + $0x350] sm:$0xff]
        %v502 = vld [vmem:[#allocation2 + $0x358] sm:$0xff]
        %v503 = vld [vmem:[#allocation2 + $0x360] sm:$0xff]
        %v504 = vld [vmem:[#allocation2 + $0x368] sm:$0xff]
        %v505 = vld [vmem:[#allocation2 + $0x370] sm:$0xff]
        %v506 = vld [vmem:[#allocation2 + $0x378] sm:$0xff]
        %v507 = vld [vmem:[#allocation2 + $0x380] sm:$0xff]
        %v508 = vld [vmem:[#allocation2 + $0x388] sm:$0xff]
        %v509 = vld [vmem:[#allocation2 + $0x390] sm:$0xff]
        %v510 = vld [vmem:[#allocation2 + $0x398] sm:$0xff]
        %v511 = vld [vmem:[#allocation2 + $0x3a0] sm:$0xff]
        %v512 = vld [vmem:[#allocation2 + $0x3a8] sm:$0xff]
        %v513 = vld [vmem:[#allocation2 + $0x3b0] sm:$0xff]
        %v514 = vld [vmem:[#allocation2 + $0x3b8] sm:$0xff]
        %v515 = vld [vmem:[#allocation2 + $0x3c0] sm:$0xff]
        %v516 = vld [vmem:[#allocation2 + $0x3c8] sm:$0xff]
        %v517 = vld [vmem:[#allocation2 + $0x3d0] sm:$0xff]
        %v518 = vld [vmem:[#allocation2 + $0x3d8] sm:$0xff]
        %v519 = vld [vmem:[#allocation2 + $0x3e0] sm:$0xff]
        %v520 = vld [vmem:[#allocation2 + $0x3e8] sm:$0xff]
        %v521 = vld [vmem:[#allocation2 + $0x3f0] sm:$0xff]
        %v522 = vld [vmem:[#allocation2 + $0x3f8] sm:$0xff]
        %v523 = vld [vmem:[#allocation2 + $0x400] sm:$0xff]
        %v524 = vld [vmem:[#allocation2 + $0x408] sm:$0xff]
        %v525 = vld [vmem:[#allocation2 + $0x410] sm:$0xff]
        %v526 = vld [vmem:[#allocation2 + $0x418] sm:$0xff]
        %v527 = vld [vmem:[#allocation2 + $0x420] sm:$0xff]
        %v528 = vld [vmem:[#allocation2 + $0x428] sm:$0xff]
        %v529 = vld [vmem:[#allocation2 + $0x430] sm:$0xff]
        %v530 = vld [vmem:[#allocation2 + $0x438] sm:$0xff]
        %v531 = vld [vmem:[#allocation2 + $0x440] sm:$0xff]
        %v532 = vld [vmem:[#allocation2 + $0x448] sm:$0xff]
        %v533 = vld [vmem:[#allocation2 + $0x450] sm:$0xff]
        %v534 = vld [vmem:[#allocation2 + $0x458] sm:$0xff]
        %v535 = vld [vmem:[#allocation2 + $0x460] sm:$0xff]
        %v536 = vld [vmem:[#allocation2 + $0x468] sm:$0xff]
        %v537 = vld [vmem:[#allocation2 + $0x470] sm:$0xff]
        %v538 = vld [vmem:[#allocation2 + $0x478] sm:$0xff]
        %v539 = vld [vmem:[#allocation2 + $0x480] sm:$0xff]
        %v540 = vld [vmem:[#allocation2 + $0x488] sm:$0xff]
        %v541 = vld [vmem:[#allocation2 + $0x490] sm:$0xff]
        %v542 = vld [vmem:[#allocation2 + $0x498] sm:$0xff]
        %v543 = vld [vmem:[#allocation2 + $0x4a0] sm:$0xff]
        %v544 = vld [vmem:[#allocation2 + $0x4a8] sm:$0xff]
        %v545 = vld [vmem:[#allocation2 + $0x4b0] sm:$0xff]
        %v546 = vld [vmem:[#allocation2 + $0x4b8] sm:$0xff]
        %v547 = vld [vmem:[#allocation2 + $0x4c0] sm:$0xff]
        %v548 = vld [vmem:[#allocation2 + $0x4c8] sm:$0xff]
        %v549 = vld [vmem:[#allocation2 + $0x4d0] sm:$0xff]
        %v550 = vld [vmem:[#allocation2 + $0x4d8] sm:$0xff]
        %v551 = vld [vmem:[#allocation2 + $0x4e0] sm:$0xff]
        %v552 = vld [vmem:[#allocation2 + $0x4e8] sm:$0xff]
        %v553 = vld [vmem:[#allocation2 + $0x4f0] sm:$0xff]
        %v554 = vld [vmem:[#allocation2 + $0x4f8] sm:$0xff]
        %v555 = vld [vmem:[#allocation2 + $0x500] sm:$0xff]
        %v556 = vld [vmem:[#allocation2 + $0x508] sm:$0xff]
        %v557 = vld [vmem:[#allocation2 + $0x510] sm:$0xff]
        %v558 = vld [vmem:[#allocation2 + $0x518] sm:$0xff]
        %v559 = vld [vmem:[#allocation2 + $0x520] sm:$0xff]
        %v560 = vld [vmem:[#allocation2 + $0x528] sm:$0xff]
        %v561 = vld [vmem:[#allocation2 + $0x530] sm:$0xff]
        %v562 = vld [vmem:[#allocation2 + $0x538] sm:$0xff]
        %v563 = vld [vmem:[#allocation2 + $0x540] sm:$0xff]
        %v564 = vld [vmem:[#allocation2 + $0x548] sm:$0xff]
        %v565 = vld [vmem:[#allocation2 + $0x550] sm:$0xff]
        %v566 = vld [vmem:[#allocation2 + $0x558] sm:$0xff]
        %v567 = vld [vmem:[#allocation2 + $0x560] sm:$0xff]
        %v568 = vld [vmem:[#allocation2 + $0x568] sm:$0xff]
        %v569 = vld [vmem:[#allocation2 + $0x570] sm:$0xff]
        %v570 = vld [vmem:[#allocation2 + $0x578] sm:$0xff]
        %v571 = vld [vmem:[#allocation2 + $0x580] sm:$0xff]
        %v572 = vld [vmem:[#allocation2 + $0x588] sm:$0xff]
        %v573 = vld [vmem:[#allocation2 + $0x590] sm:$0xff]
        %v574 = vld [vmem:[#allocation2 + $0x598] sm:$0xff]
        %v575 = vld [vmem:[#allocation2 + $0x5a0] sm:$0xff]
        %v576 = vld [vmem:[#allocation2 + $0x5a8] sm:$0xff]
        %v577 = vld [vmem:[#allocation2 + $0x5b0] sm:$0xff]
        %v578 = vld [vmem:[#allocation2 + $0x5b8] sm:$0xff]
        %v579 = vld [vmem:[#allocation2 + $0x5c0] sm:$0xff]
        %v580 = vld [vmem:[#allocation2 + $0x5c8] sm:$0xff]
        %v581 = vld [vmem:[#allocation2 + $0x5d0] sm:$0xff]
        %v582 = vld [vmem:[#allocation2 + $0x5d8] sm:$0xff]
        %v583 = vld [vmem:[#allocation2 + $0x5e0] sm:$0xff]
        %v584 = vld [vmem:[#allocation2 + $0x5e8] sm:$0xff]
        %v585 = vld [vmem:[#allocation2 + $0x5f0] sm:$0xff]
        %v586 = vld [vmem:[#allocation2 + $0x5f8] sm:$0xff]
        %v587 = vld [vmem:[#allocation2 + $0x600] sm:$0xff]
        %v588 = vld [vmem:[#allocation2 + $0x608] sm:$0xff]
        %v589 = vld [vmem:[#allocation2 + $0x610] sm:$0xff]
        %v590 = vld [vmem:[#allocation2 + $0x618] sm:$0xff]
        %v591 = vld [vmem:[#allocation2 + $0x620] sm:$0xff]
        %v592 = vld [vmem:[#allocation2 + $0x628] sm:$0xff]
        %v593 = vld [vmem:[#allocation2 + $0x630] sm:$0xff]
        %v594 = vld [vmem:[#allocation2 + $0x638] sm:$0xff]
        %v595 = vld [vmem:[#allocation2 + $0x640] sm:$0xff]
        %v596 = vld [vmem:[#allocation2 + $0x648] sm:$0xff]
        %v597 = vld [vmem:[#allocation2 + $0x650] sm:$0xff]
        %v598 = vld [vmem:[#allocation2 + $0x658] sm:$0xff]
        %v599 = vld [vmem:[#allocation2 + $0x660] sm:$0xff]
        %v600 = vld [vmem:[#allocation2 + $0x668] sm:$0xff]
        %v601 = vld [vmem:[#allocation2 + $0x670] sm:$0xff]
        %v602 = vld [vmem:[#allocation2 + $0x678] sm:$0xff]
        %v603 = vld [vmem:[#allocation2 + $0x680] sm:$0xff]
        %v604 = vld [vmem:[#allocation2 + $0x688] sm:$0xff]
        %v605 = vld [vmem:[#allocation2 + $0x690] sm:$0xff]
        %v606 = vld [vmem:[#allocation2 + $0x698] sm:$0xff]
        %v607 = vld [vmem:[#allocation2 + $0x6a0] sm:$0xff]
        %v608 = vld [vmem:[#allocation2 + $0x6a8] sm:$0xff]
        %v609 = vld [vmem:[#allocation2 + $0x6b0] sm:$0xff]
        %v610 = vld [vmem:[#allocation2 + $0x6b8] sm:$0xff]
        %v611 = vld [vmem:[#allocation2 + $0x6c0] sm:$0xff]
        %v612 = vld [vmem:[#allocation2 + $0x6c8] sm:$0xff]
        %v613 = vld [vmem:[#allocation2 + $0x6d0] sm:$0xff]
        %v614 = vld [vmem:[#allocation2 + $0x6d8] sm:$0xff]
        %v615 = vld [vmem:[#allocation2 + $0x6e0] sm:$0xff]
        %v616 = vld [vmem:[#allocation2 + $0x6e8] sm:$0xff]
        %v617 = vld [vmem:[#allocation2 + $0x6f0] sm:$0xff]
        %v618 = vld [vmem:[#allocation2 + $0x6f8] sm:$0xff]
        %v619 = vld [vmem:[#allocation2 + $0x700] sm:$0xff]
        %v620 = vld [vmem:[#allocation2 + $0x708] sm:$0xff]
        %v621 = vld [vmem:[#allocation2 + $0x710] sm:$0xff]
        %v622 = vld [vmem:[#allocation2 + $0x718] sm:$0xff]
        %v623 = vld [vmem:[#allocation2 + $0x720] sm:$0xff]
        %v624 = vld [vmem:[#allocation2 + $0x728] sm:$0xff]
        %v625 = vld [vmem:[#allocation2 + $0x730] sm:$0xff]
        %v626 = vld [vmem:[#allocation2 + $0x738] sm:$0xff]
        %v627 = vld [vmem:[#allocation2 + $0x740] sm:$0xff]
        %v628 = vld [vmem:[#allocation2 + $0x748] sm:$0xff]
        %v629 = vld [vmem:[#allocation2 + $0x750] sm:$0xff]
        %v630 = vld [vmem:[#allocation2 + $0x758] sm:$0xff]
        %v631 = vld [vmem:[#allocation2 + $0x760] sm:$0xff]
        %v632 = vld [vmem:[#allocation2 + $0x768] sm:$0xff]
        %v633 = vld [vmem:[#allocation2 + $0x770] sm:$0xff]
        %v634 = vld [vmem:[#allocation2 + $0x778] sm:$0xff]
        %v635 = vld [vmem:[#allocation2 + $0x780] sm:$0xff]
        %v636 = vld [vmem:[#allocation2 + $0x788] sm:$0xff]
        %v637 = vld [vmem:[#allocation2 + $0x790] sm:$0xff]
        %v638 = vld [vmem:[#allocation2 + $0x798] sm:$0xff]
        %v639 = vld [vmem:[#allocation2 + $0x7a0] sm:$0xff]
        %v640 = vld [vmem:[#allocation2 + $0x7a8] sm:$0xff]
        %v641 = vld [vmem:[#allocation2 + $0x7b0] sm:$0xff]
        %v642 = vld [vmem:[#allocation2 + $0x7b8] sm:$0xff]
        %v643 = vld [vmem:[#allocation2 + $0x7c0] sm:$0xff]
        %v644 = vld [vmem:[#allocation2 + $0x7c8] sm:$0xff]
        %v645 = vld [vmem:[#allocation2 + $0x7d0] sm:$0xff]
        %v646 = vld [vmem:[#allocation2 + $0x7d8] sm:$0xff]
        %v647 = vld [vmem:[#allocation2 + $0x7e0] sm:$0xff]
        %v648 = vld [vmem:[#allocation2 + $0x7e8] sm:$0xff]
        %v649 = vld [vmem:[#allocation2 + $0x7f0] sm:$0xff]
        %v650 = vld [vmem:[#allocation2 + $0x7f8] sm:$0xff]
        %v651 = vld [vmem:[#allocation2 + $0x800] sm:$0xff]
        %v652 = vld [vmem:[#allocation2 + $0x808] sm:$0xff]
        %v653 = vld [vmem:[#allocation2 + $0x810] sm:$0xff]
        %v654 = vld [vmem:[#allocation2 + $0x818] sm:$0xff]
        %v655 = vld [vmem:[#allocation2 + $0x820] sm:$0xff]
        %v656 = vld [vmem:[#allocation2 + $0x828] sm:$0xff]
        %v657 = vld [vmem:[#allocation2 + $0x830] sm:$0xff]
        %v658 = vld [vmem:[#allocation2 + $0x838] sm:$0xff]
        %v659 = vld [vmem:[#allocation2 + $0x840] sm:$0xff]
        %v660 = vld [vmem:[#allocation2 + $0x848] sm:$0xff]
        %v661 = vld [vmem:[#allocation2 + $0x850] sm:$0xff]
        %v662 = vld [vmem:[#allocation2 + $0x858] sm:$0xff]
        %v663 = vld [vmem:[#allocation2 + $0x860] sm:$0xff]
        %v664 = vld [vmem:[#allocation2 + $0x868] sm:$0xff]
        %v665 = vld [vmem:[#allocation2 + $0x870] sm:$0xff]
        %v666 = vld [vmem:[#allocation2 + $0x878] sm:$0xff]
        %v667 = vld [vmem:[#allocation2 + $0x880] sm:$0xff]
        %v668 = vld [vmem:[#allocation2 + $0x888] sm:$0xff]
        %v669 = vld [vmem:[#allocation2 + $0x890] sm:$0xff]
        %v670 = vld [vmem:[#allocation2 + $0x898] sm:$0xff]
        %v671 = vld [vmem:[#allocation2 + $0x8a0] sm:$0xff]
        %v672 = vld [vmem:[#allocation2 + $0x8a8] sm:$0xff]
        %v673 = vld [vmem:[#allocation2 + $0x8b0] sm:$0xff]
        %v674 = vld [vmem:[#allocation2 + $0x8b8] sm:$0xff]
        %v675 = vld [vmem:[#allocation2 + $0x8c0] sm:$0xff]
        %v676 = vld [vmem:[#allocation2 + $0x8c8] sm:$0xff]
        %v677 = vld [vmem:[#allocation2 + $0x8d0] sm:$0xff]
        %v678 = vld [vmem:[#allocation2 + $0x8d8] sm:$0xff]
        %v679 = vld [vmem:[#allocation2 + $0x8e0] sm:$0xff]
        %v680 = vld [vmem:[#allocation2 + $0x8e8] sm:$0xff]
        %v681 = vld [vmem:[#allocation2 + $0x8f0] sm:$0xff]
        %v682 = vld [vmem:[#allocation2 + $0x8f8] sm:$0xff]
        %v683 = vld [vmem:[#allocation2 + $0x900] sm:$0xff]
        %v684 = vld [vmem:[#allocation2 + $0x908] sm:$0xff]
        %v685 = vld [vmem:[#allocation2 + $0x910] sm:$0xff]
        %v686 = vld [vmem:[#allocation2 + $0x918] sm:$0xff]
        %v687 = vld [vmem:[#allocation2 + $0x920] sm:$0xff]
        %v688 = vld [vmem:[#allocation2 + $0x928] sm:$0xff]
        %v689 = vld [vmem:[#allocation2 + $0x930] sm:$0xff]
        %v690 = vld [vmem:[#allocation2 + $0x938] sm:$0xff]
        %v691 = vld [vmem:[#allocation2 + $0x940] sm:$0xff]
        %v692 = vld [vmem:[#allocation2 + $0x948] sm:$0xff]
        %v693 = vld [vmem:[#allocation2 + $0x950] sm:$0xff]
        %v694 = vld [vmem:[#allocation2 + $0x958] sm:$0xff]
        %v695 = vld [vmem:[#allocation2 + $0x960] sm:$0xff]
        %v696 = vld [vmem:[#allocation2 + $0x968] sm:$0xff]
        %v697 = vld [vmem:[#allocation2 + $0x970] sm:$0xff]
        %v698 = vld [vmem:[#allocation2 + $0x978] sm:$0xff]
        %v699 = vld [vmem:[#allocation2 + $0x980] sm:$0xff]
        %v700 = vld [vmem:[#allocation2 + $0x988] sm:$0xff]
        %v701 = vld [vmem:[#allocation2 + $0x990] sm:$0xff]
        %v702 = vld [vmem:[#allocation2 + $0x998] sm:$0xff]
        %v703 = vld [vmem:[#allocation2 + $0x9a0] sm:$0xff]
        %v704 = vld [vmem:[#allocation2 + $0x9a8] sm:$0xff]
        %v705 = vld [vmem:[#allocation2 + $0x9b0] sm:$0xff]
        %v706 = vld [vmem:[#allocation2 + $0x9b8] sm:$0xff]
        %v707 = vld [vmem:[#allocation2 + $0x9c0] sm:$0xff]
        %v708 = vld [vmem:[#allocation2 + $0x9c8] sm:$0xff]
        %v709 = vld [vmem:[#allocation2 + $0x9d0] sm:$0xff]
        %v710 = vld [vmem:[#allocation2 + $0x9d8] sm:$0xff]
        %v711 = vld [vmem:[#allocation2 + $0x9e0] sm:$0xff]
        %v712 = vld [vmem:[#allocation2 + $0x9e8] sm:$0xff]
        %v713 = vld [vmem:[#allocation2 + $0x9f0] sm:$0xff]
        %v714 = vld [vmem:[#allocation2 + $0x9f8] sm:$0xff]
        %v715 = vld [vmem:[#allocation2 + $0xa00] sm:$0xff]
        %v716 = vld [vmem:[#allocation2 + $0xa08] sm:$0xff]
        %v717 = vld [vmem:[#allocation2 + $0xa10] sm:$0xff]
        %v718 = vld [vmem:[#allocation2 + $0xa18] sm:$0xff]
        %v719 = vld [vmem:[#allocation2 + $0xa20] sm:$0xff]
        %v720 = vld [vmem:[#allocation2 + $0xa28] sm:$0xff]
        %v721 = vld [vmem:[#allocation2 + $0xa30] sm:$0xff]
        %v722 = vld [vmem:[#allocation2 + $0xa38] sm:$0xff]
        %v723 = vld [vmem:[#allocation2 + $0xa40] sm:$0xff]
        %v724 = vld [vmem:[#allocation2 + $0xa48] sm:$0xff]
        %v725 = vld [vmem:[#allocation2 + $0xa50] sm:$0xff]
        %v726 = vld [vmem:[#allocation2 + $0xa58] sm:$0xff]
        %v727 = vld [vmem:[#allocation2 + $0xa60] sm:$0xff]
        %v728 = vld [vmem:[#allocation2 + $0xa68] sm:$0xff]
        %v729 = vld [vmem:[#allocation2 + $0xa70] sm:$0xff]
        %v730 = vld [vmem:[#allocation2 + $0xa78] sm:$0xff]
        %v731 = vld [vmem:[#allocation2 + $0xa80] sm:$0xff]
        %v732 = vld [vmem:[#allocation2 + $0xa88] sm:$0xff]
        %v733 = vld [vmem:[#allocation2 + $0xa90] sm:$0xff]
        %v734 = vld [vmem:[#allocation2 + $0xa98] sm:$0xff]
        %v735 = vld [vmem:[#allocation2 + $0xaa0] sm:$0xff]
        %v736 = vld [vmem:[#allocation2 + $0xaa8] sm:$0xff]
        %v737 = vld [vmem:[#allocation2 + $0xab0] sm:$0xff]
        %v738 = vld [vmem:[#allocation2 + $0xab8] sm:$0xff]
        %v739 = vld [vmem:[#allocation2 + $0xac0] sm:$0xff]
        %v740 = vld [vmem:[#allocation2 + $0xac8] sm:$0xff]
        %v741 = vld [vmem:[#allocation2 + $0xad0] sm:$0xff]
        %v742 = vld [vmem:[#allocation2 + $0xad8] sm:$0xff]
        %v743 = vld [vmem:[#allocation2 + $0xae0] sm:$0xff]
        %v744 = vld [vmem:[#allocation2 + $0xae8] sm:$0xff]
        %v745 = vld [vmem:[#allocation2 + $0xaf0] sm:$0xff]
        %v746 = vld [vmem:[#allocation2 + $0xaf8] sm:$0xff]
        %v747 = vld [vmem:[#allocation2 + $0xb00] sm:$0xff]
        %v748 = vld [vmem:[#allocation2 + $0xb08] sm:$0xff]
        %v749 = vld [vmem:[#allocation2 + $0xb10] sm:$0xff]
        %v750 = vld [vmem:[#allocation2 + $0xb18] sm:$0xff]
        %v751 = vld [vmem:[#allocation2 + $0xb20] sm:$0xff]
        %v752 = vld [vmem:[#allocation2 + $0xb28] sm:$0xff]
        %v753 = vld [vmem:[#allocation2 + $0xb30] sm:$0xff]
        %v754 = vld [vmem:[#allocation2 + $0xb38] sm:$0xff]
        %v755 = vld [vmem:[#allocation2 + $0xb40] sm:$0xff]
        %v756 = vld [vmem:[#allocation2 + $0xb48] sm:$0xff]
        %v757 = vld [vmem:[#allocation2 + $0xb50] sm:$0xff]
        %v758 = vld [vmem:[#allocation2 + $0xb58] sm:$0xff]
        %v759 = vld [vmem:[#allocation2 + $0xb60] sm:$0xff]
        %v760 = vld [vmem:[#allocation2 + $0xb68] sm:$0xff]
        %v761 = vld [vmem:[#allocation2 + $0xb70] sm:$0xff]
        %v762 = vld [vmem:[#allocation2 + $0xb78] sm:$0xff]
        %v763 = vld [vmem:[#allocation2 + $0xb80] sm:$0xff]
        %v764 = vld [vmem:[#allocation2 + $0xb88] sm:$0xff]
        %v765 = vld [vmem:[#allocation2 + $0xb90] sm:$0xff]
        %v766 = vld [vmem:[#allocation2 + $0xb98] sm:$0xff]
        %v767 = vld [vmem:[#allocation2 + $0xba0] sm:$0xff]
        %v768 = vld [vmem:[#allocation2 + $0xba8] sm:$0xff]
        %v769 = vld [vmem:[#allocation2 + $0xbb0] sm:$0xff]
        %v770 = vld [vmem:[#allocation2 + $0xbb8] sm:$0xff]
        %v771 = vld [vmem:[#allocation2 + $0xbc0] sm:$0xff]
        %v772 = vld [vmem:[#allocation2 + $0xbc8] sm:$0xff]
        %v773 = vld [vmem:[#allocation2 + $0xbd0] sm:$0xff]
        %v774 = vld [vmem:[#allocation2 + $0xbd8] sm:$0xff]
        %v775 = vld [vmem:[#allocation2 + $0xbe0] sm:$0xff]
        %v776 = vld [vmem:[#allocation2 + $0xbe8] sm:$0xff]
        %v777 = vld [vmem:[#allocation2 + $0xbf0] sm:$0xff]
        %v778 = vld [vmem:[#allocation2 + $0xbf8] sm:$0xff]
        %v779 = vld [vmem:[#allocation2 + $0xc00] sm:$0xff]
        %v780 = vld [vmem:[#allocation2 + $0xc08] sm:$0xff]
        %v781 = vld [vmem:[#allocation2 + $0xc10] sm:$0xff]
        %v782 = vld [vmem:[#allocation2 + $0xc18] sm:$0xff]
        %v783 = vld [vmem:[#allocation2 + $0xc20] sm:$0xff]
        %v784 = vld [vmem:[#allocation2 + $0xc28] sm:$0xff]
        %v785 = vld [vmem:[#allocation2 + $0xc30] sm:$0xff]
        %v786 = vld [vmem:[#allocation2 + $0xc38] sm:$0xff]
        %v787 = vld [vmem:[#allocation2 + $0xc40] sm:$0xff]
        %v788 = vld [vmem:[#allocation2 + $0xc48] sm:$0xff]
        %v789 = vld [vmem:[#allocation2 + $0xc50] sm:$0xff]
        %v790 = vld [vmem:[#allocation2 + $0xc58] sm:$0xff]
        %v791 = vld [vmem:[#allocation2 + $0xc60] sm:$0xff]
        %v792 = vld [vmem:[#allocation2 + $0xc68] sm:$0xff]
        %v793 = vld [vmem:[#allocation2 + $0xc70] sm:$0xff]
        %v794 = vld [vmem:[#allocation2 + $0xc78] sm:$0xff]
        %v795 = vld [vmem:[#allocation2 + $0xc80] sm:$0xff]
        %v796 = vld [vmem:[#allocation2 + $0xc88] sm:$0xff]
        %v797 = vld [vmem:[#allocation2 + $0xc90] sm:$0xff]
        %v798 = vld [vmem:[#allocation2 + $0xc98] sm:$0xff]
        %v799 = vld [vmem:[#allocation2 + $0xca0] sm:$0xff]
        %v800 = vld [vmem:[#allocation2 + $0xca8] sm:$0xff]
        %v801 = vld [vmem:[#allocation2 + $0xcb0] sm:$0xff]
        %v802 = vld [vmem:[#allocation2 + $0xcb8] sm:$0xff]
        %v803 = vld [vmem:[#allocation2 + $0xcc0] sm:$0xff]
        %v804 = vld [vmem:[#allocation2 + $0xcc8] sm:$0xff]
        %v805 = vld [vmem:[#allocation2 + $0xcd0] sm:$0xff]
        %v806 = vld [vmem:[#allocation2 + $0xcd8] sm:$0xff]
        %v807 = vld [vmem:[#allocation2 + $0xce0] sm:$0xff]
        %v808 = vld [vmem:[#allocation2 + $0xce8] sm:$0xff]
        %v809 = vld [vmem:[#allocation2 + $0xcf0] sm:$0xff]
        %v810 = vld [vmem:[#allocation2 + $0xcf8] sm:$0xff]
        %v811 = vld [vmem:[#allocation2 + $0xd00] sm:$0xff]
        %v812 = vld [vmem:[#allocation2 + $0xd08] sm:$0xff]
        %v813 = vld [vmem:[#allocation2 + $0xd10] sm:$0xff]
        %v814 = vld [vmem:[#allocation2 + $0xd18] sm:$0xff]
        %v815 = vld [vmem:[#allocation2 + $0xd20] sm:$0xff]
        %v816 = vld [vmem:[#allocation2 + $0xd28] sm:$0xff]
        %v817 = vld [vmem:[#allocation2 + $0xd30] sm:$0xff]
        %v818 = vld [vmem:[#allocation2 + $0xd38] sm:$0xff]
        %v819 = vld [vmem:[#allocation2 + $0xd40] sm:$0xff]
        %v820 = vld [vmem:[#allocation2 + $0xd48] sm:$0xff]
        %v821 = vld [vmem:[#allocation2 + $0xd50] sm:$0xff]
        %v822 = vld [vmem:[#allocation2 + $0xd58] sm:$0xff]
        %v823 = vld [vmem:[#allocation2 + $0xd60] sm:$0xff]
        %v824 = vld [vmem:[#allocation2 + $0xd68] sm:$0xff]
        %v825 = vld [vmem:[#allocation2 + $0xd70] sm:$0xff]
        %v826 = vld [vmem:[#allocation2 + $0xd78] sm:$0xff]
        %v827 = vld [vmem:[#allocation2 + $0xd80] sm:$0xff]
        %v828 = vld [vmem:[#allocation2 + $0xd88] sm:$0xff]
        %v829 = vld [vmem:[#allocation2 + $0xd90] sm:$0xff]
        %v830 = vld [vmem:[#allocation2 + $0xd98] sm:$0xff]
        %v831 = vld [vmem:[#allocation2 + $0xda0] sm:$0xff]
        %v832 = vld [vmem:[#allocation2 + $0xda8] sm:$0xff]
        %v833 = vld [vmem:[#allocation2 + $0xdb0] sm:$0xff]
        %v834 = vld [vmem:[#allocation2 + $0xdb8] sm:$0xff]
        %v835 = vld [vmem:[#allocation2 + $0xdc0] sm:$0xff]
        %v836 = vld [vmem:[#allocation2 + $0xdc8] sm:$0xff]
        %v837 = vld [vmem:[#allocation2 + $0xdd0] sm:$0xff]
        %v838 = vld [vmem:[#allocation2 + $0xdd8] sm:$0xff]
        %v839 = vld [vmem:[#allocation2 + $0xde0] sm:$0xff]
        %v840 = vld [vmem:[#allocation2 + $0xde8] sm:$0xff]
        %v841 = vld [vmem:[#allocation2 + $0xdf0] sm:$0xff]
        %v842 = vld [vmem:[#allocation2 + $0xdf8] sm:$0xff]
        %v847 = vunpack.c.l.b16 %v391
        %v848 = vunpack.c.h.b16 %v391
        %v849 = vunpack.c.l.b16 %v392
        %v850 = vunpack.c.h.b16 %v392
        %v851 = vunpack.c.l.b16 %v393
        %v852 = vunpack.c.h.b16 %v393
        %v853 = vunpack.c.l.b16 %v394
        %v854 = vunpack.c.h.b16 %v394
        %v855 = vpack.c.b16 %v849, %v847
        %v856 = vpack.c.b16 %v850, %v848
        %v857 = vpack.c.b16 %v853, %v851
        %v858 = vpack.c.b16 %v854, %v852
        %v1311 = vunpack.c.l.b16 %v395
        %v1312 = vunpack.c.h.b16 %v395
        %v1313 = vunpack.c.l.b16 %v396
        %v1314 = vunpack.c.h.b16 %v396
        %v1315 = vunpack.c.l.b16 %v397
        %v1316 = vunpack.c.h.b16 %v397
        %v1317 = vunpack.c.l.b16 %v398
        %v1318 = vunpack.c.h.b16 %v398
        %v1319 = vunpack.c.l.b16 %v399
        %v1320 = vunpack.c.h.b16 %v399
        %v1321 = vunpack.c.l.b16 %v400
        %v1322 = vunpack.c.h.b16 %v400
        %v1323 = vunpack.c.l.b16 %v401
        %v1324 = vunpack.c.h.b16 %v401
        %v1325 = vunpack.c.l.b16 %v402
        %v1326 = vunpack.c.h.b16 %v402
        %v1327 = vunpack.c.l.b16 %v403
        %v1328 = vunpack.c.h.b16 %v403
        %v1329 = vunpack.c.l.b16 %v404
        %v1330 = vunpack.c.h.b16 %v404
        %v1331 = vunpack.c.l.b16 %v405
        %v1332 = vunpack.c.h.b16 %v405
        %v1333 = vunpack.c.l.b16 %v406
        %v1334 = vunpack.c.h.b16 %v406
        %v1335 = vunpack.c.l.b16 %v407
        %v1336 = vunpack.c.h.b16 %v407
        %v1337 = vunpack.c.l.b16 %v408
        %v1338 = vunpack.c.h.b16 %v408
        %v1339 = vunpack.c.l.b16 %v409
        %v1340 = vunpack.c.h.b16 %v409
        %v1341 = vunpack.c.l.b16 %v410
        %v1342 = vunpack.c.h.b16 %v410
        %v1343 = vunpack.c.l.b16 %v411
        %v1344 = vunpack.c.h.b16 %v411
        %v1345 = vunpack.c.l.b16 %v412
        %v1346 = vunpack.c.h.b16 %v412
        %v1347 = vunpack.c.l.b16 %v413
        %v1348 = vunpack.c.h.b16 %v413
        %v1349 = vunpack.c.l.b16 %v414
        %v1350 = vunpack.c.h.b16 %v414
        %v1351 = vunpack.c.l.b16 %v415
        %v1352 = vunpack.c.h.b16 %v415
        %v1353 = vunpack.c.l.b16 %v416
        %v1354 = vunpack.c.h.b16 %v416
        %v1355 = vunpack.c.l.b16 %v417
        %v1356 = vunpack.c.h.b16 %v417
        %v1357 = vunpack.c.l.b16 %v418
        %v1358 = vunpack.c.h.b16 %v418
        %v1359 = vunpack.c.l.b16 %v419
        %v1360 = vunpack.c.h.b16 %v419
        %v1361 = vunpack.c.l.b16 %v420
        %v1362 = vunpack.c.h.b16 %v420
        %v1363 = vunpack.c.l.b16 %v421
        %v1364 = vunpack.c.h.b16 %v421
        %v1365 = vunpack.c.l.b16 %v422
        %v1366 = vunpack.c.h.b16 %v422
        %v1367 = vunpack.c.l.b16 %v423
        %v1368 = vunpack.c.h.b16 %v423
        %v1369 = vunpack.c.l.b16 %v424
        %v1370 = vunpack.c.h.b16 %v424
        %v1371 = vunpack.c.l.b16 %v425
        %v1372 = vunpack.c.h.b16 %v425
        %v1373 = vunpack.c.l.b16 %v426
        %v1374 = vunpack.c.h.b16 %v426
        %v1375 = vunpack.c.l.b16 %v427
        %v1376 = vunpack.c.h.b16 %v427
        %v1377 = vunpack.c.l.b16 %v428
        %v1378 = vunpack.c.h.b16 %v428
        %v1379 = vunpack.c.l.b16 %v429
        %v1380 = vunpack.c.h.b16 %v429
        %v1381 = vunpack.c.l.b16 %v430
        %v1382 = vunpack.c.h.b16 %v430
        %v1383 = vunpack.c.l.b16 %v431
        %v1384 = vunpack.c.h.b16 %v431
        %v1385 = vunpack.c.l.b16 %v432
        %v1386 = vunpack.c.h.b16 %v432
        %v1387 = vunpack.c.l.b16 %v433
        %v1388 = vunpack.c.h.b16 %v433
        %v1389 = vunpack.c.l.b16 %v434
        %v1390 = vunpack.c.h.b16 %v434
        %v1391 = vunpack.c.l.b16 %v435
        %v1392 = vunpack.c.h.b16 %v435
        %v1393 = vunpack.c.l.b16 %v436
        %v1394 = vunpack.c.h.b16 %v436
        %v1395 = vunpack.c.l.b16 %v437
        %v1396 = vunpack.c.h.b16 %v437
        %v1397 = vunpack.c.l.b16 %v438
        %v1398 = vunpack.c.h.b16 %v438
        %v1399 = vunpack.c.l.b16 %v439
        %v1400 = vunpack.c.h.b16 %v439
        %v1401 = vunpack.c.l.b16 %v440
        %v1402 = vunpack.c.h.b16 %v440
        %v1403 = vunpack.c.l.b16 %v441
        %v1404 = vunpack.c.h.b16 %v441
        %v1405 = vunpack.c.l.b16 %v442
        %v1406 = vunpack.c.h.b16 %v442
        %v1407 = vunpack.c.l.b16 %v443
        %v1408 = vunpack.c.h.b16 %v443
        %v1409 = vunpack.c.l.b16 %v444
        %v1410 = vunpack.c.h.b16 %v444
        %v1411 = vunpack.c.l.b16 %v445
        %v1412 = vunpack.c.h.b16 %v445
        %v1413 = vunpack.c.l.b16 %v446
        %v1414 = vunpack.c.h.b16 %v446
        %v1415 = vunpack.c.l.b16 %v447
        %v1416 = vunpack.c.h.b16 %v447
        %v1417 = vunpack.c.l.b16 %v448
        %v1418 = vunpack.c.h.b16 %v448
        %v1419 = vunpack.c.l.b16 %v449
        %v1420 = vunpack.c.h.b16 %v449
        %v1421 = vunpack.c.l.b16 %v450
        %v1422 = vunpack.c.h.b16 %v450
        %v1423 = vunpack.c.l.b16 %v451
        %v1424 = vunpack.c.h.b16 %v451
        %v1425 = vunpack.c.l.b16 %v452
        %v1426 = vunpack.c.h.b16 %v452
        %v1427 = vunpack.c.l.b16 %v453
        %v1428 = vunpack.c.h.b16 %v453
        %v1429 = vunpack.c.l.b16 %v454
        %v1430 = vunpack.c.h.b16 %v454
        %v1431 = vunpack.c.l.b16 %v455
        %v1432 = vunpack.c.h.b16 %v455
        %v1433 = vunpack.c.l.b16 %v456
        %v1434 = vunpack.c.h.b16 %v456
        %v1435 = vunpack.c.l.b16 %v457
        %v1436 = vunpack.c.h.b16 %v457
        %v1437 = vunpack.c.l.b16 %v458
        %v1438 = vunpack.c.h.b16 %v458
        %v1439 = vunpack.c.l.b16 %v459
        %v1440 = vunpack.c.h.b16 %v459
        %v1441 = vunpack.c.l.b16 %v460
        %v1442 = vunpack.c.h.b16 %v460
        %v1443 = vunpack.c.l.b16 %v461
        %v1444 = vunpack.c.h.b16 %v461
        %v1445 = vunpack.c.l.b16 %v462
        %v1446 = vunpack.c.h.b16 %v462
        %v1447 = vunpack.c.l.b16 %v463
        %v1448 = vunpack.c.h.b16 %v463
        %v1449 = vunpack.c.l.b16 %v464
        %v1450 = vunpack.c.h.b16 %v464
        %v1451 = vunpack.c.l.b16 %v465
        %v1452 = vunpack.c.h.b16 %v465
        %v1453 = vunpack.c.l.b16 %v466
        %v1454 = vunpack.c.h.b16 %v466
        %v1455 = vunpack.c.l.b16 %v467
        %v1456 = vunpack.c.h.b16 %v467
        %v1457 = vunpack.c.l.b16 %v468
        %v1458 = vunpack.c.h.b16 %v468
        %v1459 = vunpack.c.l.b16 %v469
        %v1460 = vunpack.c.h.b16 %v469
        %v1461 = vunpack.c.l.b16 %v470
        %v1462 = vunpack.c.h.b16 %v470
        %v1463 = vunpack.c.l.b16 %v471
        %v1464 = vunpack.c.h.b16 %v471
        %v1465 = vunpack.c.l.b16 %v472
        %v1466 = vunpack.c.h.b16 %v472
        %v1467 = vunpack.c.l.b16 %v473
        %v1468 = vunpack.c.h.b16 %v473
        %v1469 = vunpack.c.l.b16 %v474
        %v1470 = vunpack.c.h.b16 %v474
        %v1471 = vunpack.c.l.b16 %v475
        %v1472 = vunpack.c.h.b16 %v475
        %v1473 = vunpack.c.l.b16 %v476
        %v1474 = vunpack.c.h.b16 %v476
        %v1475 = vunpack.c.l.b16 %v477
        %v1476 = vunpack.c.h.b16 %v477
        %v1477 = vunpack.c.l.b16 %v478
        %v1478 = vunpack.c.h.b16 %v478
        %v1479 = vunpack.c.l.b16 %v479
        %v1480 = vunpack.c.h.b16 %v479
        %v1481 = vunpack.c.l.b16 %v480
        %v1482 = vunpack.c.h.b16 %v480
        %v1483 = vunpack.c.l.b16 %v481
        %v1484 = vunpack.c.h.b16 %v481
        %v1485 = vunpack.c.l.b16 %v482
        %v1486 = vunpack.c.h.b16 %v482
        %v1487 = vunpack.c.l.b16 %v483
        %v1488 = vunpack.c.h.b16 %v483
        %v1489 = vunpack.c.l.b16 %v484
        %v1490 = vunpack.c.h.b16 %v484
        %v1491 = vunpack.c.l.b16 %v485
        %v1492 = vunpack.c.h.b16 %v485
        %v1493 = vunpack.c.l.b16 %v486
        %v1494 = vunpack.c.h.b16 %v486
        %v1495 = vunpack.c.l.b16 %v487
        %v1496 = vunpack.c.h.b16 %v487
        %v1497 = vunpack.c.l.b16 %v488
        %v1498 = vunpack.c.h.b16 %v488
        %v1499 = vunpack.c.l.b16 %v489
        %v1500 = vunpack.c.h.b16 %v489
        %v1501 = vunpack.c.l.b16 %v490
        %v1502 = vunpack.c.h.b16 %v490
        %v1503 = vunpack.c.l.b16 %v491
        %v1504 = vunpack.c.h.b16 %v491
        %v1505 = vunpack.c.l.b16 %v492
        %v1506 = vunpack.c.h.b16 %v492
        %v1507 = vunpack.c.l.b16 %v493
        %v1508 = vunpack.c.h.b16 %v493
        %v1509 = vunpack.c.l.b16 %v494
        %v1510 = vunpack.c.h.b16 %v494
        %v1511 = vunpack.c.l.b16 %v495
        %v1512 = vunpack.c.h.b16 %v495
        %v1513 = vunpack.c.l.b16 %v496
        %v1514 = vunpack.c.h.b16 %v496
        %v1515 = vunpack.c.l.b16 %v497
        %v1516 = vunpack.c.h.b16 %v497
        %v1517 = vunpack.c.l.b16 %v498
        %v1518 = vunpack.c.h.b16 %v498
        %v1519 = vunpack.c.l.b16 %v499
        %v1520 = vunpack.c.h.b16 %v499
        %v1521 = vunpack.c.l.b16 %v500
        %v1522 = vunpack.c.h.b16 %v500
        %v1523 = vunpack.c.l.b16 %v501
        %v1524 = vunpack.c.h.b16 %v501
        %v1525 = vunpack.c.l.b16 %v502
        %v1526 = vunpack.c.h.b16 %v502
        %v1527 = vunpack.c.l.b16 %v503
        %v1528 = vunpack.c.h.b16 %v503
        %v1529 = vunpack.c.l.b16 %v504
        %v1530 = vunpack.c.h.b16 %v504
        %v1531 = vunpack.c.l.b16 %v505
        %v1532 = vunpack.c.h.b16 %v505
        %v1533 = vunpack.c.l.b16 %v506
        %v1534 = vunpack.c.h.b16 %v506
        %v1535 = vunpack.c.l.b16 %v507
        %v1536 = vunpack.c.h.b16 %v507
        %v1537 = vunpack.c.l.b16 %v508
        %v1538 = vunpack.c.h.b16 %v508
        %v1539 = vunpack.c.l.b16 %v509
        %v1540 = vunpack.c.h.b16 %v509
        %v1541 = vunpack.c.l.b16 %v510
        %v1542 = vunpack.c.h.b16 %v510
        %v1543 = vunpack.c.l.b16 %v511
        %v1544 = vunpack.c.h.b16 %v511
        %v1545 = vunpack.c.l.b16 %v512
        %v1546 = vunpack.c.h.b16 %v512
        %v1547 = vunpack.c.l.b16 %v513
        %v1548 = vunpack.c.h.b16 %v513
        %v1549 = vunpack.c.l.b16 %v514
        %v1550 = vunpack.c.h.b16 %v514
        %v1551 = vunpack.c.l.b16 %v515
        %v1552 = vunpack.c.h.b16 %v515
        %v1553 = vunpack.c.l.b16 %v516
        %v1554 = vunpack.c.h.b16 %v516
        %v1555 = vunpack.c.l.b16 %v517
        %v1556 = vunpack.c.h.b16 %v517
        %v1557 = vunpack.c.l.b16 %v518
        %v1558 = vunpack.c.h.b16 %v518
        %v1559 = vunpack.c.l.b16 %v519
        %v1560 = vunpack.c.h.b16 %v519
        %v1561 = vunpack.c.l.b16 %v520
        %v1562 = vunpack.c.h.b16 %v520
        %v1563 = vunpack.c.l.b16 %v521
        %v1564 = vunpack.c.h.b16 %v521
        %v1565 = vunpack.c.l.b16 %v522
        %v1566 = vunpack.c.h.b16 %v522
        %v1567 = vunpack.c.l.b16 %v523
        %v1568 = vunpack.c.h.b16 %v523
        %v1569 = vunpack.c.l.b16 %v524
        %v1570 = vunpack.c.h.b16 %v524
        %v1571 = vunpack.c.l.b16 %v525
        %v1572 = vunpack.c.h.b16 %v525
        %v1573 = vunpack.c.l.b16 %v526
        %v1574 = vunpack.c.h.b16 %v526
        %v1575 = vunpack.c.l.b16 %v527
        %v1576 = vunpack.c.h.b16 %v527
        %v1577 = vunpack.c.l.b16 %v528
        %v1578 = vunpack.c.h.b16 %v528
        %v1579 = vunpack.c.l.b16 %v529
        %v1580 = vunpack.c.h.b16 %v529
        %v1581 = vunpack.c.l.b16 %v530
        %v1582 = vunpack.c.h.b16 %v530
        %v1583 = vunpack.c.l.b16 %v531
        %v1584 = vunpack.c.h.b16 %v531
        %v1585 = vunpack.c.l.b16 %v532
        %v1586 = vunpack.c.h.b16 %v532
        %v1587 = vunpack.c.l.b16 %v533
        %v1588 = vunpack.c.h.b16 %v533
        %v1589 = vunpack.c.l.b16 %v534
        %v1590 = vunpack.c.h.b16 %v534
        %v1591 = vunpack.c.l.b16 %v535
        %v1592 = vunpack.c.h.b16 %v535
        %v1593 = vunpack.c.l.b16 %v536
        %v1594 = vunpack.c.h.b16 %v536
        %v1595 = vunpack.c.l.b16 %v537
        %v1596 = vunpack.c.h.b16 %v537
        %v1597 = vunpack.c.l.b16 %v538
        %v1598 = vunpack.c.h.b16 %v538
        %v1599 = vunpack.c.l.b16 %v539
        %v1600 = vunpack.c.h.b16 %v539
        %v1601 = vunpack.c.l.b16 %v540
        %v1602 = vunpack.c.h.b16 %v540
        %v1603 = vunpack.c.l.b16 %v541
        %v1604 = vunpack.c.h.b16 %v541
        %v1605 = vunpack.c.l.b16 %v542
        %v1606 = vunpack.c.h.b16 %v542
        %v1607 = vunpack.c.l.b16 %v543
        %v1608 = vunpack.c.h.b16 %v543
        %v1609 = vunpack.c.l.b16 %v544
        %v1610 = vunpack.c.h.b16 %v544
        %v1611 = vunpack.c.l.b16 %v545
        %v1612 = vunpack.c.h.b16 %v545
        %v1613 = vunpack.c.l.b16 %v546
        %v1614 = vunpack.c.h.b16 %v546
        %v1615 = vunpack.c.l.b16 %v547
        %v1616 = vunpack.c.h.b16 %v547
        %v1617 = vunpack.c.l.b16 %v548
        %v1618 = vunpack.c.h.b16 %v548
        %v1619 = vunpack.c.l.b16 %v549
        %v1620 = vunpack.c.h.b16 %v549
        %v1621 = vunpack.c.l.b16 %v550
        %v1622 = vunpack.c.h.b16 %v550
        %v1623 = vunpack.c.l.b16 %v551
        %v1624 = vunpack.c.h.b16 %v551
        %v1625 = vunpack.c.l.b16 %v552
        %v1626 = vunpack.c.h.b16 %v552
        %v1627 = vunpack.c.l.b16 %v553
        %v1628 = vunpack.c.h.b16 %v553
        %v1629 = vunpack.c.l.b16 %v554
        %v1630 = vunpack.c.h.b16 %v554
        %v1631 = vunpack.c.l.b16 %v555
        %v1632 = vunpack.c.h.b16 %v555
        %v1633 = vunpack.c.l.b16 %v556
        %v1634 = vunpack.c.h.b16 %v556
        %v1635 = vunpack.c.l.b16 %v557
        %v1636 = vunpack.c.h.b16 %v557
        %v1637 = vunpack.c.l.b16 %v558
        %v1638 = vunpack.c.h.b16 %v558
        %v1639 = vunpack.c.l.b16 %v559
        %v1640 = vunpack.c.h.b16 %v559
        %v1641 = vunpack.c.l.b16 %v560
        %v1642 = vunpack.c.h.b16 %v560
        %v1643 = vunpack.c.l.b16 %v561
        %v1644 = vunpack.c.h.b16 %v561
        %v1645 = vunpack.c.l.b16 %v562
        %v1646 = vunpack.c.h.b16 %v562
        %v1647 = vunpack.c.l.b16 %v563
        %v1648 = vunpack.c.h.b16 %v563
        %v1649 = vunpack.c.l.b16 %v564
        %v1650 = vunpack.c.h.b16 %v564
        %v1651 = vunpack.c.l.b16 %v565
        %v1652 = vunpack.c.h.b16 %v565
        %v1653 = vunpack.c.l.b16 %v566
        %v1654 = vunpack.c.h.b16 %v566
        %v1655 = vunpack.c.l.b16 %v567
        %v1656 = vunpack.c.h.b16 %v567
        %v1657 = vunpack.c.l.b16 %v568
        %v1658 = vunpack.c.h.b16 %v568
        %v1659 = vunpack.c.l.b16 %v569
        %v1660 = vunpack.c.h.b16 %v569
        %v1661 = vunpack.c.l.b16 %v570
        %v1662 = vunpack.c.h.b16 %v570
        %v1663 = vunpack.c.l.b16 %v571
        %v1664 = vunpack.c.h.b16 %v571
        %v1665 = vunpack.c.l.b16 %v572
        %v1666 = vunpack.c.h.b16 %v572
        %v1667 = vunpack.c.l.b16 %v573
        %v1668 = vunpack.c.h.b16 %v573
        %v1669 = vunpack.c.l.b16 %v574
        %v1670 = vunpack.c.h.b16 %v574
        %v1671 = vunpack.c.l.b16 %v575
        %v1672 = vunpack.c.h.b16 %v575
        %v1673 = vunpack.c.l.b16 %v576
        %v1674 = vunpack.c.h.b16 %v576
        %v1675 = vunpack.c.l.b16 %v577
        %v1676 = vunpack.c.h.b16 %v577
        %v1677 = vunpack.c.l.b16 %v578
        %v1678 = vunpack.c.h.b16 %v578
        %v1679 = vunpack.c.l.b16 %v579
        %v1680 = vunpack.c.h.b16 %v579
        %v1681 = vunpack.c.l.b16 %v580
        %v1682 = vunpack.c.h.b16 %v580
        %v1683 = vunpack.c.l.b16 %v581
        %v1684 = vunpack.c.h.b16 %v581
        %v1685 = vunpack.c.l.b16 %v582
        %v1686 = vunpack.c.h.b16 %v582
        %v1687 = vunpack.c.l.b16 %v583
        %v1688 = vunpack.c.h.b16 %v583
        %v1689 = vunpack.c.l.b16 %v584
        %v1690 = vunpack.c.h.b16 %v584
        %v1691 = vunpack.c.l.b16 %v585
        %v1692 = vunpack.c.h.b16 %v585
        %v1693 = vunpack.c.l.b16 %v586
        %v1694 = vunpack.c.h.b16 %v586
        %v1695 = vunpack.c.l.b16 %v587
        %v1696 = vunpack.c.h.b16 %v587
        %v1697 = vunpack.c.l.b16 %v588
        %v1698 = vunpack.c.h.b16 %v588
        %v1699 = vunpack.c.l.b16 %v589
        %v1700 = vunpack.c.h.b16 %v589
        %v1701 = vunpack.c.l.b16 %v590
        %v1702 = vunpack.c.h.b16 %v590
        %v1703 = vunpack.c.l.b16 %v591
        %v1704 = vunpack.c.h.b16 %v591
        %v1705 = vunpack.c.l.b16 %v592
        %v1706 = vunpack.c.h.b16 %v592
        %v1707 = vunpack.c.l.b16 %v593
        %v1708 = vunpack.c.h.b16 %v593
        %v1709 = vunpack.c.l.b16 %v594
        %v1710 = vunpack.c.h.b16 %v594
        %v1711 = vunpack.c.l.b16 %v595
        %v1712 = vunpack.c.h.b16 %v595
        %v1713 = vunpack.c.l.b16 %v596
        %v1714 = vunpack.c.h.b16 %v596
        %v1715 = vunpack.c.l.b16 %v597
        %v1716 = vunpack.c.h.b16 %v597
        %v1717 = vunpack.c.l.b16 %v598
        %v1718 = vunpack.c.h.b16 %v598
        %v1719 = vunpack.c.l.b16 %v599
        %v1720 = vunpack.c.h.b16 %v599
        %v1721 = vunpack.c.l.b16 %v600
        %v1722 = vunpack.c.h.b16 %v600
        %v1723 = vunpack.c.l.b16 %v601
        %v1724 = vunpack.c.h.b16 %v601
        %v1725 = vunpack.c.l.b16 %v602
        %v1726 = vunpack.c.h.b16 %v602
        %v1727 = vunpack.c.l.b16 %v603
        %v1728 = vunpack.c.h.b16 %v603
        %v1729 = vunpack.c.l.b16 %v604
        %v1730 = vunpack.c.h.b16 %v604
        %v1731 = vunpack.c.l.b16 %v605
        %v1732 = vunpack.c.h.b16 %v605
        %v1733 = vunpack.c.l.b16 %v606
        %v1734 = vunpack.c.h.b16 %v606
        %v1735 = vunpack.c.l.b16 %v607
        %v1736 = vunpack.c.h.b16 %v607
        %v1737 = vunpack.c.l.b16 %v608
        %v1738 = vunpack.c.h.b16 %v608
        %v1739 = vunpack.c.l.b16 %v609
        %v1740 = vunpack.c.h.b16 %v609
        %v1741 = vunpack.c.l.b16 %v610
        %v1742 = vunpack.c.h.b16 %v610
        %v1743 = vunpack.c.l.b16 %v611
        %v1744 = vunpack.c.h.b16 %v611
        %v1745 = vunpack.c.l.b16 %v612
        %v1746 = vunpack.c.h.b16 %v612
        %v1747 = vunpack.c.l.b16 %v613
        %v1748 = vunpack.c.h.b16 %v613
        %v1749 = vunpack.c.l.b16 %v614
        %v1750 = vunpack.c.h.b16 %v614
        %v1751 = vunpack.c.l.b16 %v615
        %v1752 = vunpack.c.h.b16 %v615
        %v1753 = vunpack.c.l.b16 %v616
        %v1754 = vunpack.c.h.b16 %v616
        %v1755 = vunpack.c.l.b16 %v617
        %v1756 = vunpack.c.h.b16 %v617
        %v1757 = vunpack.c.l.b16 %v618
        %v1758 = vunpack.c.h.b16 %v618
        %v1759 = vunpack.c.l.b16 %v619
        %v1760 = vunpack.c.h.b16 %v619
        %v1761 = vunpack.c.l.b16 %v620
        %v1762 = vunpack.c.h.b16 %v620
        %v1763 = vunpack.c.l.b16 %v621
        %v1764 = vunpack.c.h.b16 %v621
        %v1765 = vunpack.c.l.b16 %v622
        %v1766 = vunpack.c.h.b16 %v622
        %v1767 = vunpack.c.l.b16 %v623
        %v1768 = vunpack.c.h.b16 %v623
        %v1769 = vunpack.c.l.b16 %v624
        %v1770 = vunpack.c.h.b16 %v624
        %v1771 = vunpack.c.l.b16 %v625
        %v1772 = vunpack.c.h.b16 %v625
        %v1773 = vunpack.c.l.b16 %v626
        %v1774 = vunpack.c.h.b16 %v626
        %v1775 = vunpack.c.l.b16 %v627
        %v1776 = vunpack.c.h.b16 %v627
        %v1777 = vunpack.c.l.b16 %v628
        %v1778 = vunpack.c.h.b16 %v628
        %v1779 = vunpack.c.l.b16 %v629
        %v1780 = vunpack.c.h.b16 %v629
        %v1781 = vunpack.c.l.b16 %v630
        %v1782 = vunpack.c.h.b16 %v630
        %v1783 = vunpack.c.l.b16 %v631
        %v1784 = vunpack.c.h.b16 %v631
        %v1785 = vunpack.c.l.b16 %v632
        %v1786 = vunpack.c.h.b16 %v632
        %v1787 = vunpack.c.l.b16 %v633
        %v1788 = vunpack.c.h.b16 %v633
        %v1789 = vunpack.c.l.b16 %v634
        %v1790 = vunpack.c.h.b16 %v634
        %v1791 = vunpack.c.l.b16 %v635
        %v1792 = vunpack.c.h.b16 %v635
        %v1793 = vunpack.c.l.b16 %v636
        %v1794 = vunpack.c.h.b16 %v636
        %v1795 = vunpack.c.l.b16 %v637
        %v1796 = vunpack.c.h.b16 %v637
        %v1797 = vunpack.c.l.b16 %v638
        %v1798 = vunpack.c.h.b16 %v638
        %v1799 = vunpack.c.l.b16 %v639
        %v1800 = vunpack.c.h.b16 %v639
        %v1801 = vunpack.c.l.b16 %v640
        %v1802 = vunpack.c.h.b16 %v640
        %v1803 = vunpack.c.l.b16 %v641
        %v1804 = vunpack.c.h.b16 %v641
        %v1805 = vunpack.c.l.b16 %v642
        %v1806 = vunpack.c.h.b16 %v642
        %v1807 = vunpack.c.l.b16 %v643
        %v1808 = vunpack.c.h.b16 %v643
        %v1809 = vunpack.c.l.b16 %v644
        %v1810 = vunpack.c.h.b16 %v644
        %v1811 = vunpack.c.l.b16 %v645
        %v1812 = vunpack.c.h.b16 %v645
        %v1813 = vunpack.c.l.b16 %v646
        %v1814 = vunpack.c.h.b16 %v646
        %v1815 = vunpack.c.l.b16 %v647
        %v1816 = vunpack.c.h.b16 %v647
        %v1817 = vunpack.c.l.b16 %v648
        %v1818 = vunpack.c.h.b16 %v648
        %v1819 = vunpack.c.l.b16 %v649
        %v1820 = vunpack.c.h.b16 %v649
        %v1821 = vunpack.c.l.b16 %v650
        %v1822 = vunpack.c.h.b16 %v650
        %v1823 = vunpack.c.l.b16 %v651
        %v1824 = vunpack.c.h.b16 %v651
        %v1825 = vunpack.c.l.b16 %v652
        %v1826 = vunpack.c.h.b16 %v652
        %v1827 = vunpack.c.l.b16 %v653
        %v1828 = vunpack.c.h.b16 %v653
        %v1829 = vunpack.c.l.b16 %v654
        %v1830 = vunpack.c.h.b16 %v654
        %v1831 = vunpack.c.l.b16 %v655
        %v1832 = vunpack.c.h.b16 %v655
        %v1833 = vunpack.c.l.b16 %v656
        %v1834 = vunpack.c.h.b16 %v656
        %v1835 = vunpack.c.l.b16 %v657
        %v1836 = vunpack.c.h.b16 %v657
        %v1837 = vunpack.c.l.b16 %v658
        %v1838 = vunpack.c.h.b16 %v658
        %v1839 = vunpack.c.l.b16 %v659
        %v1840 = vunpack.c.h.b16 %v659
        %v1841 = vunpack.c.l.b16 %v660
        %v1842 = vunpack.c.h.b16 %v660
        %v1843 = vunpack.c.l.b16 %v661
        %v1844 = vunpack.c.h.b16 %v661
        %v1845 = vunpack.c.l.b16 %v662
        %v1846 = vunpack.c.h.b16 %v662
        %v1847 = vunpack.c.l.b16 %v663
        %v1848 = vunpack.c.h.b16 %v663
        %v1849 = vunpack.c.l.b16 %v664
        %v1850 = vunpack.c.h.b16 %v664
        %v1851 = vunpack.c.l.b16 %v665
        %v1852 = vunpack.c.h.b16 %v665
        %v1853 = vunpack.c.l.b16 %v666
        %v1854 = vunpack.c.h.b16 %v666
        %v1855 = vunpack.c.l.b16 %v667
        %v1856 = vunpack.c.h.b16 %v667
        %v1857 = vunpack.c.l.b16 %v668
        %v1858 = vunpack.c.h.b16 %v668
        %v1859 = vunpack.c.l.b16 %v669
        %v1860 = vunpack.c.h.b16 %v669
        %v1861 = vunpack.c.l.b16 %v670
        %v1862 = vunpack.c.h.b16 %v670
        %v1863 = vunpack.c.l.b16 %v671
        %v1864 = vunpack.c.h.b16 %v671
        %v1865 = vunpack.c.l.b16 %v672
        %v1866 = vunpack.c.h.b16 %v672
        %v1867 = vunpack.c.l.b16 %v673
        %v1868 = vunpack.c.h.b16 %v673
        %v1869 = vunpack.c.l.b16 %v674
        %v1870 = vunpack.c.h.b16 %v674
        %v1871 = vunpack.c.l.b16 %v675
        %v1872 = vunpack.c.h.b16 %v675
        %v1873 = vunpack.c.l.b16 %v676
        %v1874 = vunpack.c.h.b16 %v676
        %v1875 = vunpack.c.l.b16 %v677
        %v1876 = vunpack.c.h.b16 %v677
        %v1877 = vunpack.c.l.b16 %v678
        %v1878 = vunpack.c.h.b16 %v678
        %v1879 = vunpack.c.l.b16 %v679
        %v1880 = vunpack.c.h.b16 %v679
        %v1881 = vunpack.c.l.b16 %v680
        %v1882 = vunpack.c.h.b16 %v680
        %v1883 = vunpack.c.l.b16 %v681
        %v1884 = vunpack.c.h.b16 %v681
        %v1885 = vunpack.c.l.b16 %v682
        %v1886 = vunpack.c.h.b16 %v682
        %v1887 = vunpack.c.l.b16 %v683
        %v1888 = vunpack.c.h.b16 %v683
        %v1889 = vunpack.c.l.b16 %v684
        %v1890 = vunpack.c.h.b16 %v684
        %v1891 = vunpack.c.l.b16 %v685
        %v1892 = vunpack.c.h.b16 %v685
        %v1893 = vunpack.c.l.b16 %v686
        %v1894 = vunpack.c.h.b16 %v686
        %v1895 = vunpack.c.l.b16 %v687
        %v1896 = vunpack.c.h.b16 %v687
        %v1897 = vunpack.c.l.b16 %v688
        %v1898 = vunpack.c.h.b16 %v688
        %v1899 = vunpack.c.l.b16 %v689
        %v1900 = vunpack.c.h.b16 %v689
        %v1901 = vunpack.c.l.b16 %v690
        %v1902 = vunpack.c.h.b16 %v690
        %v1903 = vunpack.c.l.b16 %v691
        %v1904 = vunpack.c.h.b16 %v691
        %v1905 = vunpack.c.l.b16 %v692
        %v1906 = vunpack.c.h.b16 %v692
        %v1907 = vunpack.c.l.b16 %v693
        %v1908 = vunpack.c.h.b16 %v693
        %v1909 = vunpack.c.l.b16 %v694
        %v1910 = vunpack.c.h.b16 %v694
        %v1911 = vunpack.c.l.b16 %v695
        %v1912 = vunpack.c.h.b16 %v695
        %v1913 = vunpack.c.l.b16 %v696
        %v1914 = vunpack.c.h.b16 %v696
        %v1915 = vunpack.c.l.b16 %v697
        %v1916 = vunpack.c.h.b16 %v697
        %v1917 = vunpack.c.l.b16 %v698
        %v1918 = vunpack.c.h.b16 %v698
        %v1919 = vunpack.c.l.b16 %v699
        %v1920 = vunpack.c.h.b16 %v699
        %v1921 = vunpack.c.l.b16 %v700
        %v1922 = vunpack.c.h.b16 %v700
        %v1923 = vunpack.c.l.b16 %v701
        %v1924 = vunpack.c.h.b16 %v701
        %v1925 = vunpack.c.l.b16 %v702
        %v1926 = vunpack.c.h.b16 %v702
        %v1927 = vunpack.c.l.b16 %v703
        %v1928 = vunpack.c.h.b16 %v703
        %v1929 = vunpack.c.l.b16 %v704
        %v1930 = vunpack.c.h.b16 %v704
        %v1931 = vunpack.c.l.b16 %v705
        %v1932 = vunpack.c.h.b16 %v705
        %v1933 = vunpack.c.l.b16 %v706
        %v1934 = vunpack.c.h.b16 %v706
        %v1935 = vunpack.c.l.b16 %v707
        %v1936 = vunpack.c.h.b16 %v707
        %v1937 = vunpack.c.l.b16 %v708
        %v1938 = vunpack.c.h.b16 %v708
        %v1939 = vunpack.c.l.b16 %v709
        %v1940 = vunpack.c.h.b16 %v709
        %v1941 = vunpack.c.l.b16 %v710
        %v1942 = vunpack.c.h.b16 %v710
        %v1943 = vunpack.c.l.b16 %v711
        %v1944 = vunpack.c.h.b16 %v711
        %v1945 = vunpack.c.l.b16 %v712
        %v1946 = vunpack.c.h.b16 %v712
        %v1947 = vunpack.c.l.b16 %v713
        %v1948 = vunpack.c.h.b16 %v713
        %v1949 = vunpack.c.l.b16 %v714
        %v1950 = vunpack.c.h.b16 %v714
        %v1951 = vunpack.c.l.b16 %v715
        %v1952 = vunpack.c.h.b16 %v715
        %v1953 = vunpack.c.l.b16 %v716
        %v1954 = vunpack.c.h.b16 %v716
        %v1955 = vunpack.c.l.b16 %v717
        %v1956 = vunpack.c.h.b16 %v717
        %v1957 = vunpack.c.l.b16 %v718
        %v1958 = vunpack.c.h.b16 %v718
        %v1959 = vunpack.c.l.b16 %v719
        %v1960 = vunpack.c.h.b16 %v719
        %v1961 = vunpack.c.l.b16 %v720
        %v1962 = vunpack.c.h.b16 %v720
        %v1963 = vunpack.c.l.b16 %v721
        %v1964 = vunpack.c.h.b16 %v721
        %v1965 = vunpack.c.l.b16 %v722
        %v1966 = vunpack.c.h.b16 %v722
        %v1967 = vunpack.c.l.b16 %v723
        %v1968 = vunpack.c.h.b16 %v723
        %v1969 = vunpack.c.l.b16 %v724
        %v1970 = vunpack.c.h.b16 %v724
        %v1971 = vunpack.c.l.b16 %v725
        %v1972 = vunpack.c.h.b16 %v725
        %v1973 = vunpack.c.l.b16 %v726
        %v1974 = vunpack.c.h.b16 %v726
        %v1975 = vunpack.c.l.b16 %v727
        %v1976 = vunpack.c.h.b16 %v727
        %v1977 = vunpack.c.l.b16 %v728
        %v1978 = vunpack.c.h.b16 %v728
        %v1979 = vunpack.c.l.b16 %v729
        %v1980 = vunpack.c.h.b16 %v729
        %v1981 = vunpack.c.l.b16 %v730
        %v1982 = vunpack.c.h.b16 %v730
        %v1983 = vunpack.c.l.b16 %v731
        %v1984 = vunpack.c.h.b16 %v731
        %v1985 = vunpack.c.l.b16 %v732
        %v1986 = vunpack.c.h.b16 %v732
        %v1987 = vunpack.c.l.b16 %v733
        %v1988 = vunpack.c.h.b16 %v733
        %v1989 = vunpack.c.l.b16 %v734
        %v1990 = vunpack.c.h.b16 %v734
        %v1991 = vunpack.c.l.b16 %v735
        %v1992 = vunpack.c.h.b16 %v735
        %v1993 = vunpack.c.l.b16 %v736
        %v1994 = vunpack.c.h.b16 %v736
        %v1995 = vunpack.c.l.b16 %v737
        %v1996 = vunpack.c.h.b16 %v737
        %v1997 = vunpack.c.l.b16 %v738
        %v1998 = vunpack.c.h.b16 %v738
        %v1999 = vunpack.c.l.b16 %v739
        %v2000 = vunpack.c.h.b16 %v739
        %v2001 = vunpack.c.l.b16 %v740
        %v2002 = vunpack.c.h.b16 %v740
        %v2003 = vunpack.c.l.b16 %v741
        %v2004 = vunpack.c.h.b16 %v741
        %v2005 = vunpack.c.l.b16 %v742
        %v2006 = vunpack.c.h.b16 %v742
        %v2007 = vunpack.c.l.b16 %v743
        %v2008 = vunpack.c.h.b16 %v743
        %v2009 = vunpack.c.l.b16 %v744
        %v2010 = vunpack.c.h.b16 %v744
        %v2011 = vunpack.c.l.b16 %v745
        %v2012 = vunpack.c.h.b16 %v745
        %v2013 = vunpack.c.l.b16 %v746
        %v2014 = vunpack.c.h.b16 %v746
        %v2015 = vunpack.c.l.b16 %v747
        %v2016 = vunpack.c.h.b16 %v747
        %v2017 = vunpack.c.l.b16 %v748
        %v2018 = vunpack.c.h.b16 %v748
        %v2019 = vunpack.c.l.b16 %v749
        %v2020 = vunpack.c.h.b16 %v749
        %v2021 = vunpack.c.l.b16 %v750
        %v2022 = vunpack.c.h.b16 %v750
        %v2023 = vunpack.c.l.b16 %v751
        %v2024 = vunpack.c.h.b16 %v751
        %v2025 = vunpack.c.l.b16 %v752
        %v2026 = vunpack.c.h.b16 %v752
        %v2027 = vunpack.c.l.b16 %v753
        %v2028 = vunpack.c.h.b16 %v753
        %v2029 = vunpack.c.l.b16 %v754
        %v2030 = vunpack.c.h.b16 %v754
        %v2031 = vunpack.c.l.b16 %v755
        %v2032 = vunpack.c.h.b16 %v755
        %v2033 = vunpack.c.l.b16 %v756
        %v2034 = vunpack.c.h.b16 %v756
        %v2035 = vunpack.c.l.b16 %v757
        %v2036 = vunpack.c.h.b16 %v757
        %v2037 = vunpack.c.l.b16 %v758
        %v2038 = vunpack.c.h.b16 %v758
        %v2039 = vunpack.c.l.b16 %v759
        %v2040 = vunpack.c.h.b16 %v759
        %v2041 = vunpack.c.l.b16 %v760
        %v2042 = vunpack.c.h.b16 %v760
        %v2043 = vunpack.c.l.b16 %v761
        %v2044 = vunpack.c.h.b16 %v761
        %v2045 = vunpack.c.l.b16 %v762
        %v2046 = vunpack.c.h.b16 %v762
        %v2047 = vunpack.c.l.b16 %v763
        %v2048 = vunpack.c.h.b16 %v763
        %v2049 = vunpack.c.l.b16 %v764
        %v2050 = vunpack.c.h.b16 %v764
        %v2051 = vunpack.c.l.b16 %v765
        %v2052 = vunpack.c.h.b16 %v765
        %v2053 = vunpack.c.l.b16 %v766
        %v2054 = vunpack.c.h.b16 %v766
        %v2055 = vunpack.c.l.b16 %v767
        %v2056 = vunpack.c.h.b16 %v767
        %v2057 = vunpack.c.l.b16 %v768
        %v2058 = vunpack.c.h.b16 %v768
        %v2059 = vunpack.c.l.b16 %v769
        %v2060 = vunpack.c.h.b16 %v769
        %v2061 = vunpack.c.l.b16 %v770
        %v2062 = vunpack.c.h.b16 %v770
        %v2063 = vunpack.c.l.b16 %v771
        %v2064 = vunpack.c.h.b16 %v771
        %v2065 = vunpack.c.l.b16 %v772
        %v2066 = vunpack.c.h.b16 %v772
        %v2067 = vunpack.c.l.b16 %v773
        %v2068 = vunpack.c.h.b16 %v773
        %v2069 = vunpack.c.l.b16 %v774
        %v2070 = vunpack.c.h.b16 %v774
        %v2071 = vunpack.c.l.b16 %v775
        %v2072 = vunpack.c.h.b16 %v775
        %v2073 = vunpack.c.l.b16 %v776
        %v2074 = vunpack.c.h.b16 %v776
        %v2075 = vunpack.c.l.b16 %v777
        %v2076 = vunpack.c.h.b16 %v777
        %v2077 = vunpack.c.l.b16 %v778
        %v2078 = vunpack.c.h.b16 %v778
        %v2079 = vunpack.c.l.b16 %v779
        %v2080 = vunpack.c.h.b16 %v779
        %v2081 = vunpack.c.l.b16 %v780
        %v2082 = vunpack.c.h.b16 %v780
        %v2083 = vunpack.c.l.b16 %v781
        %v2084 = vunpack.c.h.b16 %v781
        %v2085 = vunpack.c.l.b16 %v782
        %v2086 = vunpack.c.h.b16 %v782
        %v2087 = vunpack.c.l.b16 %v783
        %v2088 = vunpack.c.h.b16 %v783
        %v2089 = vunpack.c.l.b16 %v784
        %v2090 = vunpack.c.h.b16 %v784
        %v2091 = vunpack.c.l.b16 %v785
        %v2092 = vunpack.c.h.b16 %v785
        %v2093 = vunpack.c.l.b16 %v786
        %v2094 = vunpack.c.h.b16 %v786
        %v2095 = vunpack.c.l.b16 %v787
        %v2096 = vunpack.c.h.b16 %v787
        %v2097 = vunpack.c.l.b16 %v788
        %v2098 = vunpack.c.h.b16 %v788
        %v2099 = vunpack.c.l.b16 %v789
        %v2100 = vunpack.c.h.b16 %v789
        %v2101 = vunpack.c.l.b16 %v790
        %v2102 = vunpack.c.h.b16 %v790
        %v2103 = vunpack.c.l.b16 %v791
        %v2104 = vunpack.c.h.b16 %v791
        %v2105 = vunpack.c.l.b16 %v792
        %v2106 = vunpack.c.h.b16 %v792
        %v2107 = vunpack.c.l.b16 %v793
        %v2108 = vunpack.c.h.b16 %v793
        %v2109 = vunpack.c.l.b16 %v794
        %v2110 = vunpack.c.h.b16 %v794
        %v2111 = vunpack.c.l.b16 %v795
        %v2112 = vunpack.c.h.b16 %v795
        %v2113 = vunpack.c.l.b16 %v796
        %v2114 = vunpack.c.h.b16 %v796
        %v2115 = vunpack.c.l.b16 %v797
        %v2116 = vunpack.c.h.b16 %v797
        %v2117 = vunpack.c.l.b16 %v798
        %v2118 = vunpack.c.h.b16 %v798
        %v2119 = vunpack.c.l.b16 %v799
        %v2120 = vunpack.c.h.b16 %v799
        %v2121 = vunpack.c.l.b16 %v800
        %v2122 = vunpack.c.h.b16 %v800
        %v2123 = vunpack.c.l.b16 %v801
        %v2124 = vunpack.c.h.b16 %v801
        %v2125 = vunpack.c.l.b16 %v802
        %v2126 = vunpack.c.h.b16 %v802
        %v2127 = vunpack.c.l.b16 %v803
        %v2128 = vunpack.c.h.b16 %v803
        %v2129 = vunpack.c.l.b16 %v804
        %v2130 = vunpack.c.h.b16 %v804
        %v2131 = vunpack.c.l.b16 %v805
        %v2132 = vunpack.c.h.b16 %v805
        %v2133 = vunpack.c.l.b16 %v806
        %v2134 = vunpack.c.h.b16 %v806
        %v2135 = vunpack.c.l.b16 %v807
        %v2136 = vunpack.c.h.b16 %v807
        %v2137 = vunpack.c.l.b16 %v808
        %v2138 = vunpack.c.h.b16 %v808
        %v2139 = vunpack.c.l.b16 %v809
        %v2140 = vunpack.c.h.b16 %v809
        %v2141 = vunpack.c.l.b16 %v810
        %v2142 = vunpack.c.h.b16 %v810
        %v2143 = vunpack.c.l.b16 %v811
        %v2144 = vunpack.c.h.b16 %v811
        %v2145 = vunpack.c.l.b16 %v812
        %v2146 = vunpack.c.h.b16 %v812
        %v2147 = vunpack.c.l.b16 %v813
        %v2148 = vunpack.c.h.b16 %v813
        %v2149 = vunpack.c.l.b16 %v814
        %v2150 = vunpack.c.h.b16 %v814
        %v2151 = vunpack.c.l.b16 %v815
        %v2152 = vunpack.c.h.b16 %v815
        %v2153 = vunpack.c.l.b16 %v816
        %v2154 = vunpack.c.h.b16 %v816
        %v2155 = vunpack.c.l.b16 %v817
        %v2156 = vunpack.c.h.b16 %v817
        %v2157 = vunpack.c.l.b16 %v818
        %v2158 = vunpack.c.h.b16 %v818
        %v2159 = vunpack.c.l.b16 %v819
        %v2160 = vunpack.c.h.b16 %v819
        %v2161 = vunpack.c.l.b16 %v820
        %v2162 = vunpack.c.h.b16 %v820
        %v2163 = vunpack.c.l.b16 %v821
        %v2164 = vunpack.c.h.b16 %v821
        %v2165 = vunpack.c.l.b16 %v822
        %v2166 = vunpack.c.h.b16 %v822
        %v2167 = vunpack.c.l.b16 %v823
        %v2168 = vunpack.c.h.b16 %v823
        %v2169 = vunpack.c.l.b16 %v824
        %v2170 = vunpack.c.h.b16 %v824
        %v2171 = vunpack.c.l.b16 %v825
        %v2172 = vunpack.c.h.b16 %v825
        %v2173 = vunpack.c.l.b16 %v826
        %v2174 = vunpack.c.h.b16 %v826
        %v2175 = vunpack.c.l.b16 %v827
        %v2176 = vunpack.c.h.b16 %v827
        %v2177 = vunpack.c.l.b16 %v828
        %v2178 = vunpack.c.h.b16 %v828
        %v2179 = vunpack.c.l.b16 %v829
        %v2180 = vunpack.c.h.b16 %v829
        %v2181 = vunpack.c.l.b16 %v830
        %v2182 = vunpack.c.h.b16 %v830
        %v2183 = vunpack.c.l.b16 %v831
        %v2184 = vunpack.c.h.b16 %v831
        %v2185 = vunpack.c.l.b16 %v832
        %v2186 = vunpack.c.h.b16 %v832
        %v2187 = vunpack.c.l.b16 %v833
        %v2188 = vunpack.c.h.b16 %v833
        %v2189 = vunpack.c.l.b16 %v834
        %v2190 = vunpack.c.h.b16 %v834
        %v2191 = vunpack.c.l.b16 %v835
        %v2192 = vunpack.c.h.b16 %v835
        %v2193 = vunpack.c.l.b16 %v836
        %v2194 = vunpack.c.h.b16 %v836
        %v2195 = vunpack.c.l.b16 %v837
        %v2196 = vunpack.c.h.b16 %v837
        %v2197 = vunpack.c.l.b16 %v838
        %v2198 = vunpack.c.h.b16 %v838
        %v2199 = vunpack.c.l.b16 %v839
        %v2200 = vunpack.c.h.b16 %v839
        %v2201 = vunpack.c.l.b16 %v840
        %v2202 = vunpack.c.h.b16 %v840
        %v2203 = vunpack.c.l.b16 %v841
        %v2204 = vunpack.c.h.b16 %v841
        %v2205 = vunpack.c.l.b16 %v842
        %v2206 = vunpack.c.h.b16 %v842
        %v2207 = vpack.c.b16 %v1339, %v1311
        %v2208 = vpack.c.b16 %v1340, %v1312
        %v2209 = vpack.c.b16 %v1341, %v1313
        %v2210 = vpack.c.b16 %v1342, %v1314
        %v2211 = vpack.c.b16 %v1343, %v1315
        %v2212 = vpack.c.b16 %v1344, %v1316
        %v2213 = vpack.c.b16 %v1345, %v1317
        %v2214 = vpack.c.b16 %v1346, %v1318
        %v2215 = vpack.c.b16 %v1347, %v1319
        %v2216 = vpack.c.b16 %v1348, %v1320
        %v2217 = vpack.c.b16 %v1349, %v1321
        %v2218 = vpack.c.b16 %v1350, %v1322
        %v2219 = vpack.c.b16 %v1351, %v1323
        %v2220 = vpack.c.b16 %v1352, %v1324
        %v2221 = vpack.c.b16 %v1353, %v1325
        %v2222 = vpack.c.b16 %v1354, %v1326
        %v2223 = vpack.c.b16 %v1355, %v1327
        %v2224 = vpack.c.b16 %v1356, %v1328
        %v2225 = vpack.c.b16 %v1357, %v1329
        %v2226 = vpack.c.b16 %v1358, %v1330
        %v2227 = vpack.c.b16 %v1359, %v1331
        %v2228 = vpack.c.b16 %v1360, %v1332
        %v2229 = vpack.c.b16 %v1361, %v1333
        %v2230 = vpack.c.b16 %v1362, %v1334
        %v2231 = vpack.c.b16 %v1363, %v1335
        %v2232 = vpack.c.b16 %v1364, %v1336
        %v2233 = vpack.c.b16 %v1365, %v1337
        %v2234 = vpack.c.b16 %v1366, %v1338
        %v2235 = vpack.c.b16 %v1395, %v1367
        %v2236 = vpack.c.b16 %v1396, %v1368
        %v2237 = vpack.c.b16 %v1397, %v1369
        %v2238 = vpack.c.b16 %v1398, %v1370
        %v2239 = vpack.c.b16 %v1399, %v1371
        %v2240 = vpack.c.b16 %v1400, %v1372
        %v2241 = vpack.c.b16 %v1401, %v1373
        %v2242 = vpack.c.b16 %v1402, %v1374
        %v2243 = vpack.c.b16 %v1403, %v1375
        %v2244 = vpack.c.b16 %v1404, %v1376
        %v2245 = vpack.c.b16 %v1405, %v1377
        %v2246 = vpack.c.b16 %v1406, %v1378
        %v2247 = vpack.c.b16 %v1407, %v1379
        %v2248 = vpack.c.b16 %v1408, %v1380
        %v2249 = vpack.c.b16 %v1409, %v1381
        %v2250 = vpack.c.b16 %v1410, %v1382
        %v2251 = vpack.c.b16 %v1411, %v1383
        %v2252 = vpack.c.b16 %v1412, %v1384
        %v2253 = vpack.c.b16 %v1413, %v1385
        %v2254 = vpack.c.b16 %v1414, %v1386
        %v2255 = vpack.c.b16 %v1415, %v1387
        %v2256 = vpack.c.b16 %v1416, %v1388
        %v2257 = vpack.c.b16 %v1417, %v1389
        %v2258 = vpack.c.b16 %v1418, %v1390
        %v2259 = vpack.c.b16 %v1419, %v1391
        %v2260 = vpack.c.b16 %v1420, %v1392
        %v2261 = vpack.c.b16 %v1421, %v1393
        %v2262 = vpack.c.b16 %v1422, %v1394
        %v2263 = vpack.c.b16 %v1451, %v1423
        %v2264 = vpack.c.b16 %v1452, %v1424
        %v2265 = vpack.c.b16 %v1453, %v1425
        %v2266 = vpack.c.b16 %v1454, %v1426
        %v2267 = vpack.c.b16 %v1455, %v1427
        %v2268 = vpack.c.b16 %v1456, %v1428
        %v2269 = vpack.c.b16 %v1457, %v1429
        %v2270 = vpack.c.b16 %v1458, %v1430
        %v2271 = vpack.c.b16 %v1459, %v1431
        %v2272 = vpack.c.b16 %v1460, %v1432
        %v2273 = vpack.c.b16 %v1461, %v1433
        %v2274 = vpack.c.b16 %v1462, %v1434
        %v2275 = vpack.c.b16 %v1463, %v1435
        %v2276 = vpack.c.b16 %v1464, %v1436
        %v2277 = vpack.c.b16 %v1465, %v1437
        %v2278 = vpack.c.b16 %v1466, %v1438
        %v2279 = vpack.c.b16 %v1467, %v1439
        %v2280 = vpack.c.b16 %v1468, %v1440
        %v2281 = vpack.c.b16 %v1469, %v1441
        %v2282 = vpack.c.b16 %v1470, %v1442
        %v2283 = vpack.c.b16 %v1471, %v1443
        %v2284 = vpack.c.b16 %v1472, %v1444
        %v2285 = vpack.c.b16 %v1473, %v1445
        %v2286 = vpack.c.b16 %v1474, %v1446
        %v2287 = vpack.c.b16 %v1475, %v1447
        %v2288 = vpack.c.b16 %v1476, %v1448
        %v2289 = vpack.c.b16 %v1477, %v1449
        %v2290 = vpack.c.b16 %v1478, %v1450
        %v2291 = vpack.c.b16 %v1507, %v1479
        %v2292 = vpack.c.b16 %v1508, %v1480
        %v2293 = vpack.c.b16 %v1509, %v1481
        %v2294 = vpack.c.b16 %v1510, %v1482
        %v2295 = vpack.c.b16 %v1511, %v1483
        %v2296 = vpack.c.b16 %v1512, %v1484
        %v2297 = vpack.c.b16 %v1513, %v1485
        %v2298 = vpack.c.b16 %v1514, %v1486
        %v2299 = vpack.c.b16 %v1515, %v1487
        %v2300 = vpack.c.b16 %v1516, %v1488
        %v2301 = vpack.c.b16 %v1517, %v1489
        %v2302 = vpack.c.b16 %v1518, %v1490
        %v2303 = vpack.c.b16 %v1519, %v1491
        %v2304 = vpack.c.b16 %v1520, %v1492
        %v2305 = vpack.c.b16 %v1521, %v1493
        %v2306 = vpack.c.b16 %v1522, %v1494
        %v2307 = vpack.c.b16 %v1523, %v1495
        %v2308 = vpack.c.b16 %v1524, %v1496
        %v2309 = vpack.c.b16 %v1525, %v1497
        %v2310 = vpack.c.b16 %v1526, %v1498
        %v2311 = vpack.c.b16 %v1527, %v1499
        %v2312 = vpack.c.b16 %v1528, %v1500
        %v2313 = vpack.c.b16 %v1529, %v1501
        %v2314 = vpack.c.b16 %v1530, %v1502
        %v2315 = vpack.c.b16 %v1531, %v1503
        %v2316 = vpack.c.b16 %v1532, %v1504
        %v2317 = vpack.c.b16 %v1533, %v1505
        %v2318 = vpack.c.b16 %v1534, %v1506
        %v2319 = vpack.c.b16 %v1563, %v1535
        %v2320 = vpack.c.b16 %v1564, %v1536
        %v2321 = vpack.c.b16 %v1565, %v1537
        %v2322 = vpack.c.b16 %v1566, %v1538
        %v2323 = vpack.c.b16 %v1567, %v1539
        %v2324 = vpack.c.b16 %v1568, %v1540
        %v2325 = vpack.c.b16 %v1569, %v1541
        %v2326 = vpack.c.b16 %v1570, %v1542
        %v2327 = vpack.c.b16 %v1571, %v1543
        %v2328 = vpack.c.b16 %v1572, %v1544
        %v2329 = vpack.c.b16 %v1573, %v1545
        %v2330 = vpack.c.b16 %v1574, %v1546
        %v2331 = vpack.c.b16 %v1575, %v1547
        %v2332 = vpack.c.b16 %v1576, %v1548
        %v2333 = vpack.c.b16 %v1577, %v1549
        %v2334 = vpack.c.b16 %v1578, %v1550
        %v2335 = vpack.c.b16 %v1579, %v1551
        %v2336 = vpack.c.b16 %v1580, %v1552
        %v2337 = vpack.c.b16 %v1581, %v1553
        %v2338 = vpack.c.b16 %v1582, %v1554
        %v2339 = vpack.c.b16 %v1583, %v1555
        %v2340 = vpack.c.b16 %v1584, %v1556
        %v2341 = vpack.c.b16 %v1585, %v1557
        %v2342 = vpack.c.b16 %v1586, %v1558
        %v2343 = vpack.c.b16 %v1587, %v1559
        %v2344 = vpack.c.b16 %v1588, %v1560
        %v2345 = vpack.c.b16 %v1589, %v1561
        %v2346 = vpack.c.b16 %v1590, %v1562
        %v2347 = vpack.c.b16 %v1619, %v1591
        %v2348 = vpack.c.b16 %v1620, %v1592
        %v2349 = vpack.c.b16 %v1621, %v1593
        %v2350 = vpack.c.b16 %v1622, %v1594
        %v2351 = vpack.c.b16 %v1623, %v1595
        %v2352 = vpack.c.b16 %v1624, %v1596
        %v2353 = vpack.c.b16 %v1625, %v1597
        %v2354 = vpack.c.b16 %v1626, %v1598
        %v2355 = vpack.c.b16 %v1627, %v1599
        %v2356 = vpack.c.b16 %v1628, %v1600
        %v2357 = vpack.c.b16 %v1629, %v1601
        %v2358 = vpack.c.b16 %v1630, %v1602
        %v2359 = vpack.c.b16 %v1631, %v1603
        %v2360 = vpack.c.b16 %v1632, %v1604
        %v2361 = vpack.c.b16 %v1633, %v1605
        %v2362 = vpack.c.b16 %v1634, %v1606
        %v2363 = vpack.c.b16 %v1635, %v1607
        %v2364 = vpack.c.b16 %v1636, %v1608
        %v2365 = vpack.c.b16 %v1637, %v1609
        %v2366 = vpack.c.b16 %v1638, %v1610
        %v2367 = vpack.c.b16 %v1639, %v1611
        %v2368 = vpack.c.b16 %v1640, %v1612
        %v2369 = vpack.c.b16 %v1641, %v1613
        %v2370 = vpack.c.b16 %v1642, %v1614
        %v2371 = vpack.c.b16 %v1643, %v1615
        %v2372 = vpack.c.b16 %v1644, %v1616
        %v2373 = vpack.c.b16 %v1645, %v1617
        %v2374 = vpack.c.b16 %v1646, %v1618
        %v2375 = vpack.c.b16 %v1675, %v1647
        %v2376 = vpack.c.b16 %v1676, %v1648
        %v2377 = vpack.c.b16 %v1677, %v1649
        %v2378 = vpack.c.b16 %v1678, %v1650
        %v2379 = vpack.c.b16 %v1679, %v1651
        %v2380 = vpack.c.b16 %v1680, %v1652
        %v2381 = vpack.c.b16 %v1681, %v1653
        %v2382 = vpack.c.b16 %v1682, %v1654
        %v2383 = vpack.c.b16 %v1683, %v1655
        %v2384 = vpack.c.b16 %v1684, %v1656
        %v2385 = vpack.c.b16 %v1685, %v1657
        %v2386 = vpack.c.b16 %v1686, %v1658
        %v2387 = vpack.c.b16 %v1687, %v1659
        %v2388 = vpack.c.b16 %v1688, %v1660
        %v2389 = vpack.c.b16 %v1689, %v1661
        %v2390 = vpack.c.b16 %v1690, %v1662
        %v2391 = vpack.c.b16 %v1691, %v1663
        %v2392 = vpack.c.b16 %v1692, %v1664
        %v2393 = vpack.c.b16 %v1693, %v1665
        %v2394 = vpack.c.b16 %v1694, %v1666
        %v2395 = vpack.c.b16 %v1695, %v1667
        %v2396 = vpack.c.b16 %v1696, %v1668
        %v2397 = vpack.c.b16 %v1697, %v1669
        %v2398 = vpack.c.b16 %v1698, %v1670
        %v2399 = vpack.c.b16 %v1699, %v1671
        %v2400 = vpack.c.b16 %v1700, %v1672
        %v2401 = vpack.c.b16 %v1701, %v1673
        %v2402 = vpack.c.b16 %v1702, %v1674
        %v2403 = vpack.c.b16 %v1731, %v1703
        %v2404 = vpack.c.b16 %v1732, %v1704
        %v2405 = vpack.c.b16 %v1733, %v1705
        %v2406 = vpack.c.b16 %v1734, %v1706
        %v2407 = vpack.c.b16 %v1735, %v1707
        %v2408 = vpack.c.b16 %v1736, %v1708
        %v2409 = vpack.c.b16 %v1737, %v1709
        %v2410 = vpack.c.b16 %v1738, %v1710
        %v2411 = vpack.c.b16 %v1739, %v1711
        %v2412 = vpack.c.b16 %v1740, %v1712
        %v2413 = vpack.c.b16 %v1741, %v1713
        %v2414 = vpack.c.b16 %v1742, %v1714
        %v2415 = vpack.c.b16 %v1743, %v1715
        %v2416 = vpack.c.b16 %v1744, %v1716
        %v2417 = vpack.c.b16 %v1745, %v1717
        %v2418 = vpack.c.b16 %v1746, %v1718
        %v2419 = vpack.c.b16 %v1747, %v1719
        %v2420 = vpack.c.b16 %v1748, %v1720
        %v2421 = vpack.c.b16 %v1749, %v1721
        %v2422 = vpack.c.b16 %v1750, %v1722
        %v2423 = vpack.c.b16 %v1751, %v1723
        %v2424 = vpack.c.b16 %v1752, %v1724
        %v2425 = vpack.c.b16 %v1753, %v1725
        %v2426 = vpack.c.b16 %v1754, %v1726
        %v2427 = vpack.c.b16 %v1755, %v1727
        %v2428 = vpack.c.b16 %v1756, %v1728
        %v2429 = vpack.c.b16 %v1757, %v1729
        %v2430 = vpack.c.b16 %v1758, %v1730
        %v2431 = vpack.c.b16 %v1787, %v1759
        %v2432 = vpack.c.b16 %v1788, %v1760
        %v2433 = vpack.c.b16 %v1789, %v1761
        %v2434 = vpack.c.b16 %v1790, %v1762
        %v2435 = vpack.c.b16 %v1791, %v1763
        %v2436 = vpack.c.b16 %v1792, %v1764
        %v2437 = vpack.c.b16 %v1793, %v1765
        %v2438 = vpack.c.b16 %v1794, %v1766
        %v2439 = vpack.c.b16 %v1795, %v1767
        %v2440 = vpack.c.b16 %v1796, %v1768
        %v2441 = vpack.c.b16 %v1797, %v1769
        %v2442 = vpack.c.b16 %v1798, %v1770
        %v2443 = vpack.c.b16 %v1799, %v1771
        %v2444 = vpack.c.b16 %v1800, %v1772
        %v2445 = vpack.c.b16 %v1801, %v1773
        %v2446 = vpack.c.b16 %v1802, %v1774
        %v2447 = vpack.c.b16 %v1803, %v1775
        %v2448 = vpack.c.b16 %v1804, %v1776
        %v2449 = vpack.c.b16 %v1805, %v1777
        %v2450 = vpack.c.b16 %v1806, %v1778
        %v2451 = vpack.c.b16 %v1807, %v1779
        %v2452 = vpack.c.b16 %v1808, %v1780
        %v2453 = vpack.c.b16 %v1809, %v1781
        %v2454 = vpack.c.b16 %v1810, %v1782
        %v2455 = vpack.c.b16 %v1811, %v1783
        %v2456 = vpack.c.b16 %v1812, %v1784
        %v2457 = vpack.c.b16 %v1813, %v1785
        %v2458 = vpack.c.b16 %v1814, %v1786
        %v2459 = vpack.c.b16 %v1843, %v1815
        %v2460 = vpack.c.b16 %v1844, %v1816
        %v2461 = vpack.c.b16 %v1845, %v1817
        %v2462 = vpack.c.b16 %v1846, %v1818
        %v2463 = vpack.c.b16 %v1847, %v1819
        %v2464 = vpack.c.b16 %v1848, %v1820
        %v2465 = vpack.c.b16 %v1849, %v1821
        %v2466 = vpack.c.b16 %v1850, %v1822
        %v2467 = vpack.c.b16 %v1851, %v1823
        %v2468 = vpack.c.b16 %v1852, %v1824
        %v2469 = vpack.c.b16 %v1853, %v1825
        %v2470 = vpack.c.b16 %v1854, %v1826
        %v2471 = vpack.c.b16 %v1855, %v1827
        %v2472 = vpack.c.b16 %v1856, %v1828
        %v2473 = vpack.c.b16 %v1857, %v1829
        %v2474 = vpack.c.b16 %v1858, %v1830
        %v2475 = vpack.c.b16 %v1859, %v1831
        %v2476 = vpack.c.b16 %v1860, %v1832
        %v2477 = vpack.c.b16 %v1861, %v1833
        %v2478 = vpack.c.b16 %v1862, %v1834
        %v2479 = vpack.c.b16 %v1863, %v1835
        %v2480 = vpack.c.b16 %v1864, %v1836
        %v2481 = vpack.c.b16 %v1865, %v1837
        %v2482 = vpack.c.b16 %v1866, %v1838
        %v2483 = vpack.c.b16 %v1867, %v1839
        %v2484 = vpack.c.b16 %v1868, %v1840
        %v2485 = vpack.c.b16 %v1869, %v1841
        %v2486 = vpack.c.b16 %v1870, %v1842
        %v2487 = vpack.c.b16 %v1899, %v1871
        %v2488 = vpack.c.b16 %v1900, %v1872
        %v2489 = vpack.c.b16 %v1901, %v1873
        %v2490 = vpack.c.b16 %v1902, %v1874
        %v2491 = vpack.c.b16 %v1903, %v1875
        %v2492 = vpack.c.b16 %v1904, %v1876
        %v2493 = vpack.c.b16 %v1905, %v1877
        %v2494 = vpack.c.b16 %v1906, %v1878
        %v2495 = vpack.c.b16 %v1907, %v1879
        %v2496 = vpack.c.b16 %v1908, %v1880
        %v2497 = vpack.c.b16 %v1909, %v1881
        %v2498 = vpack.c.b16 %v1910, %v1882
        %v2499 = vpack.c.b16 %v1911, %v1883
        %v2500 = vpack.c.b16 %v1912, %v1884
        %v2501 = vpack.c.b16 %v1913, %v1885
        %v2502 = vpack.c.b16 %v1914, %v1886
        %v2503 = vpack.c.b16 %v1915, %v1887
        %v2504 = vpack.c.b16 %v1916, %v1888
        %v2505 = vpack.c.b16 %v1917, %v1889
        %v2506 = vpack.c.b16 %v1918, %v1890
        %v2507 = vpack.c.b16 %v1919, %v1891
        %v2508 = vpack.c.b16 %v1920, %v1892
        %v2509 = vpack.c.b16 %v1921, %v1893
        %v2510 = vpack.c.b16 %v1922, %v1894
        %v2511 = vpack.c.b16 %v1923, %v1895
        %v2512 = vpack.c.b16 %v1924, %v1896
        %v2513 = vpack.c.b16 %v1925, %v1897
        %v2514 = vpack.c.b16 %v1926, %v1898
        %v2515 = vpack.c.b16 %v1955, %v1927
        %v2516 = vpack.c.b16 %v1956, %v1928
        %v2517 = vpack.c.b16 %v1957, %v1929
        %v2518 = vpack.c.b16 %v1958, %v1930
        %v2519 = vpack.c.b16 %v1959, %v1931
        %v2520 = vpack.c.b16 %v1960, %v1932
        %v2521 = vpack.c.b16 %v1961, %v1933
        %v2522 = vpack.c.b16 %v1962, %v1934
        %v2523 = vpack.c.b16 %v1963, %v1935
        %v2524 = vpack.c.b16 %v1964, %v1936
        %v2525 = vpack.c.b16 %v1965, %v1937
        %v2526 = vpack.c.b16 %v1966, %v1938
        %v2527 = vpack.c.b16 %v1967, %v1939
        %v2528 = vpack.c.b16 %v1968, %v1940
        %v2529 = vpack.c.b16 %v1969, %v1941
        %v2530 = vpack.c.b16 %v1970, %v1942
        %v2531 = vpack.c.b16 %v1971, %v1943
        %v2532 = vpack.c.b16 %v1972, %v1944
        %v2533 = vpack.c.b16 %v1973, %v1945
        %v2534 = vpack.c.b16 %v1974, %v1946
        %v2535 = vpack.c.b16 %v1975, %v1947
        %v2536 = vpack.c.b16 %v1976, %v1948
        %v2537 = vpack.c.b16 %v1977, %v1949
        %v2538 = vpack.c.b16 %v1978, %v1950
        %v2539 = vpack.c.b16 %v1979, %v1951
        %v2540 = vpack.c.b16 %v1980, %v1952
        %v2541 = vpack.c.b16 %v1981, %v1953
        %v2542 = vpack.c.b16 %v1982, %v1954
        %v2543 = vpack.c.b16 %v2011, %v1983
        %v2544 = vpack.c.b16 %v2012, %v1984
        %v2545 = vpack.c.b16 %v2013, %v1985
        %v2546 = vpack.c.b16 %v2014, %v1986
        %v2547 = vpack.c.b16 %v2015, %v1987
        %v2548 = vpack.c.b16 %v2016, %v1988
        %v2549 = vpack.c.b16 %v2017, %v1989
        %v2550 = vpack.c.b16 %v2018, %v1990
        %v2551 = vpack.c.b16 %v2019, %v1991
        %v2552 = vpack.c.b16 %v2020, %v1992
        %v2553 = vpack.c.b16 %v2021, %v1993
        %v2554 = vpack.c.b16 %v2022, %v1994
        %v2555 = vpack.c.b16 %v2023, %v1995
        %v2556 = vpack.c.b16 %v2024, %v1996
        %v2557 = vpack.c.b16 %v2025, %v1997
        %v2558 = vpack.c.b16 %v2026, %v1998
        %v2559 = vpack.c.b16 %v2027, %v1999
        %v2560 = vpack.c.b16 %v2028, %v2000
        %v2561 = vpack.c.b16 %v2029, %v2001
        %v2562 = vpack.c.b16 %v2030, %v2002
        %v2563 = vpack.c.b16 %v2031, %v2003
        %v2564 = vpack.c.b16 %v2032, %v2004
        %v2565 = vpack.c.b16 %v2033, %v2005
        %v2566 = vpack.c.b16 %v2034, %v2006
        %v2567 = vpack.c.b16 %v2035, %v2007
        %v2568 = vpack.c.b16 %v2036, %v2008
        %v2569 = vpack.c.b16 %v2037, %v2009
        %v2570 = vpack.c.b16 %v2038, %v2010
        %v2571 = vpack.c.b16 %v2067, %v2039
        %v2572 = vpack.c.b16 %v2068, %v2040
        %v2573 = vpack.c.b16 %v2069, %v2041
        %v2574 = vpack.c.b16 %v2070, %v2042
        %v2575 = vpack.c.b16 %v2071, %v2043
        %v2576 = vpack.c.b16 %v2072, %v2044
        %v2577 = vpack.c.b16 %v2073, %v2045
        %v2578 = vpack.c.b16 %v2074, %v2046
        %v2579 = vpack.c.b16 %v2075, %v2047
        %v2580 = vpack.c.b16 %v2076, %v2048
        %v2581 = vpack.c.b16 %v2077, %v2049
        %v2582 = vpack.c.b16 %v2078, %v2050
        %v2583 = vpack.c.b16 %v2079, %v2051
        %v2584 = vpack.c.b16 %v2080, %v2052
        %v2585 = vpack.c.b16 %v2081, %v2053
        %v2586 = vpack.c.b16 %v2082, %v2054
        %v2587 = vpack.c.b16 %v2083, %v2055
        %v2588 = vpack.c.b16 %v2084, %v2056
        %v2589 = vpack.c.b16 %v2085, %v2057
        %v2590 = vpack.c.b16 %v2086, %v2058
        %v2591 = vpack.c.b16 %v2087, %v2059
        %v2592 = vpack.c.b16 %v2088, %v2060
        %v2593 = vpack.c.b16 %v2089, %v2061
        %v2594 = vpack.c.b16 %v2090, %v2062
        %v2595 = vpack.c.b16 %v2091, %v2063
        %v2596 = vpack.c.b16 %v2092, %v2064
        %v2597 = vpack.c.b16 %v2093, %v2065
        %v2598 = vpack.c.b16 %v2094, %v2066
        %v2599 = vpack.c.b16 %v2123, %v2095
        %v2600 = vpack.c.b16 %v2124, %v2096
        %v2601 = vpack.c.b16 %v2125, %v2097
        %v2602 = vpack.c.b16 %v2126, %v2098
        %v2603 = vpack.c.b16 %v2127, %v2099
        %v2604 = vpack.c.b16 %v2128, %v2100
        %v2605 = vpack.c.b16 %v2129, %v2101
        %v2606 = vpack.c.b16 %v2130, %v2102
        %v2607 = vpack.c.b16 %v2131, %v2103
        %v2608 = vpack.c.b16 %v2132, %v2104
        %v2609 = vpack.c.b16 %v2133, %v2105
        %v2610 = vpack.c.b16 %v2134, %v2106
        %v2611 = vpack.c.b16 %v2135, %v2107
        %v2612 = vpack.c.b16 %v2136, %v2108
        %v2613 = vpack.c.b16 %v2137, %v2109
        %v2614 = vpack.c.b16 %v2138, %v2110
        %v2615 = vpack.c.b16 %v2139, %v2111
        %v2616 = vpack.c.b16 %v2140, %v2112
        %v2617 = vpack.c.b16 %v2141, %v2113
        %v2618 = vpack.c.b16 %v2142, %v2114
        %v2619 = vpack.c.b16 %v2143, %v2115
        %v2620 = vpack.c.b16 %v2144, %v2116
        %v2621 = vpack.c.b16 %v2145, %v2117
        %v2622 = vpack.c.b16 %v2146, %v2118
        %v2623 = vpack.c.b16 %v2147, %v2119
        %v2624 = vpack.c.b16 %v2148, %v2120
        %v2625 = vpack.c.b16 %v2149, %v2121
        %v2626 = vpack.c.b16 %v2150, %v2122
        %v2627 = vpack.c.b16 %v2179, %v2151
        %v2628 = vpack.c.b16 %v2180, %v2152
        %v2629 = vpack.c.b16 %v2181, %v2153
        %v2630 = vpack.c.b16 %v2182, %v2154
        %v2631 = vpack.c.b16 %v2183, %v2155
        %v2632 = vpack.c.b16 %v2184, %v2156
        %v2633 = vpack.c.b16 %v2185, %v2157
        %v2634 = vpack.c.b16 %v2186, %v2158
        %v2635 = vpack.c.b16 %v2187, %v2159
        %v2636 = vpack.c.b16 %v2188, %v2160
        %v2637 = vpack.c.b16 %v2189, %v2161
        %v2638 = vpack.c.b16 %v2190, %v2162
        %v2639 = vpack.c.b16 %v2191, %v2163
        %v2640 = vpack.c.b16 %v2192, %v2164
        %v2641 = vpack.c.b16 %v2193, %v2165
        %v2642 = vpack.c.b16 %v2194, %v2166
        %v2643 = vpack.c.b16 %v2195, %v2167
        %v2644 = vpack.c.b16 %v2196, %v2168
        %v2645 = vpack.c.b16 %v2197, %v2169
        %v2646 = vpack.c.b16 %v2198, %v2170
        %v2647 = vpack.c.b16 %v2199, %v2171
        %v2648 = vpack.c.b16 %v2200, %v2172
        %v2649 = vpack.c.b16 %v2201, %v2173
        %v2650 = vpack.c.b16 %v2202, %v2174
        %v2651 = vpack.c.b16 %v2203, %v2175
        %v2652 = vpack.c.b16 %v2204, %v2176
        %v2653 = vpack.c.b16 %v2205, %v2177
        %v2654 = vpack.c.b16 %v2206, %v2178
        %3103 = vmatprep.subr.bf16.mxu0 %v2208
        %3104 = vmatpush1.bf16.msra.mxu0 %v2207
        %3105 = vmatprep.subr.bf16.mxu0 %v2236
        %3106 = vmatpush1.bf16.msra.mxu0 %v2235
        %3107 = vmatprep.subr.bf16.mxu0 %v2264
        %3108 = vmatpush1.bf16.msra.mxu0 %v2263
        %3109 = vmatprep.subr.bf16.mxu0 %v2292
        %3110 = vmatpush1.bf16.msra.mxu0 %v2291
        %3111 = vmatprep.subr.bf16.mxu0 %v2320
        %3112 = vmatpush1.bf16.msra.mxu0 %v2319
        %3113 = vmatprep.subr.bf16.mxu0 %v2348
        %3114 = vmatpush1.bf16.msra.mxu0 %v2347
        %3115 = vmatprep.subr.bf16.mxu0 %v2376
        %3116 = vmatpush1.bf16.msra.mxu0 %v2375
        %3117 = vmatprep.subr.bf16.mxu0 %v2404
        %3118 = vmatpush1.bf16.msra.mxu0 %v2403
        %3119 = vmatprep.subr.bf16.mxu0 %v2432
        %3120 = vmatpush1.bf16.msra.mxu0 %v2431
        %3121 = vmatprep.subr.bf16.mxu0 %v2460
        %3122 = vmatpush1.bf16.msra.mxu0 %v2459
        %3123 = vmatprep.subr.bf16.mxu0 %v2488
        %3124 = vmatpush1.bf16.msra.mxu0 %v2487
        %3125 = vmatprep.subr.bf16.mxu0 %v2516
        %3126 = vmatpush1.bf16.msra.mxu0 %v2515
        %3127 = vmatprep.subr.bf16.mxu0 %v2544
        %3128 = vmatpush1.bf16.msra.mxu0 %v2543
        %3129 = vmatprep.subr.bf16.mxu0 %v2572
        %3130 = vmatpush1.bf16.msra.mxu0 %v2571
        %3131 = vmatprep.subr.bf16.mxu0 %v2600
        %3132 = vmatpush1.bf16.msra.mxu0 %v2599
        %3133 = vmatprep.subr.bf16.mxu0 %v2628
        %3134 = vmatpush1.bf16.msra.mxu0 %v2627
        %3135 = vmatprep.mubr.bf16.mxu0 %v856
        %3136 = vmatmul.mubr.bf16.gmra.mrb[0].mxu0 %v855
        %v3137 = vpop.f32.mrb[0].mxu0
        %v3138 = vadd.f32 0.0, %v3137
        %v3139 = vpop.f32.mrb[0].mxu0
        %v3140 = vadd.f32 0.0, %v3139
        %v3141 = vpop.f32.mrb[0].mxu0
        %v3142 = vadd.f32 0.0, %v3141
        %v3143 = vpop.f32.mrb[0].mxu0
        %v3144 = vadd.f32 0.0, %v3143
        %3145 = vmatprep.mubr.bf16.mxu0 %v858
        %3146 = vmatmul.mubr.bf16.gmra.mrb[0].mxu0 %v857
        %v3147 = vpop.f32.mrb[0].mxu0
        %v3148 = vadd.f32 0.0, %v3147
        %v3149 = vpop.f32.mrb[0].mxu0
        %v3150 = vadd.f32 0.0, %v3149
        %v3151 = vpop.f32.mrb[0].mxu0
        %v3152 = vadd.f32 0.0, %v3151
        %v3153 = vpop.f32.mrb[0].mxu0
        %v3154 = vadd.f32 0.0, %v3153
        %3155 = vdwg.mxu0
        %3156 = vmatprep.subr.bf16.mxu0 %v2210
        %3157 = vmatpush1.bf16.msra.mxu0 %v2209
        %3158 = vmatprep.subr.bf16.mxu0 %v2238
        %3159 = vmatpush1.bf16.msra.mxu0 %v2237
        %3160 = vmatprep.subr.bf16.mxu0 %v2266
        %3161 = vmatpush1.bf16.msra.mxu0 %v2265
        %3162 = vmatprep.subr.bf16.mxu0 %v2294
        %3163 = vmatpush1.bf16.msra.mxu0 %v2293
        %3164 = vmatprep.subr.bf16.mxu0 %v2322
        %3165 = vmatpush1.bf16.msra.mxu0 %v2321
        %3166 = vmatprep.subr.bf16.mxu0 %v2350
        %3167 = vmatpush1.bf16.msra.mxu0 %v2349
        %3168 = vmatprep.subr.bf16.mxu0 %v2378
        %3169 = vmatpush1.bf16.msra.mxu0 %v2377
        %3170 = vmatprep.subr.bf16.mxu0 %v2406
        %3171 = vmatpush1.bf16.msra.mxu0 %v2405
        %3172 = vmatprep.subr.bf16.mxu0 %v2434
        %3173 = vmatpush1.bf16.msra.mxu0 %v2433
        %3174 = vmatprep.subr.bf16.mxu0 %v2462
        %3175 = vmatpush1.bf16.msra.mxu0 %v2461
        %3176 = vmatprep.subr.bf16.mxu0 %v2490
        %3177 = vmatpush1.bf16.msra.mxu0 %v2489
        %3178 = vmatprep.subr.bf16.mxu0 %v2518
        %3179 = vmatpush1.bf16.msra.mxu0 %v2517
        %3180 = vmatprep.subr.bf16.mxu0 %v2546
        %3181 = vmatpush1.bf16.msra.mxu0 %v2545
        %3182 = vmatprep.subr.bf16.mxu0 %v2574
        %3183 = vmatpush1.bf16.msra.mxu0 %v2573
        %3184 = vmatprep.subr.bf16.mxu0 %v2602
        %3185 = vmatpush1.bf16.msra.mxu0 %v2601
        %3186 = vmatprep.subr.bf16.mxu0 %v2630
        %3187 = vmatpush1.bf16.msra.mxu0 %v2629
        %3188 = vmatprep.mubr.bf16.mxu0 %v856
        %3189 = vmatmul.mubr.bf16.gmra.mrb[0].mxu0 %v855
        %v3190 = vpop.f32.mrb[0].mxu0
        %v3191 = vadd.f32 0.0, %v3190
        %v3192 = vpop.f32.mrb[0].mxu0
        %v3193 = vadd.f32 0.0, %v3192
        %v3194 = vpop.f32.mrb[0].mxu0
        %v3195 = vadd.f32 0.0, %v3194
        %v3196 = vpop.f32.mrb[0].mxu0
        %v3197 = vadd.f32 0.0, %v3196
        %3198 = vmatprep.mubr.bf16.mxu0 %v858
        %3199 = vmatmul.mubr.bf16.gmra.mrb[0].mxu0 %v857
        %v3200 = vpop.f32.mrb[0].mxu0
        %v3201 = vadd.f32 0.0, %v3200
        %v3202 = vpop.f32.mrb[0].mxu0
        %v3203 = vadd.f32 0.0, %v3202
        %v3204 = vpop.f32.mrb[0].mxu0
        %v3205 = vadd.f32 0.0, %v3204
        %v3206 = vpop.f32.mrb[0].mxu0
        %v3207 = vadd.f32 0.0, %v3206
        %3208 = vdwg.mxu0
        %3209 = vmatprep.subr.bf16.mxu0 %v2212
        %3210 = vmatpush1.bf16.msra.mxu0 %v2211
        %3211 = vmatprep.subr.bf16.mxu0 %v2240
        %3212 = vmatpush1.bf16.msra.mxu0 %v2239
        %3213 = vmatprep.subr.bf16.mxu0 %v2268
        %3214 = vmatpush1.bf16.msra.mxu0 %v2267
        %3215 = vmatprep.subr.bf16.mxu0 %v2296
        %3216 = vmatpush1.bf16.msra.mxu0 %v2295
        %3217 = vmatprep.subr.bf16.mxu0 %v2324
        %3218 = vmatpush1.bf16.msra.mxu0 %v2323
        %3219 = vmatprep.subr.bf16.mxu0 %v2352
        %3220 = vmatpush1.bf16.msra.mxu0 %v2351
        %3221 = vmatprep.subr.bf16.mxu0 %v2380
        %3222 = vmatpush1.bf16.msra.mxu0 %v2379
        %3223 = vmatprep.subr.bf16.mxu0 %v2408
        %3224 = vmatpush1.bf16.msra.mxu0 %v2407
        %3225 = vmatprep.subr.bf16.mxu0 %v2436
        %3226 = vmatpush1.bf16.msra.mxu0 %v2435
        %3227 = vmatprep.subr.bf16.mxu0 %v2464
        %3228 = vmatpush1.bf16.msra.mxu0 %v2463
        %3229 = vmatprep.subr.bf16.mxu0 %v2492
        %3230 = vmatpush1.bf16.msra.mxu0 %v2491
        %3231 = vmatprep.subr.bf16.mxu0 %v2520
        %3232 = vmatpush1.bf16.msra.mxu0 %v2519
        %3233 = vmatprep.subr.bf16.mxu0 %v2548
        %3234 = vmatpush1.bf16.msra.mxu0 %v2547
        %3235 = vmatprep.subr.bf16.mxu0 %v2576
        %3236 = vmatpush1.bf16.msra.mxu0 %v2575
        %3237 = vmatprep.subr.bf16.mxu0 %v2604
        %3238 = vmatpush1.bf16.msra.mxu0 %v2603
        %3239 = vmatprep.subr.bf16.mxu0 %v2632
        %3240 = vmatpush1.bf16.msra.mxu0 %v2631
        %3241 = vmatprep.mubr.bf16.mxu0 %v856
        %3242 = vmatmul.mubr.bf16.gmra.mrb[0].mxu0 %v855
        %v3243 = vpop.f32.mrb[0].mxu0
        %v3244 = vadd.f32 0.0, %v3243
        %v3245 = vpop.f32.mrb[0].mxu0
        %v3246 = vadd.f32 0.0, %v3245
        %v3247 = vpop.f32.mrb[0].mxu0
        %v3248 = vadd.f32 0.0, %v3247
        %v3249 = vpop.f32.mrb[0].mxu0
        %v3250 = vadd.f32 0.0, %v3249
        %3251 = vmatprep.mubr.bf16.mxu0 %v858
        %3252 = vmatmul.mubr.bf16.gmra.mrb[0].mxu0 %v857
        %v3253 = vpop.f32.mrb[0].mxu0
        %v3254 = vadd.f32 0.0, %v3253
        %v3255 = vpop.f32.mrb[0].mxu0
        %v3256 = vadd.f32 0.0, %v3255
        %v3257 = vpop.f32.mrb[0].mxu0
        %v3258 = vadd.f32 0.0, %v3257
        %v3259 = vpop.f32.mrb[0].mxu0
        %v3260 = vadd.f32 0.0, %v3259
        %3261 = vdwg.mxu0
        %3262 = vmatprep.subr.bf16.mxu0 %v2214
        %3263 = vmatpush1.bf16.msra.mxu0 %v2213
        %3264 = vmatprep.subr.bf16.mxu0 %v2242
        %3265 = vmatpush1.bf16.msra.mxu0 %v2241
        %3266 = vmatprep.subr.bf16.mxu0 %v2270
        %3267 = vmatpush1.bf16.msra.mxu0 %v2269
        %3268 = vmatprep.subr.bf16.mxu0 %v2298
        %3269 = vmatpush1.bf16.msra.mxu0 %v2297
        %3270 = vmatprep.subr.bf16.mxu0 %v2326
        %3271 = vmatpush1.bf16.msra.mxu0 %v2325
        %3272 = vmatprep.subr.bf16.mxu0 %v2354
        %3273 = vmatpush1.bf16.msra.mxu0 %v2353
        %3274 = vmatprep.subr.bf16.mxu0 %v2382
        %3275 = vmatpush1.bf16.msra.mxu0 %v2381
        %3276 = vmatprep.subr.bf16.mxu0 %v2410
        %3277 = vmatpush1.bf16.msra.mxu0 %v2409
        %3278 = vmatprep.subr.bf16.mxu0 %v2438
        %3279 = vmatpush1.bf16.msra.mxu0 %v2437
        %3280 = vmatprep.subr.bf16.mxu0 %v2466
        %3281 = vmatpush1.bf16.msra.mxu0 %v2465
        %3282 = vmatprep.subr.bf16.mxu0 %v2494
        %3283 = vmatpush1.bf16.msra.mxu0 %v2493
        %3284 = vmatprep.subr.bf16.mxu0 %v2522
        %3285 = vmatpush1.bf16.msra.mxu0 %v2521
        %3286 = vmatprep.subr.bf16.mxu0 %v2550
        %3287 = vmatpush1.bf16.msra.mxu0 %v2549
        %3288 = vmatprep.subr.bf16.mxu0 %v2578
        %3289 = vmatpush1.bf16.msra.mxu0 %v2577
        %3290 = vmatprep.subr.bf16.mxu0 %v2606
        %3291 = vmatpush1.bf16.msra.mxu0 %v2605
        %3292 = vmatprep.subr.bf16.mxu0 %v2634
        %3293 = vmatpush1.bf16.msra.mxu0 %v2633
        %3294 = vmatprep.mubr.bf16.mxu0 %v856
        %3295 = vmatmul.mubr.bf16.gmra.mrb[0].mxu0 %v855
        %v3296 = vpop.f32.mrb[0].mxu0
        %v3297 = vadd.f32 0.0, %v3296
        %v3298 = vpop.f32.mrb[0].mxu0
        %v3299 = vadd.f32 0.0, %v3298
        %v3300 = vpop.f32.mrb[0].mxu0
        %v3301 = vadd.f32 0.0, %v3300
        %v3302 = vpop.f32.mrb[0].mxu0
        %v3303 = vadd.f32 0.0, %v3302
        %3304 = vmatprep.mubr.bf16.mxu0 %v858
        %3305 = vmatmul.mubr.bf16.gmra.mrb[0].mxu0 %v857
        %v3306 = vpop.f32.mrb[0].mxu0
        %v3307 = vadd.f32 0.0, %v3306
        %v3308 = vpop.f32.mrb[0].mxu0
        %v3309 = vadd.f32 0.0, %v3308
        %v3310 = vpop.f32.mrb[0].mxu0
        %v3311 = vadd.f32 0.0, %v3310
        %v3312 = vpop.f32.mrb[0].mxu0
        %v3313 = vadd.f32 0.0, %v3312
        %3314 = vdwg.mxu0
        %3315 = vmatprep.subr.bf16.mxu0 %v2216
        %3316 = vmatpush1.bf16.msra.mxu0 %v2215
        %3317 = vmatprep.subr.bf16.mxu0 %v2244
        %3318 = vmatpush1.bf16.msra.mxu0 %v2243
        %3319 = vmatprep.subr.bf16.mxu0 %v2272
        %3320 = vmatpush1.bf16.msra.mxu0 %v2271
        %3321 = vmatprep.subr.bf16.mxu0 %v2300
        %3322 = vmatpush1.bf16.msra.mxu0 %v2299
        %3323 = vmatprep.subr.bf16.mxu0 %v2328
        %3324 = vmatpush1.bf16.msra.mxu0 %v2327
        %3325 = vmatprep.subr.bf16.mxu0 %v2356
        %3326 = vmatpush1.bf16.msra.mxu0 %v2355
        %3327 = vmatprep.subr.bf16.mxu0 %v2384
        %3328 = vmatpush1.bf16.msra.mxu0 %v2383
        %3329 = vmatprep.subr.bf16.mxu0 %v2412
        %3330 = vmatpush1.bf16.msra.mxu0 %v2411
        %3331 = vmatprep.subr.bf16.mxu0 %v2440
        %3332 = vmatpush1.bf16.msra.mxu0 %v2439
        %3333 = vmatprep.subr.bf16.mxu0 %v2468
        %3334 = vmatpush1.bf16.msra.mxu0 %v2467
        %3335 = vmatprep.subr.bf16.mxu0 %v2496
        %3336 = vmatpush1.bf16.msra.mxu0 %v2495
        %3337 = vmatprep.subr.bf16.mxu0 %v2524
        %3338 = vmatpush1.bf16.msra.mxu0 %v2523
        %3339 = vmatprep.subr.bf16.mxu0 %v2552
        %3340 = vmatpush1.bf16.msra.mxu0 %v2551
        %3341 = vmatprep.subr.bf16.mxu0 %v2580
        %3342 = vmatpush1.bf16.msra.mxu0 %v2579
        %3343 = vmatprep.subr.bf16.mxu0 %v2608
        %3344 = vmatpush1.bf16.msra.mxu0 %v2607
        %3345 = vmatprep.subr.bf16.mxu0 %v2636
        %3346 = vmatpush1.bf16.msra.mxu0 %v2635
        %3347 = vmatprep.mubr.bf16.mxu0 %v856
        %3348 = vmatmul.mubr.bf16.gmra.mrb[0].mxu0 %v855
        %v3349 = vpop.f32.mrb[0].mxu0
        %v3350 = vadd.f32 0.0, %v3349
        %v3351 = vpop.f32.mrb[0].mxu0
        %v3352 = vadd.f32 0.0, %v3351
        %v3353 = vpop.f32.mrb[0].mxu0
        %v3354 = vadd.f32 0.0, %v3353
        %v3355 = vpop.f32.mrb[0].mxu0
        %v3356 = vadd.f32 0.0, %v3355
        %3357 = vmatprep.mubr.bf16.mxu0 %v858
        %3358 = vmatmul.mubr.bf16.gmra.mrb[0].mxu0 %v857
        %v3359 = vpop.f32.mrb[0].mxu0
        %v3360 = vadd.f32 0.0, %v3359
        %v3361 = vpop.f32.mrb[0].mxu0
        %v3362 = vadd.f32 0.0, %v3361
        %v3363 = vpop.f32.mrb[0].mxu0
        %v3364 = vadd.f32 0.0, %v3363
        %v3365 = vpop.f32.mrb[0].mxu0
        %v3366 = vadd.f32 0.0, %v3365
        %3367 = vdwg.mxu0
        %3368 = vmatprep.subr.bf16.mxu0 %v2218
        %3369 = vmatpush1.bf16.msra.mxu0 %v2217
        %3370 = vmatprep.subr.bf16.mxu0 %v2246
        %3371 = vmatpush1.bf16.msra.mxu0 %v2245
        %3372 = vmatprep.subr.bf16.mxu0 %v2274
        %3373 = vmatpush1.bf16.msra.mxu0 %v2273
        %3374 = vmatprep.subr.bf16.mxu0 %v2302
        %3375 = vmatpush1.bf16.msra.mxu0 %v2301
        %3376 = vmatprep.subr.bf16.mxu0 %v2330
        %3377 = vmatpush1.bf16.msra.mxu0 %v2329
        %3378 = vmatprep.subr.bf16.mxu0 %v2358
        %3379 = vmatpush1.bf16.msra.mxu0 %v2357
        %3380 = vmatprep.subr.bf16.mxu0 %v2386
        %3381 = vmatpush1.bf16.msra.mxu0 %v2385
        %3382 = vmatprep.subr.bf16.mxu0 %v2414
        %3383 = vmatpush1.bf16.msra.mxu0 %v2413
        %3384 = vmatprep.subr.bf16.mxu0 %v2442
        %3385 = vmatpush1.bf16.msra.mxu0 %v2441
        %3386 = vmatprep.subr.bf16.mxu0 %v2470
        %3387 = vmatpush1.bf16.msra.mxu0 %v2469
        %3388 = vmatprep.subr.bf16.mxu0 %v2498
        %3389 = vmatpush1.bf16.msra.mxu0 %v2497
        %3390 = vmatprep.subr.bf16.mxu0 %v2526
        %3391 = vmatpush1.bf16.msra.mxu0 %v2525
        %3392 = vmatprep.subr.bf16.mxu0 %v2554
        %3393 = vmatpush1.bf16.msra.mxu0 %v2553
        %3394 = vmatprep.subr.bf16.mxu0 %v2582
        %3395 = vmatpush1.bf16.msra.mxu0 %v2581
        %3396 = vmatprep.subr.bf16.mxu0 %v2610
        %3397 = vmatpush1.bf16.msra.mxu0 %v2609
        %3398 = vmatprep.subr.bf16.mxu0 %v2638
        %3399 = vmatpush1.bf16.msra.mxu0 %v2637
        %3400 = vmatprep.mubr.bf16.mxu0 %v856
        %3401 = vmatmul.mubr.bf16.gmra.mrb[0].mxu0 %v855
        %v3402 = vpop.f32.mrb[0].mxu0
        %v3403 = vadd.f32 0.0, %v3402
        %v3404 = vpop.f32.mrb[0].mxu0
        %v3405 = vadd.f32 0.0, %v3404
        %v3406 = vpop.f32.mrb[0].mxu0
        %v3407 = vadd.f32 0.0, %v3406
        %v3408 = vpop.f32.mrb[0].mxu0
        %v3409 = vadd.f32 0.0, %v3408
        %3410 = vmatprep.mubr.bf16.mxu0 %v858
        %3411 = vmatmul.mubr.bf16.gmra.mrb[0].mxu0 %v857
        %v3412 = vpop.f32.mrb[0].mxu0
        %v3413 = vadd.f32 0.0, %v3412
        %v3414 = vpop.f32.mrb[0].mxu0
        %v3415 = vadd.f32 0.0, %v3414
        %v3416 = vpop.f32.mrb[0].mxu0
        %v3417 = vadd.f32 0.0, %v3416
        %v3418 = vpop.f32.mrb[0].mxu0
        %v3419 = vadd.f32 0.0, %v3418
        %3420 = vdwg.mxu0
        %3421 = vmatprep.subr.bf16.mxu0 %v2220
        %3422 = vmatpush1.bf16.msra.mxu0 %v2219
        %3423 = vmatprep.subr.bf16.mxu0 %v2248
        %3424 = vmatpush1.bf16.msra.mxu0 %v2247
        %3425 = vmatprep.subr.bf16.mxu0 %v2276
        %3426 = vmatpush1.bf16.msra.mxu0 %v2275
        %3427 = vmatprep.subr.bf16.mxu0 %v2304
        %3428 = vmatpush1.bf16.msra.mxu0 %v2303
        %3429 = vmatprep.subr.bf16.mxu0 %v2332
        %3430 = vmatpush1.bf16.msra.mxu0 %v2331
        %3431 = vmatprep.subr.bf16.mxu0 %v2360
        %3432 = vmatpush1.bf16.msra.mxu0 %v2359
        %3433 = vmatprep.subr.bf16.mxu0 %v2388
        %3434 = vmatpush1.bf16.msra.mxu0 %v2387
        %3435 = vmatprep.subr.bf16.mxu0 %v2416
        %3436 = vmatpush1.bf16.msra.mxu0 %v2415
        %3437 = vmatprep.subr.bf16.mxu0 %v2444
        %3438 = vmatpush1.bf16.msra.mxu0 %v2443
        %3439 = vmatprep.subr.bf16.mxu0 %v2472
        %3440 = vmatpush1.bf16.msra.mxu0 %v2471
        %3441 = vmatprep.subr.bf16.mxu0 %v2500
        %3442 = vmatpush1.bf16.msra.mxu0 %v2499
        %3443 = vmatprep.subr.bf16.mxu0 %v2528
        %3444 = vmatpush1.bf16.msra.mxu0 %v2527
        %3445 = vmatprep.subr.bf16.mxu0 %v2556
        %3446 = vmatpush1.bf16.msra.mxu0 %v2555
        %3447 = vmatprep.subr.bf16.mxu0 %v2584
        %3448 = vmatpush1.bf16.msra.mxu0 %v2583
        %3449 = vmatprep.subr.bf16.mxu0 %v2612
        %3450 = vmatpush1.bf16.msra.mxu0 %v2611
        %3451 = vmatprep.subr.bf16.mxu0 %v2640
        %3452 = vmatpush1.bf16.msra.mxu0 %v2639
        %3453 = vmatprep.mubr.bf16.mxu0 %v856
        %3454 = vmatmul.mubr.bf16.gmra.mrb[0].mxu0 %v855
        %v3455 = vpop.f32.mrb[0].mxu0
        %v3456 = vadd.f32 0.0, %v3455
        %v3457 = vpop.f32.mrb[0].mxu0
        %v3458 = vadd.f32 0.0, %v3457
        %v3459 = vpop.f32.mrb[0].mxu0
        %v3460 = vadd.f32 0.0, %v3459
        %v3461 = vpop.f32.mrb[0].mxu0
        %v3462 = vadd.f32 0.0, %v3461
        %3463 = vmatprep.mubr.bf16.mxu0 %v858
        %3464 = vmatmul.mubr.bf16.gmra.mrb[0].mxu0 %v857
        %v3465 = vpop.f32.mrb[0].mxu0
        %v3466 = vadd.f32 0.0, %v3465
        %v3467 = vpop.f32.mrb[0].mxu0
        %v3468 = vadd.f32 0.0, %v3467
        %v3469 = vpop.f32.mrb[0].mxu0
        %v3470 = vadd.f32 0.0, %v3469
        %v3471 = vpop.f32.mrb[0].mxu0
        %v3472 = vadd.f32 0.0, %v3471
        %3473 = vdwg.mxu0
        %3474 = vmatprep.subr.bf16.mxu0 %v2222
        %3475 = vmatpush1.bf16.msra.mxu0 %v2221
        %3476 = vmatprep.subr.bf16.mxu0 %v2250
        %3477 = vmatpush1.bf16.msra.mxu0 %v2249
        %3478 = vmatprep.subr.bf16.mxu0 %v2278
        %3479 = vmatpush1.bf16.msra.mxu0 %v2277
        %3480 = vmatprep.subr.bf16.mxu0 %v2306
        %3481 = vmatpush1.bf16.msra.mxu0 %v2305
        %3482 = vmatprep.subr.bf16.mxu0 %v2334
        %3483 = vmatpush1.bf16.msra.mxu0 %v2333
        %3484 = vmatprep.subr.bf16.mxu0 %v2362
        %3485 = vmatpush1.bf16.msra.mxu0 %v2361
        %3486 = vmatprep.subr.bf16.mxu0 %v2390
        %3487 = vmatpush1.bf16.msra.mxu0 %v2389
        %3488 = vmatprep.subr.bf16.mxu0 %v2418
        %3489 = vmatpush1.bf16.msra.mxu0 %v2417
        %3490 = vmatprep.subr.bf16.mxu0 %v2446
        %3491 = vmatpush1.bf16.msra.mxu0 %v2445
        %3492 = vmatprep.subr.bf16.mxu0 %v2474
        %3493 = vmatpush1.bf16.msra.mxu0 %v2473
        %3494 = vmatprep.subr.bf16.mxu0 %v2502
        %3495 = vmatpush1.bf16.msra.mxu0 %v2501
        %3496 = vmatprep.subr.bf16.mxu0 %v2530
        %3497 = vmatpush1.bf16.msra.mxu0 %v2529
        %3498 = vmatprep.subr.bf16.mxu0 %v2558
        %3499 = vmatpush1.bf16.msra.mxu0 %v2557
        %3500 = vmatprep.subr.bf16.mxu0 %v2586
        %3501 = vmatpush1.bf16.msra.mxu0 %v2585
        %3502 = vmatprep.subr.bf16.mxu0 %v2614
        %3503 = vmatpush1.bf16.msra.mxu0 %v2613
        %3504 = vmatprep.subr.bf16.mxu0 %v2642
        %3505 = vmatpush1.bf16.msra.mxu0 %v2641
        %3506 = vmatprep.mubr.bf16.mxu0 %v856
        %3507 = vmatmul.mubr.bf16.gmra.mrb[0].mxu0 %v855
        %v3508 = vpop.f32.mrb[0].mxu0
        %v3509 = vadd.f32 0.0, %v3508
        %v3510 = vpop.f32.mrb[0].mxu0
        %v3511 = vadd.f32 0.0, %v3510
        %v3512 = vpop.f32.mrb[0].mxu0
        %v3513 = vadd.f32 0.0, %v3512
        %v3514 = vpop.f32.mrb[0].mxu0
        %v3515 = vadd.f32 0.0, %v3514
        %3516 = vmatprep.mubr.bf16.mxu0 %v858
        %3517 = vmatmul.mubr.bf16.gmra.mrb[0].mxu0 %v857
        %v3518 = vpop.f32.mrb[0].mxu0
        %v3519 = vadd.f32 0.0, %v3518
        %v3520 = vpop.f32.mrb[0].mxu0
        %v3521 = vadd.f32 0.0, %v3520
        %v3522 = vpop.f32.mrb[0].mxu0
        %v3523 = vadd.f32 0.0, %v3522
        %v3524 = vpop.f32.mrb[0].mxu0
        %v3525 = vadd.f32 0.0, %v3524
        %3526 = vdwg.mxu0
        %3527 = vmatprep.subr.bf16.mxu0 %v2224
        %3528 = vmatpush1.bf16.msra.mxu0 %v2223
        %3529 = vmatprep.subr.bf16.mxu0 %v2252
        %3530 = vmatpush1.bf16.msra.mxu0 %v2251
        %3531 = vmatprep.subr.bf16.mxu0 %v2280
        %3532 = vmatpush1.bf16.msra.mxu0 %v2279
        %3533 = vmatprep.subr.bf16.mxu0 %v2308
        %3534 = vmatpush1.bf16.msra.mxu0 %v2307
        %3535 = vmatprep.subr.bf16.mxu0 %v2336
        %3536 = vmatpush1.bf16.msra.mxu0 %v2335
        %3537 = vmatprep.subr.bf16.mxu0 %v2364
        %3538 = vmatpush1.bf16.msra.mxu0 %v2363
        %3539 = vmatprep.subr.bf16.mxu0 %v2392
        %3540 = vmatpush1.bf16.msra.mxu0 %v2391
        %3541 = vmatprep.subr.bf16.mxu0 %v2420
        %3542 = vmatpush1.bf16.msra.mxu0 %v2419
        %3543 = vmatprep.subr.bf16.mxu0 %v2448
        %3544 = vmatpush1.bf16.msra.mxu0 %v2447
        %3545 = vmatprep.subr.bf16.mxu0 %v2476
        %3546 = vmatpush1.bf16.msra.mxu0 %v2475
        %3547 = vmatprep.subr.bf16.mxu0 %v2504
        %3548 = vmatpush1.bf16.msra.mxu0 %v2503
        %3549 = vmatprep.subr.bf16.mxu0 %v2532
        %3550 = vmatpush1.bf16.msra.mxu0 %v2531
        %3551 = vmatprep.subr.bf16.mxu0 %v2560
        %3552 = vmatpush1.bf16.msra.mxu0 %v2559
        %3553 = vmatprep.subr.bf16.mxu0 %v2588
        %3554 = vmatpush1.bf16.msra.mxu0 %v2587
        %3555 = vmatprep.subr.bf16.mxu0 %v2616
        %3556 = vmatpush1.bf16.msra.mxu0 %v2615
        %3557 = vmatprep.subr.bf16.mxu0 %v2644
        %3558 = vmatpush1.bf16.msra.mxu0 %v2643
        %3559 = vmatprep.mubr.bf16.mxu0 %v856
        %3560 = vmatmul.mubr.bf16.gmra.mrb[0].mxu0 %v855
        %v3561 = vpop.f32.mrb[0].mxu0
        %v3562 = vadd.f32 0.0, %v3561
        %v3563 = vpop.f32.mrb[0].mxu0
        %v3564 = vadd.f32 0.0, %v3563
        %v3565 = vpop.f32.mrb[0].mxu0
        %v3566 = vadd.f32 0.0, %v3565
        %v3567 = vpop.f32.mrb[0].mxu0
        %v3568 = vadd.f32 0.0, %v3567
        %3569 = vmatprep.mubr.bf16.mxu0 %v858
        %3570 = vmatmul.mubr.bf16.gmra.mrb[0].mxu0 %v857
        %v3571 = vpop.f32.mrb[0].mxu0
        %v3572 = vadd.f32 0.0, %v3571
        %v3573 = vpop.f32.mrb[0].mxu0
        %v3574 = vadd.f32 0.0, %v3573
        %v3575 = vpop.f32.mrb[0].mxu0
        %v3576 = vadd.f32 0.0, %v3575
        %v3577 = vpop.f32.mrb[0].mxu0
        %v3578 = vadd.f32 0.0, %v3577
        %3579 = vdwg.mxu0
        %3580 = vmatprep.subr.bf16.mxu0 %v2226
        %3581 = vmatpush1.bf16.msra.mxu0 %v2225
        %3582 = vmatprep.subr.bf16.mxu0 %v2254
        %3583 = vmatpush1.bf16.msra.mxu0 %v2253
        %3584 = vmatprep.subr.bf16.mxu0 %v2282
        %3585 = vmatpush1.bf16.msra.mxu0 %v2281
        %3586 = vmatprep.subr.bf16.mxu0 %v2310
        %3587 = vmatpush1.bf16.msra.mxu0 %v2309
        %3588 = vmatprep.subr.bf16.mxu0 %v2338
        %3589 = vmatpush1.bf16.msra.mxu0 %v2337
        %3590 = vmatprep.subr.bf16.mxu0 %v2366
        %3591 = vmatpush1.bf16.msra.mxu0 %v2365
        %3592 = vmatprep.subr.bf16.mxu0 %v2394
        %3593 = vmatpush1.bf16.msra.mxu0 %v2393
        %3594 = vmatprep.subr.bf16.mxu0 %v2422
        %3595 = vmatpush1.bf16.msra.mxu0 %v2421
        %3596 = vmatprep.subr.bf16.mxu0 %v2450
        %3597 = vmatpush1.bf16.msra.mxu0 %v2449
        %3598 = vmatprep.subr.bf16.mxu0 %v2478
        %3599 = vmatpush1.bf16.msra.mxu0 %v2477
        %3600 = vmatprep.subr.bf16.mxu0 %v2506
        %3601 = vmatpush1.bf16.msra.mxu0 %v2505
        %3602 = vmatprep.subr.bf16.mxu0 %v2534
        %3603 = vmatpush1.bf16.msra.mxu0 %v2533
        %3604 = vmatprep.subr.bf16.mxu0 %v2562
        %3605 = vmatpush1.bf16.msra.mxu0 %v2561
        %3606 = vmatprep.subr.bf16.mxu0 %v2590
        %3607 = vmatpush1.bf16.msra.mxu0 %v2589
        %3608 = vmatprep.subr.bf16.mxu0 %v2618
        %3609 = vmatpush1.bf16.msra.mxu0 %v2617
        %3610 = vmatprep.subr.bf16.mxu0 %v2646
        %3611 = vmatpush1.bf16.msra.mxu0 %v2645
        %3612 = vmatprep.mubr.bf16.mxu0 %v856
        %3613 = vmatmul.mubr.bf16.gmra.mrb[0].mxu0 %v855
        %v3614 = vpop.f32.mrb[0].mxu0
        %v3615 = vadd.f32 0.0, %v3614
        %v3616 = vpop.f32.mrb[0].mxu0
        %v3617 = vadd.f32 0.0, %v3616
        %v3618 = vpop.f32.mrb[0].mxu0
        %v3619 = vadd.f32 0.0, %v3618
        %v3620 = vpop.f32.mrb[0].mxu0
        %v3621 = vadd.f32 0.0, %v3620
        %3622 = vmatprep.mubr.bf16.mxu0 %v858
        %3623 = vmatmul.mubr.bf16.gmra.mrb[0].mxu0 %v857
        %v3624 = vpop.f32.mrb[0].mxu0
        %v3625 = vadd.f32 0.0, %v3624
        %v3626 = vpop.f32.mrb[0].mxu0
        %v3627 = vadd.f32 0.0, %v3626
        %v3628 = vpop.f32.mrb[0].mxu0
        %v3629 = vadd.f32 0.0, %v3628
        %v3630 = vpop.f32.mrb[0].mxu0
        %v3631 = vadd.f32 0.0, %v3630
        %3632 = vdwg.mxu0
        %3633 = vmatprep.subr.bf16.mxu0 %v2228
        %3634 = vmatpush1.bf16.msra.mxu0 %v2227
        %3635 = vmatprep.subr.bf16.mxu0 %v2256
        %3636 = vmatpush1.bf16.msra.mxu0 %v2255
        %3637 = vmatprep.subr.bf16.mxu0 %v2284
        %3638 = vmatpush1.bf16.msra.mxu0 %v2283
        %3639 = vmatprep.subr.bf16.mxu0 %v2312
        %3640 = vmatpush1.bf16.msra.mxu0 %v2311
        %3641 = vmatprep.subr.bf16.mxu0 %v2340
        %3642 = vmatpush1.bf16.msra.mxu0 %v2339
        %3643 = vmatprep.subr.bf16.mxu0 %v2368
        %3644 = vmatpush1.bf16.msra.mxu0 %v2367
        %3645 = vmatprep.subr.bf16.mxu0 %v2396
        %3646 = vmatpush1.bf16.msra.mxu0 %v2395
        %3647 = vmatprep.subr.bf16.mxu0 %v2424
        %3648 = vmatpush1.bf16.msra.mxu0 %v2423
        %3649 = vmatprep.subr.bf16.mxu0 %v2452
        %3650 = vmatpush1.bf16.msra.mxu0 %v2451
        %3651 = vmatprep.subr.bf16.mxu0 %v2480
        %3652 = vmatpush1.bf16.msra.mxu0 %v2479
        %3653 = vmatprep.subr.bf16.mxu0 %v2508
        %3654 = vmatpush1.bf16.msra.mxu0 %v2507
        %3655 = vmatprep.subr.bf16.mxu0 %v2536
        %3656 = vmatpush1.bf16.msra.mxu0 %v2535
        %3657 = vmatprep.subr.bf16.mxu0 %v2564
        %3658 = vmatpush1.bf16.msra.mxu0 %v2563
        %3659 = vmatprep.subr.bf16.mxu0 %v2592
        %3660 = vmatpush1.bf16.msra.mxu0 %v2591
        %3661 = vmatprep.subr.bf16.mxu0 %v2620
        %3662 = vmatpush1.bf16.msra.mxu0 %v2619
        %3663 = vmatprep.subr.bf16.mxu0 %v2648
        %3664 = vmatpush1.bf16.msra.mxu0 %v2647
        %3665 = vmatprep.mubr.bf16.mxu0 %v856
        %3666 = vmatmul.mubr.bf16.gmra.mrb[0].mxu0 %v855
        %v3667 = vpop.f32.mrb[0].mxu0
        %v3668 = vadd.f32 0.0, %v3667
        %v3669 = vpop.f32.mrb[0].mxu0
        %v3670 = vadd.f32 0.0, %v3669
        %v3671 = vpop.f32.mrb[0].mxu0
        %v3672 = vadd.f32 0.0, %v3671
        %v3673 = vpop.f32.mrb[0].mxu0
        %v3674 = vadd.f32 0.0, %v3673
        %3675 = vmatprep.mubr.bf16.mxu0 %v858
        %3676 = vmatmul.mubr.bf16.gmra.mrb[0].mxu0 %v857
        %v3677 = vpop.f32.mrb[0].mxu0
        %v3678 = vadd.f32 0.0, %v3677
        %v3679 = vpop.f32.mrb[0].mxu0
        %v3680 = vadd.f32 0.0, %v3679
        %v3681 = vpop.f32.mrb[0].mxu0
        %v3682 = vadd.f32 0.0, %v3681
        %v3683 = vpop.f32.mrb[0].mxu0
        %v3684 = vadd.f32 0.0, %v3683
        %3685 = vdwg.mxu0
        %3686 = vmatprep.subr.bf16.mxu0 %v2230
        %3687 = vmatpush1.bf16.msra.mxu0 %v2229
        %3688 = vmatprep.subr.bf16.mxu0 %v2258
        %3689 = vmatpush1.bf16.msra.mxu0 %v2257
        %3690 = vmatprep.subr.bf16.mxu0 %v2286
        %3691 = vmatpush1.bf16.msra.mxu0 %v2285
        %3692 = vmatprep.subr.bf16.mxu0 %v2314
        %3693 = vmatpush1.bf16.msra.mxu0 %v2313
        %3694 = vmatprep.subr.bf16.mxu0 %v2342
        %3695 = vmatpush1.bf16.msra.mxu0 %v2341
        %3696 = vmatprep.subr.bf16.mxu0 %v2370
        %3697 = vmatpush1.bf16.msra.mxu0 %v2369
        %3698 = vmatprep.subr.bf16.mxu0 %v2398
        %3699 = vmatpush1.bf16.msra.mxu0 %v2397
        %3700 = vmatprep.subr.bf16.mxu0 %v2426
        %3701 = vmatpush1.bf16.msra.mxu0 %v2425
        %3702 = vmatprep.subr.bf16.mxu0 %v2454
        %3703 = vmatpush1.bf16.msra.mxu0 %v2453
        %3704 = vmatprep.subr.bf16.mxu0 %v2482
        %3705 = vmatpush1.bf16.msra.mxu0 %v2481
        %3706 = vmatprep.subr.bf16.mxu0 %v2510
        %3707 = vmatpush1.bf16.msra.mxu0 %v2509
        %3708 = vmatprep.subr.bf16.mxu0 %v2538
        %3709 = vmatpush1.bf16.msra.mxu0 %v2537
        %3710 = vmatprep.subr.bf16.mxu0 %v2566
        %3711 = vmatpush1.bf16.msra.mxu0 %v2565
        %3712 = vmatprep.subr.bf16.mxu0 %v2594
        %3713 = vmatpush1.bf16.msra.mxu0 %v2593
        %3714 = vmatprep.subr.bf16.mxu0 %v2622
        %3715 = vmatpush1.bf16.msra.mxu0 %v2621
        %3716 = vmatprep.subr.bf16.mxu0 %v2650
        %3717 = vmatpush1.bf16.msra.mxu0 %v2649
        %3718 = vmatprep.mubr.bf16.mxu0 %v856
        %3719 = vmatmul.mubr.bf16.gmra.mrb[0].mxu0 %v855
        %v3720 = vpop.f32.mrb[0].mxu0
        %v3721 = vadd.f32 0.0, %v3720
        %v3722 = vpop.f32.mrb[0].mxu0
        %v3723 = vadd.f32 0.0, %v3722
        %v3724 = vpop.f32.mrb[0].mxu0
        %v3725 = vadd.f32 0.0, %v3724
        %v3726 = vpop.f32.mrb[0].mxu0
        %v3727 = vadd.f32 0.0, %v3726
        %3728 = vmatprep.mubr.bf16.mxu0 %v858
        %3729 = vmatmul.mubr.bf16.gmra.mrb[0].mxu0 %v857
        %v3730 = vpop.f32.mrb[0].mxu0
        %v3731 = vadd.f32 0.0, %v3730
        %v3732 = vpop.f32.mrb[0].mxu0
        %v3733 = vadd.f32 0.0, %v3732
        %v3734 = vpop.f32.mrb[0].mxu0
        %v3735 = vadd.f32 0.0, %v3734
        %v3736 = vpop.f32.mrb[0].mxu0
        %v3737 = vadd.f32 0.0, %v3736
        %3738 = vdwg.mxu0
        %3739 = vmatprep.subr.bf16.mxu0 %v2232
        %3740 = vmatpush1.bf16.msra.mxu0 %v2231
        %3741 = vmatprep.subr.bf16.mxu0 %v2260
        %3742 = vmatpush1.bf16.msra.mxu0 %v2259
        %3743 = vmatprep.subr.bf16.mxu0 %v2288
        %3744 = vmatpush1.bf16.msra.mxu0 %v2287
        %3745 = vmatprep.subr.bf16.mxu0 %v2316
        %3746 = vmatpush1.bf16.msra.mxu0 %v2315
        %3747 = vmatprep.subr.bf16.mxu0 %v2344
        %3748 = vmatpush1.bf16.msra.mxu0 %v2343
        %3749 = vmatprep.subr.bf16.mxu0 %v2372
        %3750 = vmatpush1.bf16.msra.mxu0 %v2371
        %3751 = vmatprep.subr.bf16.mxu0 %v2400
        %3752 = vmatpush1.bf16.msra.mxu0 %v2399
        %3753 = vmatprep.subr.bf16.mxu0 %v2428
        %3754 = vmatpush1.bf16.msra.mxu0 %v2427
        %3755 = vmatprep.subr.bf16.mxu0 %v2456
        %3756 = vmatpush1.bf16.msra.mxu0 %v2455
        %3757 = vmatprep.subr.bf16.mxu0 %v2484
        %3758 = vmatpush1.bf16.msra.mxu0 %v2483
        %3759 = vmatprep.subr.bf16.mxu0 %v2512
        %3760 = vmatpush1.bf16.msra.mxu0 %v2511
        %3761 = vmatprep.subr.bf16.mxu0 %v2540
        %3762 = vmatpush1.bf16.msra.mxu0 %v2539
        %3763 = vmatprep.subr.bf16.mxu0 %v2568
        %3764 = vmatpush1.bf16.msra.mxu0 %v2567
        %3765 = vmatprep.subr.bf16.mxu0 %v2596
        %3766 = vmatpush1.bf16.msra.mxu0 %v2595
        %3767 = vmatprep.subr.bf16.mxu0 %v2624
        %3768 = vmatpush1.bf16.msra.mxu0 %v2623
        %3769 = vmatprep.subr.bf16.mxu0 %v2652
        %3770 = vmatpush1.bf16.msra.mxu0 %v2651
        %3771 = vmatprep.mubr.bf16.mxu0 %v856
        %3772 = vmatmul.mubr.bf16.gmra.mrb[0].mxu0 %v855
        %v3773 = vpop.f32.mrb[0].mxu0
        %v3774 = vadd.f32 0.0, %v3773
        %v3775 = vpop.f32.mrb[0].mxu0
        %v3776 = vadd.f32 0.0, %v3775
        %v3777 = vpop.f32.mrb[0].mxu0
        %v3778 = vadd.f32 0.0, %v3777
        %v3779 = vpop.f32.mrb[0].mxu0
        %v3780 = vadd.f32 0.0, %v3779
        %3781 = vmatprep.mubr.bf16.mxu0 %v858
        %3782 = vmatmul.mubr.bf16.gmra.mrb[0].mxu0 %v857
        %v3783 = vpop.f32.mrb[0].mxu0
        %v3784 = vadd.f32 0.0, %v3783
        %v3785 = vpop.f32.mrb[0].mxu0
        %v3786 = vadd.f32 0.0, %v3785
        %v3787 = vpop.f32.mrb[0].mxu0
        %v3788 = vadd.f32 0.0, %v3787
        %v3789 = vpop.f32.mrb[0].mxu0
        %v3790 = vadd.f32 0.0, %v3789
        %3791 = vdwg.mxu0
        %3792 = vmatprep.subr.bf16.mxu0 %v2234
        %3793 = vmatpush1.bf16.msra.mxu0 %v2233
        %3794 = vmatprep.subr.bf16.mxu0 %v2262
        %3795 = vmatpush1.bf16.msra.mxu0 %v2261
        %3796 = vmatprep.subr.bf16.mxu0 %v2290
        %3797 = vmatpush1.bf16.msra.mxu0 %v2289
        %3798 = vmatprep.subr.bf16.mxu0 %v2318
        %3799 = vmatpush1.bf16.msra.mxu0 %v2317
        %3800 = vmatprep.subr.bf16.mxu0 %v2346
        %3801 = vmatpush1.bf16.msra.mxu0 %v2345
        %3802 = vmatprep.subr.bf16.mxu0 %v2374
        %3803 = vmatpush1.bf16.msra.mxu0 %v2373
        %3804 = vmatprep.subr.bf16.mxu0 %v2402
        %3805 = vmatpush1.bf16.msra.mxu0 %v2401
        %3806 = vmatprep.subr.bf16.mxu0 %v2430
        %3807 = vmatpush1.bf16.msra.mxu0 %v2429
        %3808 = vmatprep.subr.bf16.mxu0 %v2458
        %3809 = vmatpush1.bf16.msra.mxu0 %v2457
        %3810 = vmatprep.subr.bf16.mxu0 %v2486
        %3811 = vmatpush1.bf16.msra.mxu0 %v2485
        %3812 = vmatprep.subr.bf16.mxu0 %v2514
        %3813 = vmatpush1.bf16.msra.mxu0 %v2513
        %3814 = vmatprep.subr.bf16.mxu0 %v2542
        %3815 = vmatpush1.bf16.msra.mxu0 %v2541
        %3816 = vmatprep.subr.bf16.mxu0 %v2570
        %3817 = vmatpush1.bf16.msra.mxu0 %v2569
        %3818 = vmatprep.subr.bf16.mxu0 %v2598
        %3819 = vmatpush1.bf16.msra.mxu0 %v2597
        %3820 = vmatprep.subr.bf16.mxu0 %v2626
        %3821 = vmatpush1.bf16.msra.mxu0 %v2625
        %3822 = vmatprep.subr.bf16.mxu0 %v2654
        %3823 = vmatpush1.bf16.msra.mxu0 %v2653
        %3824 = vmatprep.mubr.bf16.mxu0 %v856
        %3825 = vmatmul.mubr.bf16.gmra.mrb[0].mxu0 %v855
        %v3826 = vpop.f32.mrb[0].mxu0
        %v3827 = vadd.f32 0.0, %v3826
        %v3828 = vpop.f32.mrb[0].mxu0
        %v3829 = vadd.f32 0.0, %v3828
        %v3830 = vpop.f32.mrb[0].mxu0
        %v3831 = vadd.f32 0.0, %v3830
        %v3832 = vpop.f32.mrb[0].mxu0
        %v3833 = vadd.f32 0.0, %v3832
        %3834 = vmatprep.mubr.bf16.mxu0 %v858
        %3835 = vmatmul.mubr.bf16.gmra.mrb[0].mxu0 %v857
        %v3836 = vpop.f32.mrb[0].mxu0
        %v3837 = vadd.f32 0.0, %v3836
        %v3838 = vpop.f32.mrb[0].mxu0
        %v3839 = vadd.f32 0.0, %v3838
        %v3840 = vpop.f32.mrb[0].mxu0
        %v3841 = vadd.f32 0.0, %v3840
        %v3842 = vpop.f32.mrb[0].mxu0
        %v3843 = vadd.f32 0.0, %v3842
        %3844 = vdwg.mxu0
        %v3845 = vld [vmem:[#allocation6] sm:$0xff]
        %v3846 = vld [vmem:[#allocation6 + $0x8] sm:$0xff]
        %s3847 = scalar_lea.vmem [#allocation6], 16
        %v3848 = vld [vmem:[%s3847] sm:$0xff]
        %v3849 = vld [vmem:[%s3847 + $0x8] sm:$0xff]
        %vm3850 = vcmask 261120
        %v3852 = vsel %vm3850, %v3848, 0
        %v3855 = vsel %vm3850, %v3849, 0
        %3857 = vmatprep.subr.mxu0 %v3193
        %3858 = vmatpush1.msra.mxu0 %v3191
        %3859 = vmatprep.subr.mxu0 %v3197
        %3860 = vmatpush1.msra.mxu0 %v3195
        %3861 = vmatprep.subr.mxu0 %v3203
        %3862 = vmatpush1.msra.mxu0 %v3201
        %3863 = vmatprep.subr.mxu0 %v3207
        %3864 = vmatpush1.msra.mxu0 %v3205
        %3865 = vmatprep.subr.mxu0 0.0
        %3866 = vmatpush1.msra.mxu0 0.0
        %3867 = vmatprep.subr.mxu0 0.0
        %3868 = vmatpush1.msra.mxu0 0.0
        %3869 = vmatprep.subr.mxu0 0.0
        %3870 = vmatpush1.msra.mxu0 0.0
        %3871 = vmatprep.subr.mxu0 0.0
        %3872 = vmatpush1.msra.mxu0 0.0
        %3873 = vmatprep.subr.mxu0 0.0
        %3874 = vmatpush1.msra.mxu0 0.0
        %3875 = vmatprep.subr.mxu0 0.0
        %3876 = vmatpush1.msra.mxu0 0.0
        %3877 = vmatprep.subr.mxu0 0.0
        %3878 = vmatpush1.msra.mxu0 0.0
        %3879 = vmatprep.subr.mxu0 0.0
        %3880 = vmatpush1.msra.mxu0 0.0
        %3881 = vmatprep.subr.mxu0 0.0
        %3882 = vmatpush1.msra.mxu0 0.0
        %3883 = vmatprep.subr.mxu0 0.0
        %3884 = vmatpush1.msra.mxu0 0.0
        %3885 = vmatprep.subr.mxu0 0.0
        %3886 = vmatpush1.msra.mxu0 0.0
        %3887 = vmatprep.subr.mxu0 0.0
        %3888 = vmatpush1.msra.mxu0 0.0
        %3889 = vmatprep.subr.mxu0 0.0
        %3890 = vmatpush1.msra.mxu0 0.0
        %3891 = vmatprep.subr.mxu0 0.0
        %3892 = vmatpush1.msra.mxu0 0.0
        %3893 = vmatprep.subr.mxu0 0.0
        %3894 = vmatpush1.msra.mxu0 0.0
        %3895 = vmatprep.subr.mxu0 0.0
        %3896 = vmatpush1.msra.mxu0 0.0
        %3897 = vmatprep.subr.mxu0 0.0
        %3898 = vmatpush1.msra.mxu0 0.0
        %3899 = vmatprep.subr.mxu0 0.0
        %3900 = vmatpush1.msra.mxu0 0.0
        %3901 = vmatprep.subr.mxu0 0.0
        %3902 = vmatpush1.msra.mxu0 0.0
        %3903 = vmatprep.subr.mxu0 0.0
        %3904 = vmatpush1.msra.mxu0 0.0
        %3905 = vmatprep.subr.mxu0 0.0
        %3906 = vmatpush1.msra.mxu0 0.0
        %3907 = vmatprep.subr.mxu0 0.0
        %3908 = vmatpush1.msra.mxu0 0.0
        %3909 = vmatprep.subr.mxu0 0.0
        %3910 = vmatpush1.msra.mxu0 0.0
        %3911 = vmatprep.subr.mxu0 0.0
        %3912 = vmatpush1.msra.mxu0 0.0
        %3913 = vmatprep.subr.mxu0 0.0
        %3914 = vmatpush1.msra.mxu0 0.0
        %3915 = vmatprep.subr.mxu0 0.0
        %3916 = vmatpush1.msra.mxu0 0.0
        %3917 = vmatprep.subr.mxu0 0.0
        %3918 = vmatpush1.msra.mxu0 0.0
        %3919 = vmatprep.subr.mxu0 0.0
        %3920 = vmatpush1.msra.mxu0 0.0
        %3921 = vmatprep.mubr.f32.mxu0 0.0
        %3922 = vmatmul.mubr.f32.gmra.mrb[0].mxu0 %v3852
        %v3923 = vpop.f32.mrb[0].mxu0
        %v3924 = vadd.f32 0.0, %v3923
        %v3925 = vpop.f32.mrb[0].mxu0
        %v3926 = vadd.f32 0.0, %v3925
        %3927 = vmatprep.mubr.f32.mxu0 0.0
        %3928 = vmatmul.mubr.f32.gmra.mrb[0].mxu0 %v3855
        %v3929 = vpop.f32.mrb[0].mxu0
        %v3930 = vadd.f32 0.0, %v3929
        %v3931 = vpop.f32.mrb[0].mxu0
        %v3932 = vadd.f32 0.0, %v3931
        %3933 = vdwg.mxu0
        %v3935 = vsel %vm3850, %v3845, 0
        %v3938 = vsel %vm3850, %v3846, 0
        %3940 = vmatprep.subr.mxu0 %v3140
        %3941 = vmatpush1.msra.mxu0 %v3138
        %3942 = vmatprep.subr.mxu0 %v3144
        %3943 = vmatpush1.msra.mxu0 %v3142
        %3944 = vmatprep.subr.mxu0 %v3150
        %3945 = vmatpush1.msra.mxu0 %v3148
        %3946 = vmatprep.subr.mxu0 %v3154
        %3947 = vmatpush1.msra.mxu0 %v3152
        %3948 = vmatprep.subr.mxu0 0.0
        %3949 = vmatpush1.msra.mxu0 0.0
        %3950 = vmatprep.subr.mxu0 0.0
        %3951 = vmatpush1.msra.mxu0 0.0
        %3952 = vmatprep.subr.mxu0 0.0
        %3953 = vmatpush1.msra.mxu0 0.0
        %3954 = vmatprep.subr.mxu0 0.0
        %3955 = vmatpush1.msra.mxu0 0.0
        %3956 = vmatprep.subr.mxu0 0.0
        %3957 = vmatpush1.msra.mxu0 0.0
        %3958 = vmatprep.subr.mxu0 0.0
        %3959 = vmatpush1.msra.mxu0 0.0
        %3960 = vmatprep.subr.mxu0 0.0
        %3961 = vmatpush1.msra.mxu0 0.0
        %3962 = vmatprep.subr.mxu0 0.0
        %3963 = vmatpush1.msra.mxu0 0.0
        %3964 = vmatprep.subr.mxu0 0.0
        %3965 = vmatpush1.msra.mxu0 0.0
        %3966 = vmatprep.subr.mxu0 0.0
        %3967 = vmatpush1.msra.mxu0 0.0
        %3968 = vmatprep.subr.mxu0 0.0
        %3969 = vmatpush1.msra.mxu0 0.0
        %3970 = vmatprep.subr.mxu0 0.0
        %3971 = vmatpush1.msra.mxu0 0.0
        %3972 = vmatprep.subr.mxu0 0.0
        %3973 = vmatpush1.msra.mxu0 0.0
        %3974 = vmatprep.subr.mxu0 0.0
        %3975 = vmatpush1.msra.mxu0 0.0
        %3976 = vmatprep.subr.mxu0 0.0
        %3977 = vmatpush1.msra.mxu0 0.0
        %3978 = vmatprep.subr.mxu0 0.0
        %3979 = vmatpush1.msra.mxu0 0.0
        %3980 = vmatprep.subr.mxu0 0.0
        %3981 = vmatpush1.msra.mxu0 0.0
        %3982 = vmatprep.subr.mxu0 0.0
        %3983 = vmatpush1.msra.mxu0 0.0
        %3984 = vmatprep.subr.mxu0 0.0
        %3985 = vmatpush1.msra.mxu0 0.0
        %3986 = vmatprep.subr.mxu0 0.0
        %3987 = vmatpush1.msra.mxu0 0.0
        %3988 = vmatprep.subr.mxu0 0.0
        %3989 = vmatpush1.msra.mxu0 0.0
        %3990 = vmatprep.subr.mxu0 0.0
        %3991 = vmatpush1.msra.mxu0 0.0
        %3992 = vmatprep.subr.mxu0 0.0
        %3993 = vmatpush1.msra.mxu0 0.0
        %3994 = vmatprep.subr.mxu0 0.0
        %3995 = vmatpush1.msra.mxu0 0.0
        %3996 = vmatprep.subr.mxu0 0.0
        %3997 = vmatpush1.msra.mxu0 0.0
        %3998 = vmatprep.subr.mxu0 0.0
        %3999 = vmatpush1.msra.mxu0 0.0
        %4000 = vmatprep.subr.mxu0 0.0
        %4001 = vmatpush1.msra.mxu0 0.0
        %4002 = vmatprep.subr.mxu0 0.0
        %4003 = vmatpush1.msra.mxu0 0.0
        %4004 = vmatprep.mubr.f32.mxu0 0.0
        %4005 = vmatmul.mubr.f32.gmra.mrb[0].mxu0 %v3935
        %v4006 = vpop.f32.mrb[0].mxu0
        %v4007 = vadd.f32 %v3924, %v4006
        %v4008 = vpop.f32.mrb[0].mxu0
        %v4009 = vadd.f32 %v3926, %v4008
        %4010 = vmatprep.mubr.f32.mxu0 0.0
        %4011 = vmatmul.mubr.f32.gmra.mrb[0].mxu0 %v3938
        %v4012 = vpop.f32.mrb[0].mxu0
        %v4013 = vadd.f32 %v3930, %v4012
        %v4014 = vpop.f32.mrb[0].mxu0
        %v4015 = vadd.f32 %v3932, %v4014
        %4016 = vdwg.mxu0
        %s4017 = scalar_lea.vmem [#allocation6], 32
        %v4018 = vld [vmem:[%s4017] sm:$0xff]
        %v4019 = vld [vmem:[%s4017 + $0x8] sm:$0xff]
        %v4021 = vsel %vm3850, %v4018, 0
        %v4024 = vsel %vm3850, %v4019, 0
        %4026 = vmatprep.subr.mxu0 %v3246
        %4027 = vmatpush1.msra.mxu0 %v3244
        %4028 = vmatprep.subr.mxu0 %v3250
        %4029 = vmatpush1.msra.mxu0 %v3248
        %4030 = vmatprep.subr.mxu0 %v3256
        %4031 = vmatpush1.msra.mxu0 %v3254
        %4032 = vmatprep.subr.mxu0 %v3260
        %4033 = vmatpush1.msra.mxu0 %v3258
        %4034 = vmatprep.subr.mxu0 0.0
        %4035 = vmatpush1.msra.mxu0 0.0
        %4036 = vmatprep.subr.mxu0 0.0
        %4037 = vmatpush1.msra.mxu0 0.0
        %4038 = vmatprep.subr.mxu0 0.0
        %4039 = vmatpush1.msra.mxu0 0.0
        %4040 = vmatprep.subr.mxu0 0.0
        %4041 = vmatpush1.msra.mxu0 0.0
        %4042 = vmatprep.subr.mxu0 0.0
        %4043 = vmatpush1.msra.mxu0 0.0
        %4044 = vmatprep.subr.mxu0 0.0
        %4045 = vmatpush1.msra.mxu0 0.0
        %4046 = vmatprep.subr.mxu0 0.0
        %4047 = vmatpush1.msra.mxu0 0.0
        %4048 = vmatprep.subr.mxu0 0.0
        %4049 = vmatpush1.msra.mxu0 0.0
        %4050 = vmatprep.subr.mxu0 0.0
        %4051 = vmatpush1.msra.mxu0 0.0
        %4052 = vmatprep.subr.mxu0 0.0
        %4053 = vmatpush1.msra.mxu0 0.0
        %4054 = vmatprep.subr.mxu0 0.0
        %4055 = vmatpush1.msra.mxu0 0.0
        %4056 = vmatprep.subr.mxu0 0.0
        %4057 = vmatpush1.msra.mxu0 0.0
        %4058 = vmatprep.subr.mxu0 0.0
        %4059 = vmatpush1.msra.mxu0 0.0
        %4060 = vmatprep.subr.mxu0 0.0
        %4061 = vmatpush1.msra.mxu0 0.0
        %4062 = vmatprep.subr.mxu0 0.0
        %4063 = vmatpush1.msra.mxu0 0.0
        %4064 = vmatprep.subr.mxu0 0.0
        %4065 = vmatpush1.msra.mxu0 0.0
        %4066 = vmatprep.subr.mxu0 0.0
        %4067 = vmatpush1.msra.mxu0 0.0
        %4068 = vmatprep.subr.mxu0 0.0
        %4069 = vmatpush1.msra.mxu0 0.0
        %4070 = vmatprep.subr.mxu0 0.0
        %4071 = vmatpush1.msra.mxu0 0.0
        %4072 = vmatprep.subr.mxu0 0.0
        %4073 = vmatpush1.msra.mxu0 0.0
        %4074 = vmatprep.subr.mxu0 0.0
        %4075 = vmatpush1.msra.mxu0 0.0
        %4076 = vmatprep.subr.mxu0 0.0
        %4077 = vmatpush1.msra.mxu0 0.0
        %4078 = vmatprep.subr.mxu0 0.0
        %4079 = vmatpush1.msra.mxu0 0.0
        %4080 = vmatprep.subr.mxu0 0.0
        %4081 = vmatpush1.msra.mxu0 0.0
        %4082 = vmatprep.subr.mxu0 0.0
        %4083 = vmatpush1.msra.mxu0 0.0
        %4084 = vmatprep.subr.mxu0 0.0
        %4085 = vmatpush1.msra.mxu0 0.0
        %4086 = vmatprep.subr.mxu0 0.0
        %4087 = vmatpush1.msra.mxu0 0.0
        %4088 = vmatprep.subr.mxu0 0.0
        %4089 = vmatpush1.msra.mxu0 0.0
        %4090 = vmatprep.mubr.f32.mxu0 0.0
        %4091 = vmatmul.mubr.f32.gmra.mrb[0].mxu0 %v4021
        %v4092 = vpop.f32.mrb[0].mxu0
        %v4093 = vadd.f32 0.0, %v4092
        %v4094 = vpop.f32.mrb[0].mxu0
        %v4095 = vadd.f32 0.0, %v4094
        %4096 = vmatprep.mubr.f32.mxu0 0.0
        %4097 = vmatmul.mubr.f32.gmra.mrb[0].mxu0 %v4024
        %v4098 = vpop.f32.mrb[0].mxu0
        %v4099 = vadd.f32 0.0, %v4098
        %v4100 = vpop.f32.mrb[0].mxu0
        %v4101 = vadd.f32 0.0, %v4100
        %4102 = vdwg.mxu0
        %v4103 = vadd.f32 %v4007, %v4093
        %v4104 = vadd.f32 %v4009, %v4095
        %v4105 = vadd.f32 %v4013, %v4099
        %v4106 = vadd.f32 %v4015, %v4101
        %s4107 = scalar_lea.vmem [#allocation6], 48
        %v4108 = vld [vmem:[%s4107] sm:$0xff]
        %v4109 = vld [vmem:[%s4107 + $0x8] sm:$0xff]
        %v4111 = vsel %vm3850, %v4108, 0
        %v4114 = vsel %vm3850, %v4109, 0
        %4116 = vmatprep.subr.mxu0 %v3299
        %4117 = vmatpush1.msra.mxu0 %v3297
        %4118 = vmatprep.subr.mxu0 %v3303
        %4119 = vmatpush1.msra.mxu0 %v3301
        %4120 = vmatprep.subr.mxu0 %v3309
        %4121 = vmatpush1.msra.mxu0 %v3307
        %4122 = vmatprep.subr.mxu0 %v3313
        %4123 = vmatpush1.msra.mxu0 %v3311
        %4124 = vmatprep.subr.mxu0 0.0
        %4125 = vmatpush1.msra.mxu0 0.0
        %4126 = vmatprep.subr.mxu0 0.0
        %4127 = vmatpush1.msra.mxu0 0.0
        %4128 = vmatprep.subr.mxu0 0.0
        %4129 = vmatpush1.msra.mxu0 0.0
        %4130 = vmatprep.subr.mxu0 0.0
        %4131 = vmatpush1.msra.mxu0 0.0
        %4132 = vmatprep.subr.mxu0 0.0
        %4133 = vmatpush1.msra.mxu0 0.0
        %4134 = vmatprep.subr.mxu0 0.0
        %4135 = vmatpush1.msra.mxu0 0.0
        %4136 = vmatprep.subr.mxu0 0.0
        %4137 = vmatpush1.msra.mxu0 0.0
        %4138 = vmatprep.subr.mxu0 0.0
        %4139 = vmatpush1.msra.mxu0 0.0
        %4140 = vmatprep.subr.mxu0 0.0
        %4141 = vmatpush1.msra.mxu0 0.0
        %4142 = vmatprep.subr.mxu0 0.0
        %4143 = vmatpush1.msra.mxu0 0.0
        %4144 = vmatprep.subr.mxu0 0.0
        %4145 = vmatpush1.msra.mxu0 0.0
        %4146 = vmatprep.subr.mxu0 0.0
        %4147 = vmatpush1.msra.mxu0 0.0
        %4148 = vmatprep.subr.mxu0 0.0
        %4149 = vmatpush1.msra.mxu0 0.0
        %4150 = vmatprep.subr.mxu0 0.0
        %4151 = vmatpush1.msra.mxu0 0.0
        %4152 = vmatprep.subr.mxu0 0.0
        %4153 = vmatpush1.msra.mxu0 0.0
        %4154 = vmatprep.subr.mxu0 0.0
        %4155 = vmatpush1.msra.mxu0 0.0
        %4156 = vmatprep.subr.mxu0 0.0
        %4157 = vmatpush1.msra.mxu0 0.0
        %4158 = vmatprep.subr.mxu0 0.0
        %4159 = vmatpush1.msra.mxu0 0.0
        %4160 = vmatprep.subr.mxu0 0.0
        %4161 = vmatpush1.msra.mxu0 0.0
        %4162 = vmatprep.subr.mxu0 0.0
        %4163 = vmatpush1.msra.mxu0 0.0
        %4164 = vmatprep.subr.mxu0 0.0
        %4165 = vmatpush1.msra.mxu0 0.0
        %4166 = vmatprep.subr.mxu0 0.0
        %4167 = vmatpush1.msra.mxu0 0.0
        %4168 = vmatprep.subr.mxu0 0.0
        %4169 = vmatpush1.msra.mxu0 0.0
        %4170 = vmatprep.subr.mxu0 0.0
        %4171 = vmatpush1.msra.mxu0 0.0
        %4172 = vmatprep.subr.mxu0 0.0
        %4173 = vmatpush1.msra.mxu0 0.0
        %4174 = vmatprep.subr.mxu0 0.0
        %4175 = vmatpush1.msra.mxu0 0.0
        %4176 = vmatprep.subr.mxu0 0.0
        %4177 = vmatpush1.msra.mxu0 0.0
        %4178 = vmatprep.subr.mxu0 0.0
        %4179 = vmatpush1.msra.mxu0 0.0
        %4180 = vmatprep.mubr.f32.mxu0 0.0
        %4181 = vmatmul.mubr.f32.gmra.mrb[0].mxu0 %v4111
        %v4182 = vpop.f32.mrb[0].mxu0
        %v4183 = vadd.f32 0.0, %v4182
        %v4184 = vpop.f32.mrb[0].mxu0
        %v4185 = vadd.f32 0.0, %v4184
        %4186 = vmatprep.mubr.f32.mxu0 0.0
        %4187 = vmatmul.mubr.f32.gmra.mrb[0].mxu0 %v4114
        %v4188 = vpop.f32.mrb[0].mxu0
        %v4189 = vadd.f32 0.0, %v4188
        %v4190 = vpop.f32.mrb[0].mxu0
        %v4191 = vadd.f32 0.0, %v4190
        %4192 = vdwg.mxu0
        %v4193 = vadd.f32 %v4103, %v4183
        %v4194 = vadd.f32 %v4104, %v4185
        %v4195 = vadd.f32 %v4105, %v4189
        %v4196 = vadd.f32 %v4106, %v4191
        %s4197 = scalar_lea.vmem [#allocation6], 64
        %v4198 = vld [vmem:[%s4197] sm:$0xff]
        %v4199 = vld [vmem:[%s4197 + $0x8] sm:$0xff]
        %v4201 = vsel %vm3850, %v4198, 0
        %v4204 = vsel %vm3850, %v4199, 0
        %4206 = vmatprep.subr.mxu0 %v3352
        %4207 = vmatpush1.msra.mxu0 %v3350
        %4208 = vmatprep.subr.mxu0 %v3356
        %4209 = vmatpush1.msra.mxu0 %v3354
        %4210 = vmatprep.subr.mxu0 %v3362
        %4211 = vmatpush1.msra.mxu0 %v3360
        %4212 = vmatprep.subr.mxu0 %v3366
        %4213 = vmatpush1.msra.mxu0 %v3364
        %4214 = vmatprep.subr.mxu0 0.0
        %4215 = vmatpush1.msra.mxu0 0.0
        %4216 = vmatprep.subr.mxu0 0.0
        %4217 = vmatpush1.msra.mxu0 0.0
        %4218 = vmatprep.subr.mxu0 0.0
        %4219 = vmatpush1.msra.mxu0 0.0
        %4220 = vmatprep.subr.mxu0 0.0
        %4221 = vmatpush1.msra.mxu0 0.0
        %4222 = vmatprep.subr.mxu0 0.0
        %4223 = vmatpush1.msra.mxu0 0.0
        %4224 = vmatprep.subr.mxu0 0.0
        %4225 = vmatpush1.msra.mxu0 0.0
        %4226 = vmatprep.subr.mxu0 0.0
        %4227 = vmatpush1.msra.mxu0 0.0
        %4228 = vmatprep.subr.mxu0 0.0
        %4229 = vmatpush1.msra.mxu0 0.0
        %4230 = vmatprep.subr.mxu0 0.0
        %4231 = vmatpush1.msra.mxu0 0.0
        %4232 = vmatprep.subr.mxu0 0.0
        %4233 = vmatpush1.msra.mxu0 0.0
        %4234 = vmatprep.subr.mxu0 0.0
        %4235 = vmatpush1.msra.mxu0 0.0
        %4236 = vmatprep.subr.mxu0 0.0
        %4237 = vmatpush1.msra.mxu0 0.0
        %4238 = vmatprep.subr.mxu0 0.0
        %4239 = vmatpush1.msra.mxu0 0.0
        %4240 = vmatprep.subr.mxu0 0.0
        %4241 = vmatpush1.msra.mxu0 0.0
        %4242 = vmatprep.subr.mxu0 0.0
        %4243 = vmatpush1.msra.mxu0 0.0
        %4244 = vmatprep.subr.mxu0 0.0
        %4245 = vmatpush1.msra.mxu0 0.0
        %4246 = vmatprep.subr.mxu0 0.0
        %4247 = vmatpush1.msra.mxu0 0.0
        %4248 = vmatprep.subr.mxu0 0.0
        %4249 = vmatpush1.msra.mxu0 0.0
        %4250 = vmatprep.subr.mxu0 0.0
        %4251 = vmatpush1.msra.mxu0 0.0
        %4252 = vmatprep.subr.mxu0 0.0
        %4253 = vmatpush1.msra.mxu0 0.0
        %4254 = vmatprep.subr.mxu0 0.0
        %4255 = vmatpush1.msra.mxu0 0.0
        %4256 = vmatprep.subr.mxu0 0.0
        %4257 = vmatpush1.msra.mxu0 0.0
        %4258 = vmatprep.subr.mxu0 0.0
        %4259 = vmatpush1.msra.mxu0 0.0
        %4260 = vmatprep.subr.mxu0 0.0
        %4261 = vmatpush1.msra.mxu0 0.0
        %4262 = vmatprep.subr.mxu0 0.0
        %4263 = vmatpush1.msra.mxu0 0.0
        %4264 = vmatprep.subr.mxu0 0.0
        %4265 = vmatpush1.msra.mxu0 0.0
        %4266 = vmatprep.subr.mxu0 0.0
        %4267 = vmatpush1.msra.mxu0 0.0
        %4268 = vmatprep.subr.mxu0 0.0
        %4269 = vmatpush1.msra.mxu0 0.0
        %4270 = vmatprep.mubr.f32.mxu0 0.0
        %4271 = vmatmul.mubr.f32.gmra.mrb[0].mxu0 %v4201
        %v4272 = vpop.f32.mrb[0].mxu0
        %v4273 = vadd.f32 0.0, %v4272
        %v4274 = vpop.f32.mrb[0].mxu0
        %v4275 = vadd.f32 0.0, %v4274
        %4276 = vmatprep.mubr.f32.mxu0 0.0
        %4277 = vmatmul.mubr.f32.gmra.mrb[0].mxu0 %v4204
        %v4278 = vpop.f32.mrb[0].mxu0
        %v4279 = vadd.f32 0.0, %v4278
        %v4280 = vpop.f32.mrb[0].mxu0
        %v4281 = vadd.f32 0.0, %v4280
        %4282 = vdwg.mxu0
        %v4283 = vadd.f32 %v4193, %v4273
        %v4284 = vadd.f32 %v4194, %v4275
        %v4285 = vadd.f32 %v4195, %v4279
        %v4286 = vadd.f32 %v4196, %v4281
        %s4287 = scalar_lea.vmem [#allocation6], 80
        %v4288 = vld [vmem:[%s4287] sm:$0xff]
        %v4289 = vld [vmem:[%s4287 + $0x8] sm:$0xff]
        %v4291 = vsel %vm3850, %v4288, 0
        %v4294 = vsel %vm3850, %v4289, 0
        %4296 = vmatprep.subr.mxu0 %v3405
        %4297 = vmatpush1.msra.mxu0 %v3403
        %4298 = vmatprep.subr.mxu0 %v3409
        %4299 = vmatpush1.msra.mxu0 %v3407
        %4300 = vmatprep.subr.mxu0 %v3415
        %4301 = vmatpush1.msra.mxu0 %v3413
        %4302 = vmatprep.subr.mxu0 %v3419
        %4303 = vmatpush1.msra.mxu0 %v3417
        %4304 = vmatprep.subr.mxu0 0.0
        %4305 = vmatpush1.msra.mxu0 0.0
        %4306 = vmatprep.subr.mxu0 0.0
        %4307 = vmatpush1.msra.mxu0 0.0
        %4308 = vmatprep.subr.mxu0 0.0
        %4309 = vmatpush1.msra.mxu0 0.0
        %4310 = vmatprep.subr.mxu0 0.0
        %4311 = vmatpush1.msra.mxu0 0.0
        %4312 = vmatprep.subr.mxu0 0.0
        %4313 = vmatpush1.msra.mxu0 0.0
        %4314 = vmatprep.subr.mxu0 0.0
        %4315 = vmatpush1.msra.mxu0 0.0
        %4316 = vmatprep.subr.mxu0 0.0
        %4317 = vmatpush1.msra.mxu0 0.0
        %4318 = vmatprep.subr.mxu0 0.0
        %4319 = vmatpush1.msra.mxu0 0.0
        %4320 = vmatprep.subr.mxu0 0.0
        %4321 = vmatpush1.msra.mxu0 0.0
        %4322 = vmatprep.subr.mxu0 0.0
        %4323 = vmatpush1.msra.mxu0 0.0
        %4324 = vmatprep.subr.mxu0 0.0
        %4325 = vmatpush1.msra.mxu0 0.0
        %4326 = vmatprep.subr.mxu0 0.0
        %4327 = vmatpush1.msra.mxu0 0.0
        %4328 = vmatprep.subr.mxu0 0.0
        %4329 = vmatpush1.msra.mxu0 0.0
        %4330 = vmatprep.subr.mxu0 0.0
        %4331 = vmatpush1.msra.mxu0 0.0
        %4332 = vmatprep.subr.mxu0 0.0
        %4333 = vmatpush1.msra.mxu0 0.0
        %4334 = vmatprep.subr.mxu0 0.0
        %4335 = vmatpush1.msra.mxu0 0.0
        %4336 = vmatprep.subr.mxu0 0.0
        %4337 = vmatpush1.msra.mxu0 0.0
        %4338 = vmatprep.subr.mxu0 0.0
        %4339 = vmatpush1.msra.mxu0 0.0
        %4340 = vmatprep.subr.mxu0 0.0
        %4341 = vmatpush1.msra.mxu0 0.0
        %4342 = vmatprep.subr.mxu0 0.0
        %4343 = vmatpush1.msra.mxu0 0.0
        %4344 = vmatprep.subr.mxu0 0.0
        %4345 = vmatpush1.msra.mxu0 0.0
        %4346 = vmatprep.subr.mxu0 0.0
        %4347 = vmatpush1.msra.mxu0 0.0
        %4348 = vmatprep.subr.mxu0 0.0
        %4349 = vmatpush1.msra.mxu0 0.0
        %4350 = vmatprep.subr.mxu0 0.0
        %4351 = vmatpush1.msra.mxu0 0.0
        %4352 = vmatprep.subr.mxu0 0.0
        %4353 = vmatpush1.msra.mxu0 0.0
        %4354 = vmatprep.subr.mxu0 0.0
        %4355 = vmatpush1.msra.mxu0 0.0
        %4356 = vmatprep.subr.mxu0 0.0
        %4357 = vmatpush1.msra.mxu0 0.0
        %4358 = vmatprep.subr.mxu0 0.0
        %4359 = vmatpush1.msra.mxu0 0.0
        %4360 = vmatprep.mubr.f32.mxu0 0.0
        %4361 = vmatmul.mubr.f32.gmra.mrb[0].mxu0 %v4291
        %v4362 = vpop.f32.mrb[0].mxu0
        %v4363 = vadd.f32 0.0, %v4362
        %v4364 = vpop.f32.mrb[0].mxu0
        %v4365 = vadd.f32 0.0, %v4364
        %4366 = vmatprep.mubr.f32.mxu0 0.0
        %4367 = vmatmul.mubr.f32.gmra.mrb[0].mxu0 %v4294
        %v4368 = vpop.f32.mrb[0].mxu0
        %v4369 = vadd.f32 0.0, %v4368
        %v4370 = vpop.f32.mrb[0].mxu0
        %v4371 = vadd.f32 0.0, %v4370
        %4372 = vdwg.mxu0
        %v4373 = vadd.f32 %v4283, %v4363
        %v4374 = vadd.f32 %v4284, %v4365
        %v4375 = vadd.f32 %v4285, %v4369
        %v4376 = vadd.f32 %v4286, %v4371
        %s4377 = scalar_lea.vmem [#allocation6], 96
        %v4378 = vld [vmem:[%s4377] sm:$0xff]
        %v4379 = vld [vmem:[%s4377 + $0x8] sm:$0xff]
        %v4381 = vsel %vm3850, %v4378, 0
        %v4384 = vsel %vm3850, %v4379, 0
        %4386 = vmatprep.subr.mxu0 %v3458
        %4387 = vmatpush1.msra.mxu0 %v3456
        %4388 = vmatprep.subr.mxu0 %v3462
        %4389 = vmatpush1.msra.mxu0 %v3460
        %4390 = vmatprep.subr.mxu0 %v3468
        %4391 = vmatpush1.msra.mxu0 %v3466
        %4392 = vmatprep.subr.mxu0 %v3472
        %4393 = vmatpush1.msra.mxu0 %v3470
        %4394 = vmatprep.subr.mxu0 0.0
        %4395 = vmatpush1.msra.mxu0 0.0
        %4396 = vmatprep.subr.mxu0 0.0
        %4397 = vmatpush1.msra.mxu0 0.0
        %4398 = vmatprep.subr.mxu0 0.0
        %4399 = vmatpush1.msra.mxu0 0.0
        %4400 = vmatprep.subr.mxu0 0.0
        %4401 = vmatpush1.msra.mxu0 0.0
        %4402 = vmatprep.subr.mxu0 0.0
        %4403 = vmatpush1.msra.mxu0 0.0
        %4404 = vmatprep.subr.mxu0 0.0
        %4405 = vmatpush1.msra.mxu0 0.0
        %4406 = vmatprep.subr.mxu0 0.0
        %4407 = vmatpush1.msra.mxu0 0.0
        %4408 = vmatprep.subr.mxu0 0.0
        %4409 = vmatpush1.msra.mxu0 0.0
        %4410 = vmatprep.subr.mxu0 0.0
        %4411 = vmatpush1.msra.mxu0 0.0
        %4412 = vmatprep.subr.mxu0 0.0
        %4413 = vmatpush1.msra.mxu0 0.0
        %4414 = vmatprep.subr.mxu0 0.0
        %4415 = vmatpush1.msra.mxu0 0.0
        %4416 = vmatprep.subr.mxu0 0.0
        %4417 = vmatpush1.msra.mxu0 0.0
        %4418 = vmatprep.subr.mxu0 0.0
        %4419 = vmatpush1.msra.mxu0 0.0
        %4420 = vmatprep.subr.mxu0 0.0
        %4421 = vmatpush1.msra.mxu0 0.0
        %4422 = vmatprep.subr.mxu0 0.0
        %4423 = vmatpush1.msra.mxu0 0.0
        %4424 = vmatprep.subr.mxu0 0.0
        %4425 = vmatpush1.msra.mxu0 0.0
        %4426 = vmatprep.subr.mxu0 0.0
        %4427 = vmatpush1.msra.mxu0 0.0
        %4428 = vmatprep.subr.mxu0 0.0
        %4429 = vmatpush1.msra.mxu0 0.0
        %4430 = vmatprep.subr.mxu0 0.0
        %4431 = vmatpush1.msra.mxu0 0.0
        %4432 = vmatprep.subr.mxu0 0.0
        %4433 = vmatpush1.msra.mxu0 0.0
        %4434 = vmatprep.subr.mxu0 0.0
        %4435 = vmatpush1.msra.mxu0 0.0
        %4436 = vmatprep.subr.mxu0 0.0
        %4437 = vmatpush1.msra.mxu0 0.0
        %4438 = vmatprep.subr.mxu0 0.0
        %4439 = vmatpush1.msra.mxu0 0.0
        %4440 = vmatprep.subr.mxu0 0.0
        %4441 = vmatpush1.msra.mxu0 0.0
        %4442 = vmatprep.subr.mxu0 0.0
        %4443 = vmatpush1.msra.mxu0 0.0
        %4444 = vmatprep.subr.mxu0 0.0
        %4445 = vmatpush1.msra.mxu0 0.0
        %4446 = vmatprep.subr.mxu0 0.0
        %4447 = vmatpush1.msra.mxu0 0.0
        %4448 = vmatprep.subr.mxu0 0.0
        %4449 = vmatpush1.msra.mxu0 0.0
        %4450 = vmatprep.mubr.f32.mxu0 0.0
        %4451 = vmatmul.mubr.f32.gmra.mrb[0].mxu0 %v4381
        %v4452 = vpop.f32.mrb[0].mxu0
        %v4453 = vadd.f32 0.0, %v4452
        %v4454 = vpop.f32.mrb[0].mxu0
        %v4455 = vadd.f32 0.0, %v4454
        %4456 = vmatprep.mubr.f32.mxu0 0.0
        %4457 = vmatmul.mubr.f32.gmra.mrb[0].mxu0 %v4384
        %v4458 = vpop.f32.mrb[0].mxu0
        %v4459 = vadd.f32 0.0, %v4458
        %v4460 = vpop.f32.mrb[0].mxu0
        %v4461 = vadd.f32 0.0, %v4460
        %4462 = vdwg.mxu0
        %v4463 = vadd.f32 %v4373, %v4453
        %v4464 = vadd.f32 %v4374, %v4455
        %v4465 = vadd.f32 %v4375, %v4459
        %v4466 = vadd.f32 %v4376, %v4461
        %v4467 = vld [vmem:[#allocation4] sm:$0x3]
        %v4469 = vlaneseq
        %v4470 = vshrl.u32 %v4469, 7
        %v4471 = vsub.s32 0, %v4470
        %v4472 = vrot.slane %v4467, %v4471
        %v4473 = vlaneseq
        %v4474 = vshrl.u32 %v4473, 7
        %v4475 = vsub.s32 1, %v4474
        %v4476 = vrot.slane %v4467, %v4475
        %v4479 = vadd.f32 %v4463, %v4472
        %v4480 = vadd.f32 %v4464, %v4476
        %v4481 = vadd.f32 %v4465, %v4472
        %v4482 = vadd.f32 %v4466, %v4476
        %v4483 = vmax.f32 %v4479, 0.0
        %v4484 = vmax.f32 %v4480, 0.0
        %v4485 = vmax.f32 %v4481, 0.0
        %v4486 = vmax.f32 %v4482, 0.0
        %v4487 = vpack.c.bf16 %v4485, %v4483
        %v4488 = vpack.c.bf16 %v4486, %v4484
        %s4489 = scalar_lea.vmem [#allocation6], 112
        %v4490 = vld [vmem:[%s4489] sm:$0xff]
        %v4491 = vld [vmem:[%s4489 + $0x8] sm:$0xff]
        %s4492 = scalar_lea.vmem [#allocation6], 128
        %v4493 = vld [vmem:[%s4492] sm:$0xff]
        %v4494 = vld [vmem:[%s4492 + $0x8] sm:$0xff]
        %v4496 = vsel %vm3850, %v4493, 0
        %v4499 = vsel %vm3850, %v4494, 0
        %4501 = vmatprep.subr.mxu0 %v3564
        %4502 = vmatpush1.msra.mxu0 %v3562
        %4503 = vmatprep.subr.mxu0 %v3568
        %4504 = vmatpush1.msra.mxu0 %v3566
        %4505 = vmatprep.subr.mxu0 %v3574
        %4506 = vmatpush1.msra.mxu0 %v3572
        %4507 = vmatprep.subr.mxu0 %v3578
        %4508 = vmatpush1.msra.mxu0 %v3576
        %4509 = vmatprep.subr.mxu0 0.0
        %4510 = vmatpush1.msra.mxu0 0.0
        %4511 = vmatprep.subr.mxu0 0.0
        %4512 = vmatpush1.msra.mxu0 0.0
        %4513 = vmatprep.subr.mxu0 0.0
        %4514 = vmatpush1.msra.mxu0 0.0
        %4515 = vmatprep.subr.mxu0 0.0
        %4516 = vmatpush1.msra.mxu0 0.0
        %4517 = vmatprep.subr.mxu0 0.0
        %4518 = vmatpush1.msra.mxu0 0.0
        %4519 = vmatprep.subr.mxu0 0.0
        %4520 = vmatpush1.msra.mxu0 0.0
        %4521 = vmatprep.subr.mxu0 0.0
        %4522 = vmatpush1.msra.mxu0 0.0
        %4523 = vmatprep.subr.mxu0 0.0
        %4524 = vmatpush1.msra.mxu0 0.0
        %4525 = vmatprep.subr.mxu0 0.0
        %4526 = vmatpush1.msra.mxu0 0.0
        %4527 = vmatprep.subr.mxu0 0.0
        %4528 = vmatpush1.msra.mxu0 0.0
        %4529 = vmatprep.subr.mxu0 0.0
        %4530 = vmatpush1.msra.mxu0 0.0
        %4531 = vmatprep.subr.mxu0 0.0
        %4532 = vmatpush1.msra.mxu0 0.0
        %4533 = vmatprep.subr.mxu0 0.0
        %4534 = vmatpush1.msra.mxu0 0.0
        %4535 = vmatprep.subr.mxu0 0.0
        %4536 = vmatpush1.msra.mxu0 0.0
        %4537 = vmatprep.subr.mxu0 0.0
        %4538 = vmatpush1.msra.mxu0 0.0
        %4539 = vmatprep.subr.mxu0 0.0
        %4540 = vmatpush1.msra.mxu0 0.0
        %4541 = vmatprep.subr.mxu0 0.0
        %4542 = vmatpush1.msra.mxu0 0.0
        %4543 = vmatprep.subr.mxu0 0.0
        %4544 = vmatpush1.msra.mxu0 0.0
        %4545 = vmatprep.subr.mxu0 0.0
        %4546 = vmatpush1.msra.mxu0 0.0
        %4547 = vmatprep.subr.mxu0 0.0
        %4548 = vmatpush1.msra.mxu0 0.0
        %4549 = vmatprep.subr.mxu0 0.0
        %4550 = vmatpush1.msra.mxu0 0.0
        %4551 = vmatprep.subr.mxu0 0.0
        %4552 = vmatpush1.msra.mxu0 0.0
        %4553 = vmatprep.subr.mxu0 0.0
        %4554 = vmatpush1.msra.mxu0 0.0
        %4555 = vmatprep.subr.mxu0 0.0
        %4556 = vmatpush1.msra.mxu0 0.0
        %4557 = vmatprep.subr.mxu0 0.0
        %4558 = vmatpush1.msra.mxu0 0.0
        %4559 = vmatprep.subr.mxu0 0.0
        %4560 = vmatpush1.msra.mxu0 0.0
        %4561 = vmatprep.subr.mxu0 0.0
        %4562 = vmatpush1.msra.mxu0 0.0
        %4563 = vmatprep.subr.mxu0 0.0
        %4564 = vmatpush1.msra.mxu0 0.0
        %4565 = vmatprep.mubr.f32.mxu0 0.0
        %4566 = vmatmul.mubr.f32.gmra.mrb[0].mxu0 %v4496
        %v4567 = vpop.f32.mrb[0].mxu0
        %v4568 = vadd.f32 0.0, %v4567
        %v4569 = vpop.f32.mrb[0].mxu0
        %v4570 = vadd.f32 0.0, %v4569
        %4571 = vmatprep.mubr.f32.mxu0 0.0
        %4572 = vmatmul.mubr.f32.gmra.mrb[0].mxu0 %v4499
        %v4573 = vpop.f32.mrb[0].mxu0
        %v4574 = vadd.f32 0.0, %v4573
        %v4575 = vpop.f32.mrb[0].mxu0
        %v4576 = vadd.f32 0.0, %v4575
        %4577 = vdwg.mxu0
        %v4579 = vsel %vm3850, %v4490, 0
        %v4582 = vsel %vm3850, %v4491, 0
        %4584 = vmatprep.subr.mxu0 %v3511
        %4585 = vmatpush1.msra.mxu0 %v3509
        %4586 = vmatprep.subr.mxu0 %v3515
        %4587 = vmatpush1.msra.mxu0 %v3513
        %4588 = vmatprep.subr.mxu0 %v3521
        %4589 = vmatpush1.msra.mxu0 %v3519
        %4590 = vmatprep.subr.mxu0 %v3525
        %4591 = vmatpush1.msra.mxu0 %v3523
        %4592 = vmatprep.subr.mxu0 0.0
        %4593 = vmatpush1.msra.mxu0 0.0
        %4594 = vmatprep.subr.mxu0 0.0
        %4595 = vmatpush1.msra.mxu0 0.0
        %4596 = vmatprep.subr.mxu0 0.0
        %4597 = vmatpush1.msra.mxu0 0.0
        %4598 = vmatprep.subr.mxu0 0.0
        %4599 = vmatpush1.msra.mxu0 0.0
        %4600 = vmatprep.subr.mxu0 0.0
        %4601 = vmatpush1.msra.mxu0 0.0
        %4602 = vmatprep.subr.mxu0 0.0
        %4603 = vmatpush1.msra.mxu0 0.0
        %4604 = vmatprep.subr.mxu0 0.0
        %4605 = vmatpush1.msra.mxu0 0.0
        %4606 = vmatprep.subr.mxu0 0.0
        %4607 = vmatpush1.msra.mxu0 0.0
        %4608 = vmatprep.subr.mxu0 0.0
        %4609 = vmatpush1.msra.mxu0 0.0
        %4610 = vmatprep.subr.mxu0 0.0
        %4611 = vmatpush1.msra.mxu0 0.0
        %4612 = vmatprep.subr.mxu0 0.0
        %4613 = vmatpush1.msra.mxu0 0.0
        %4614 = vmatprep.subr.mxu0 0.0
        %4615 = vmatpush1.msra.mxu0 0.0
        %4616 = vmatprep.subr.mxu0 0.0
        %4617 = vmatpush1.msra.mxu0 0.0
        %4618 = vmatprep.subr.mxu0 0.0
        %4619 = vmatpush1.msra.mxu0 0.0
        %4620 = vmatprep.subr.mxu0 0.0
        %4621 = vmatpush1.msra.mxu0 0.0
        %4622 = vmatprep.subr.mxu0 0.0
        %4623 = vmatpush1.msra.mxu0 0.0
        %4624 = vmatprep.subr.mxu0 0.0
        %4625 = vmatpush1.msra.mxu0 0.0
        %4626 = vmatprep.subr.mxu0 0.0
        %4627 = vmatpush1.msra.mxu0 0.0
        %4628 = vmatprep.subr.mxu0 0.0
        %4629 = vmatpush1.msra.mxu0 0.0
        %4630 = vmatprep.subr.mxu0 0.0
        %4631 = vmatpush1.msra.mxu0 0.0
        %4632 = vmatprep.subr.mxu0 0.0
        %4633 = vmatpush1.msra.mxu0 0.0
        %4634 = vmatprep.subr.mxu0 0.0
        %4635 = vmatpush1.msra.mxu0 0.0
        %4636 = vmatprep.subr.mxu0 0.0
        %4637 = vmatpush1.msra.mxu0 0.0
        %4638 = vmatprep.subr.mxu0 0.0
        %4639 = vmatpush1.msra.mxu0 0.0
        %4640 = vmatprep.subr.mxu0 0.0
        %4641 = vmatpush1.msra.mxu0 0.0
        %4642 = vmatprep.subr.mxu0 0.0
        %4643 = vmatpush1.msra.mxu0 0.0
        %4644 = vmatprep.subr.mxu0 0.0
        %4645 = vmatpush1.msra.mxu0 0.0
        %4646 = vmatprep.subr.mxu0 0.0
        %4647 = vmatpush1.msra.mxu0 0.0
        %4648 = vmatprep.mubr.f32.mxu0 0.0
        %4649 = vmatmul.mubr.f32.gmra.mrb[0].mxu0 %v4579
        %v4650 = vpop.f32.mrb[0].mxu0
        %v4651 = vadd.f32 %v4568, %v4650
        %v4652 = vpop.f32.mrb[0].mxu0
        %v4653 = vadd.f32 %v4570, %v4652
        %4654 = vmatprep.mubr.f32.mxu0 0.0
        %4655 = vmatmul.mubr.f32.gmra.mrb[0].mxu0 %v4582
        %v4656 = vpop.f32.mrb[0].mxu0
        %v4657 = vadd.f32 %v4574, %v4656
        %v4658 = vpop.f32.mrb[0].mxu0
        %v4659 = vadd.f32 %v4576, %v4658
        %4660 = vdwg.mxu0
        %s4661 = scalar_lea.vmem [#allocation6], 144
        %v4662 = vld [vmem:[%s4661] sm:$0xff]
        %v4663 = vld [vmem:[%s4661 + $0x8] sm:$0xff]
        %v4665 = vsel %vm3850, %v4662, 0
        %v4668 = vsel %vm3850, %v4663, 0
        %4670 = vmatprep.subr.mxu0 %v3617
        %4671 = vmatpush1.msra.mxu0 %v3615
        %4672 = vmatprep.subr.mxu0 %v3621
        %4673 = vmatpush1.msra.mxu0 %v3619
        %4674 = vmatprep.subr.mxu0 %v3627
        %4675 = vmatpush1.msra.mxu0 %v3625
        %4676 = vmatprep.subr.mxu0 %v3631
        %4677 = vmatpush1.msra.mxu0 %v3629
        %4678 = vmatprep.subr.mxu0 0.0
        %4679 = vmatpush1.msra.mxu0 0.0
        %4680 = vmatprep.subr.mxu0 0.0
        %4681 = vmatpush1.msra.mxu0 0.0
        %4682 = vmatprep.subr.mxu0 0.0
        %4683 = vmatpush1.msra.mxu0 0.0
        %4684 = vmatprep.subr.mxu0 0.0
        %4685 = vmatpush1.msra.mxu0 0.0
        %4686 = vmatprep.subr.mxu0 0.0
        %4687 = vmatpush1.msra.mxu0 0.0
        %4688 = vmatprep.subr.mxu0 0.0
        %4689 = vmatpush1.msra.mxu0 0.0
        %4690 = vmatprep.subr.mxu0 0.0
        %4691 = vmatpush1.msra.mxu0 0.0
        %4692 = vmatprep.subr.mxu0 0.0
        %4693 = vmatpush1.msra.mxu0 0.0
        %4694 = vmatprep.subr.mxu0 0.0
        %4695 = vmatpush1.msra.mxu0 0.0
        %4696 = vmatprep.subr.mxu0 0.0
        %4697 = vmatpush1.msra.mxu0 0.0
        %4698 = vmatprep.subr.mxu0 0.0
        %4699 = vmatpush1.msra.mxu0 0.0
        %4700 = vmatprep.subr.mxu0 0.0
        %4701 = vmatpush1.msra.mxu0 0.0
        %4702 = vmatprep.subr.mxu0 0.0
        %4703 = vmatpush1.msra.mxu0 0.0
        %4704 = vmatprep.subr.mxu0 0.0
        %4705 = vmatpush1.msra.mxu0 0.0
        %4706 = vmatprep.subr.mxu0 0.0
        %4707 = vmatpush1.msra.mxu0 0.0
        %4708 = vmatprep.subr.mxu0 0.0
        %4709 = vmatpush1.msra.mxu0 0.0
        %4710 = vmatprep.subr.mxu0 0.0
        %4711 = vmatpush1.msra.mxu0 0.0
        %4712 = vmatprep.subr.mxu0 0.0
        %4713 = vmatpush1.msra.mxu0 0.0
        %4714 = vmatprep.subr.mxu0 0.0
        %4715 = vmatpush1.msra.mxu0 0.0
        %4716 = vmatprep.subr.mxu0 0.0
        %4717 = vmatpush1.msra.mxu0 0.0
        %4718 = vmatprep.subr.mxu0 0.0
        %4719 = vmatpush1.msra.mxu0 0.0
        %4720 = vmatprep.subr.mxu0 0.0
        %4721 = vmatpush1.msra.mxu0 0.0
        %4722 = vmatprep.subr.mxu0 0.0
        %4723 = vmatpush1.msra.mxu0 0.0
        %4724 = vmatprep.subr.mxu0 0.0
        %4725 = vmatpush1.msra.mxu0 0.0
        %4726 = vmatprep.subr.mxu0 0.0
        %4727 = vmatpush1.msra.mxu0 0.0
        %4728 = vmatprep.subr.mxu0 0.0
        %4729 = vmatpush1.msra.mxu0 0.0
        %4730 = vmatprep.subr.mxu0 0.0
        %4731 = vmatpush1.msra.mxu0 0.0
        %4732 = vmatprep.subr.mxu0 0.0
        %4733 = vmatpush1.msra.mxu0 0.0
        %4734 = vmatprep.mubr.f32.mxu0 0.0
        %4735 = vmatmul.mubr.f32.gmra.mrb[0].mxu0 %v4665
        %v4736 = vpop.f32.mrb[0].mxu0
        %v4737 = vadd.f32 0.0, %v4736
        %v4738 = vpop.f32.mrb[0].mxu0
        %v4739 = vadd.f32 0.0, %v4738
        %4740 = vmatprep.mubr.f32.mxu0 0.0
        %4741 = vmatmul.mubr.f32.gmra.mrb[0].mxu0 %v4668
        %v4742 = vpop.f32.mrb[0].mxu0
        %v4743 = vadd.f32 0.0, %v4742
        %v4744 = vpop.f32.mrb[0].mxu0
        %v4745 = vadd.f32 0.0, %v4744
        %4746 = vdwg.mxu0
        %v4747 = vadd.f32 %v4651, %v4737
        %v4748 = vadd.f32 %v4653, %v4739
        %v4749 = vadd.f32 %v4657, %v4743
        %v4750 = vadd.f32 %v4659, %v4745
        %s4751 = scalar_lea.vmem [#allocation6], 160
        %v4752 = vld [vmem:[%s4751] sm:$0xff]
        %v4753 = vld [vmem:[%s4751 + $0x8] sm:$0xff]
        %v4755 = vsel %vm3850, %v4752, 0
        %v4758 = vsel %vm3850, %v4753, 0
        %4760 = vmatprep.subr.mxu0 %v3670
        %4761 = vmatpush1.msra.mxu0 %v3668
        %4762 = vmatprep.subr.mxu0 %v3674
        %4763 = vmatpush1.msra.mxu0 %v3672
        %4764 = vmatprep.subr.mxu0 %v3680
        %4765 = vmatpush1.msra.mxu0 %v3678
        %4766 = vmatprep.subr.mxu0 %v3684
        %4767 = vmatpush1.msra.mxu0 %v3682
        %4768 = vmatprep.subr.mxu0 0.0
        %4769 = vmatpush1.msra.mxu0 0.0
        %4770 = vmatprep.subr.mxu0 0.0
        %4771 = vmatpush1.msra.mxu0 0.0
        %4772 = vmatprep.subr.mxu0 0.0
        %4773 = vmatpush1.msra.mxu0 0.0
        %4774 = vmatprep.subr.mxu0 0.0
        %4775 = vmatpush1.msra.mxu0 0.0
        %4776 = vmatprep.subr.mxu0 0.0
        %4777 = vmatpush1.msra.mxu0 0.0
        %4778 = vmatprep.subr.mxu0 0.0
        %4779 = vmatpush1.msra.mxu0 0.0
        %4780 = vmatprep.subr.mxu0 0.0
        %4781 = vmatpush1.msra.mxu0 0.0
        %4782 = vmatprep.subr.mxu0 0.0
        %4783 = vmatpush1.msra.mxu0 0.0
        %4784 = vmatprep.subr.mxu0 0.0
        %4785 = vmatpush1.msra.mxu0 0.0
        %4786 = vmatprep.subr.mxu0 0.0
        %4787 = vmatpush1.msra.mxu0 0.0
        %4788 = vmatprep.subr.mxu0 0.0
        %4789 = vmatpush1.msra.mxu0 0.0
        %4790 = vmatprep.subr.mxu0 0.0
        %4791 = vmatpush1.msra.mxu0 0.0
        %4792 = vmatprep.subr.mxu0 0.0
        %4793 = vmatpush1.msra.mxu0 0.0
        %4794 = vmatprep.subr.mxu0 0.0
        %4795 = vmatpush1.msra.mxu0 0.0
        %4796 = vmatprep.subr.mxu0 0.0
        %4797 = vmatpush1.msra.mxu0 0.0
        %4798 = vmatprep.subr.mxu0 0.0
        %4799 = vmatpush1.msra.mxu0 0.0
        %4800 = vmatprep.subr.mxu0 0.0
        %4801 = vmatpush1.msra.mxu0 0.0
        %4802 = vmatprep.subr.mxu0 0.0
        %4803 = vmatpush1.msra.mxu0 0.0
        %4804 = vmatprep.subr.mxu0 0.0
        %4805 = vmatpush1.msra.mxu0 0.0
        %4806 = vmatprep.subr.mxu0 0.0
        %4807 = vmatpush1.msra.mxu0 0.0
        %4808 = vmatprep.subr.mxu0 0.0
        %4809 = vmatpush1.msra.mxu0 0.0
        %4810 = vmatprep.subr.mxu0 0.0
        %4811 = vmatpush1.msra.mxu0 0.0
        %4812 = vmatprep.subr.mxu0 0.0
        %4813 = vmatpush1.msra.mxu0 0.0
        %4814 = vmatprep.subr.mxu0 0.0
        %4815 = vmatpush1.msra.mxu0 0.0
        %4816 = vmatprep.subr.mxu0 0.0
        %4817 = vmatpush1.msra.mxu0 0.0
        %4818 = vmatprep.subr.mxu0 0.0
        %4819 = vmatpush1.msra.mxu0 0.0
        %4820 = vmatprep.subr.mxu0 0.0
        %4821 = vmatpush1.msra.mxu0 0.0
        %4822 = vmatprep.subr.mxu0 0.0
        %4823 = vmatpush1.msra.mxu0 0.0
        %4824 = vmatprep.mubr.f32.mxu0 0.0
        %4825 = vmatmul.mubr.f32.gmra.mrb[0].mxu0 %v4755
        %v4826 = vpop.f32.mrb[0].mxu0
        %v4827 = vadd.f32 0.0, %v4826
        %v4828 = vpop.f32.mrb[0].mxu0
        %v4829 = vadd.f32 0.0, %v4828
        %4830 = vmatprep.mubr.f32.mxu0 0.0
        %4831 = vmatmul.mubr.f32.gmra.mrb[0].mxu0 %v4758
        %v4832 = vpop.f32.mrb[0].mxu0
        %v4833 = vadd.f32 0.0, %v4832
        %v4834 = vpop.f32.mrb[0].mxu0
        %v4835 = vadd.f32 0.0, %v4834
        %4836 = vdwg.mxu0
        %v4837 = vadd.f32 %v4747, %v4827
        %v4838 = vadd.f32 %v4748, %v4829
        %v4839 = vadd.f32 %v4749, %v4833
        %v4840 = vadd.f32 %v4750, %v4835
        %s4841 = scalar_lea.vmem [#allocation6], 176
        %v4842 = vld [vmem:[%s4841] sm:$0xff]
        %v4843 = vld [vmem:[%s4841 + $0x8] sm:$0xff]
        %v4845 = vsel %vm3850, %v4842, 0
        %v4848 = vsel %vm3850, %v4843, 0
        %4850 = vmatprep.subr.mxu0 %v3723
        %4851 = vmatpush1.msra.mxu0 %v3721
        %4852 = vmatprep.subr.mxu0 %v3727
        %4853 = vmatpush1.msra.mxu0 %v3725
        %4854 = vmatprep.subr.mxu0 %v3733
        %4855 = vmatpush1.msra.mxu0 %v3731
        %4856 = vmatprep.subr.mxu0 %v3737
        %4857 = vmatpush1.msra.mxu0 %v3735
        %4858 = vmatprep.subr.mxu0 0.0
        %4859 = vmatpush1.msra.mxu0 0.0
        %4860 = vmatprep.subr.mxu0 0.0
        %4861 = vmatpush1.msra.mxu0 0.0
        %4862 = vmatprep.subr.mxu0 0.0
        %4863 = vmatpush1.msra.mxu0 0.0
        %4864 = vmatprep.subr.mxu0 0.0
        %4865 = vmatpush1.msra.mxu0 0.0
        %4866 = vmatprep.subr.mxu0 0.0
        %4867 = vmatpush1.msra.mxu0 0.0
        %4868 = vmatprep.subr.mxu0 0.0
        %4869 = vmatpush1.msra.mxu0 0.0
        %4870 = vmatprep.subr.mxu0 0.0
        %4871 = vmatpush1.msra.mxu0 0.0
        %4872 = vmatprep.subr.mxu0 0.0
        %4873 = vmatpush1.msra.mxu0 0.0
        %4874 = vmatprep.subr.mxu0 0.0
        %4875 = vmatpush1.msra.mxu0 0.0
        %4876 = vmatprep.subr.mxu0 0.0
        %4877 = vmatpush1.msra.mxu0 0.0
        %4878 = vmatprep.subr.mxu0 0.0
        %4879 = vmatpush1.msra.mxu0 0.0
        %4880 = vmatprep.subr.mxu0 0.0
        %4881 = vmatpush1.msra.mxu0 0.0
        %4882 = vmatprep.subr.mxu0 0.0
        %4883 = vmatpush1.msra.mxu0 0.0
        %4884 = vmatprep.subr.mxu0 0.0
        %4885 = vmatpush1.msra.mxu0 0.0
        %4886 = vmatprep.subr.mxu0 0.0
        %4887 = vmatpush1.msra.mxu0 0.0
        %4888 = vmatprep.subr.mxu0 0.0
        %4889 = vmatpush1.msra.mxu0 0.0
        %4890 = vmatprep.subr.mxu0 0.0
        %4891 = vmatpush1.msra.mxu0 0.0
        %4892 = vmatprep.subr.mxu0 0.0
        %4893 = vmatpush1.msra.mxu0 0.0
        %4894 = vmatprep.subr.mxu0 0.0
        %4895 = vmatpush1.msra.mxu0 0.0
        %4896 = vmatprep.subr.mxu0 0.0
        %4897 = vmatpush1.msra.mxu0 0.0
        %4898 = vmatprep.subr.mxu0 0.0
        %4899 = vmatpush1.msra.mxu0 0.0
        %4900 = vmatprep.subr.mxu0 0.0
        %4901 = vmatpush1.msra.mxu0 0.0
        %4902 = vmatprep.subr.mxu0 0.0
        %4903 = vmatpush1.msra.mxu0 0.0
        %4904 = vmatprep.subr.mxu0 0.0
        %4905 = vmatpush1.msra.mxu0 0.0
        %4906 = vmatprep.subr.mxu0 0.0
        %4907 = vmatpush1.msra.mxu0 0.0
        %4908 = vmatprep.subr.mxu0 0.0
        %4909 = vmatpush1.msra.mxu0 0.0
        %4910 = vmatprep.subr.mxu0 0.0
        %4911 = vmatpush1.msra.mxu0 0.0
        %4912 = vmatprep.subr.mxu0 0.0
        %4913 = vmatpush1.msra.mxu0 0.0
        %4914 = vmatprep.mubr.f32.mxu0 0.0
        %4915 = vmatmul.mubr.f32.gmra.mrb[0].mxu0 %v4845
        %v4916 = vpop.f32.mrb[0].mxu0
        %v4917 = vadd.f32 0.0, %v4916
        %v4918 = vpop.f32.mrb[0].mxu0
        %v4919 = vadd.f32 0.0, %v4918
        %4920 = vmatprep.mubr.f32.mxu0 0.0
        %4921 = vmatmul.mubr.f32.gmra.mrb[0].mxu0 %v4848
        %v4922 = vpop.f32.mrb[0].mxu0
        %v4923 = vadd.f32 0.0, %v4922
        %v4924 = vpop.f32.mrb[0].mxu0
        %v4925 = vadd.f32 0.0, %v4924
        %4926 = vdwg.mxu0
        %v4927 = vadd.f32 %v4837, %v4917
        %v4928 = vadd.f32 %v4838, %v4919
        %v4929 = vadd.f32 %v4839, %v4923
        %v4930 = vadd.f32 %v4840, %v4925
        %s4931 = scalar_lea.vmem [#allocation6], 192
        %v4932 = vld [vmem:[%s4931] sm:$0xff]
        %v4933 = vld [vmem:[%s4931 + $0x8] sm:$0xff]
        %v4935 = vsel %vm3850, %v4932, 0
        %v4938 = vsel %vm3850, %v4933, 0
        %4940 = vmatprep.subr.mxu0 %v3776
        %4941 = vmatpush1.msra.mxu0 %v3774
        %4942 = vmatprep.subr.mxu0 %v3780
        %4943 = vmatpush1.msra.mxu0 %v3778
        %4944 = vmatprep.subr.mxu0 %v3786
        %4945 = vmatpush1.msra.mxu0 %v3784
        %4946 = vmatprep.subr.mxu0 %v3790
        %4947 = vmatpush1.msra.mxu0 %v3788
        %4948 = vmatprep.subr.mxu0 0.0
        %4949 = vmatpush1.msra.mxu0 0.0
        %4950 = vmatprep.subr.mxu0 0.0
        %4951 = vmatpush1.msra.mxu0 0.0
        %4952 = vmatprep.subr.mxu0 0.0
        %4953 = vmatpush1.msra.mxu0 0.0
        %4954 = vmatprep.subr.mxu0 0.0
        %4955 = vmatpush1.msra.mxu0 0.0
        %4956 = vmatprep.subr.mxu0 0.0
        %4957 = vmatpush1.msra.mxu0 0.0
        %4958 = vmatprep.subr.mxu0 0.0
        %4959 = vmatpush1.msra.mxu0 0.0
        %4960 = vmatprep.subr.mxu0 0.0
        %4961 = vmatpush1.msra.mxu0 0.0
        %4962 = vmatprep.subr.mxu0 0.0
        %4963 = vmatpush1.msra.mxu0 0.0
        %4964 = vmatprep.subr.mxu0 0.0
        %4965 = vmatpush1.msra.mxu0 0.0
        %4966 = vmatprep.subr.mxu0 0.0
        %4967 = vmatpush1.msra.mxu0 0.0
        %4968 = vmatprep.subr.mxu0 0.0
        %4969 = vmatpush1.msra.mxu0 0.0
        %4970 = vmatprep.subr.mxu0 0.0
        %4971 = vmatpush1.msra.mxu0 0.0
        %4972 = vmatprep.subr.mxu0 0.0
        %4973 = vmatpush1.msra.mxu0 0.0
        %4974 = vmatprep.subr.mxu0 0.0
        %4975 = vmatpush1.msra.mxu0 0.0
        %4976 = vmatprep.subr.mxu0 0.0
        %4977 = vmatpush1.msra.mxu0 0.0
        %4978 = vmatprep.subr.mxu0 0.0
        %4979 = vmatpush1.msra.mxu0 0.0
        %4980 = vmatprep.subr.mxu0 0.0
        %4981 = vmatpush1.msra.mxu0 0.0
        %4982 = vmatprep.subr.mxu0 0.0
        %4983 = vmatpush1.msra.mxu0 0.0
        %4984 = vmatprep.subr.mxu0 0.0
        %4985 = vmatpush1.msra.mxu0 0.0
        %4986 = vmatprep.subr.mxu0 0.0
        %4987 = vmatpush1.msra.mxu0 0.0
        %4988 = vmatprep.subr.mxu0 0.0
        %4989 = vmatpush1.msra.mxu0 0.0
        %4990 = vmatprep.subr.mxu0 0.0
        %4991 = vmatpush1.msra.mxu0 0.0
        %4992 = vmatprep.subr.mxu0 0.0
        %4993 = vmatpush1.msra.mxu0 0.0
        %4994 = vmatprep.subr.mxu0 0.0
        %4995 = vmatpush1.msra.mxu0 0.0
        %4996 = vmatprep.subr.mxu0 0.0
        %4997 = vmatpush1.msra.mxu0 0.0
        %4998 = vmatprep.subr.mxu0 0.0
        %4999 = vmatpush1.msra.mxu0 0.0
        %5000 = vmatprep.subr.mxu0 0.0
        %5001 = vmatpush1.msra.mxu0 0.0
        %5002 = vmatprep.subr.mxu0 0.0
        %5003 = vmatpush1.msra.mxu0 0.0
        %5004 = vmatprep.mubr.f32.mxu0 0.0
        %5005 = vmatmul.mubr.f32.gmra.mrb[0].mxu0 %v4935
        %v5006 = vpop.f32.mrb[0].mxu0
        %v5007 = vadd.f32 0.0, %v5006
        %v5008 = vpop.f32.mrb[0].mxu0
        %v5009 = vadd.f32 0.0, %v5008
        %5010 = vmatprep.mubr.f32.mxu0 0.0
        %5011 = vmatmul.mubr.f32.gmra.mrb[0].mxu0 %v4938
        %v5012 = vpop.f32.mrb[0].mxu0
        %v5013 = vadd.f32 0.0, %v5012
        %v5014 = vpop.f32.mrb[0].mxu0
        %v5015 = vadd.f32 0.0, %v5014
        %5016 = vdwg.mxu0
        %v5017 = vadd.f32 %v4927, %v5007
        %v5018 = vadd.f32 %v4928, %v5009
        %v5019 = vadd.f32 %v4929, %v5013
        %v5020 = vadd.f32 %v4930, %v5015
        %s5021 = scalar_lea.vmem [#allocation6], 208
        %v5022 = vld [vmem:[%s5021] sm:$0xff]
        %v5023 = vld [vmem:[%s5021 + $0x8] sm:$0xff]
        %v5025 = vsel %vm3850, %v5022, 0
        %v5028 = vsel %vm3850, %v5023, 0
        %5030 = vmatprep.subr.mxu0 %v3829
        %5031 = vmatpush1.msra.mxu0 %v3827
        %5032 = vmatprep.subr.mxu0 %v3833
        %5033 = vmatpush1.msra.mxu0 %v3831
        %5034 = vmatprep.subr.mxu0 %v3839
        %5035 = vmatpush1.msra.mxu0 %v3837
        %5036 = vmatprep.subr.mxu0 %v3843
        %5037 = vmatpush1.msra.mxu0 %v3841
        %5038 = vmatprep.subr.mxu0 0.0
        %5039 = vmatpush1.msra.mxu0 0.0
        %5040 = vmatprep.subr.mxu0 0.0
        %5041 = vmatpush1.msra.mxu0 0.0
        %5042 = vmatprep.subr.mxu0 0.0
        %5043 = vmatpush1.msra.mxu0 0.0
        %5044 = vmatprep.subr.mxu0 0.0
        %5045 = vmatpush1.msra.mxu0 0.0
        %5046 = vmatprep.subr.mxu0 0.0
        %5047 = vmatpush1.msra.mxu0 0.0
        %5048 = vmatprep.subr.mxu0 0.0
        %5049 = vmatpush1.msra.mxu0 0.0
        %5050 = vmatprep.subr.mxu0 0.0
        %5051 = vmatpush1.msra.mxu0 0.0
        %5052 = vmatprep.subr.mxu0 0.0
        %5053 = vmatpush1.msra.mxu0 0.0
        %5054 = vmatprep.subr.mxu0 0.0
        %5055 = vmatpush1.msra.mxu0 0.0
        %5056 = vmatprep.subr.mxu0 0.0
        %5057 = vmatpush1.msra.mxu0 0.0
        %5058 = vmatprep.subr.mxu0 0.0
        %5059 = vmatpush1.msra.mxu0 0.0
        %5060 = vmatprep.subr.mxu0 0.0
        %5061 = vmatpush1.msra.mxu0 0.0
        %5062 = vmatprep.subr.mxu0 0.0
        %5063 = vmatpush1.msra.mxu0 0.0
        %5064 = vmatprep.subr.mxu0 0.0
        %5065 = vmatpush1.msra.mxu0 0.0
        %5066 = vmatprep.subr.mxu0 0.0
        %5067 = vmatpush1.msra.mxu0 0.0
        %5068 = vmatprep.subr.mxu0 0.0
        %5069 = vmatpush1.msra.mxu0 0.0
        %5070 = vmatprep.subr.mxu0 0.0
        %5071 = vmatpush1.msra.mxu0 0.0
        %5072 = vmatprep.subr.mxu0 0.0
        %5073 = vmatpush1.msra.mxu0 0.0
        %5074 = vmatprep.subr.mxu0 0.0
        %5075 = vmatpush1.msra.mxu0 0.0
        %5076 = vmatprep.subr.mxu0 0.0
        %5077 = vmatpush1.msra.mxu0 0.0
        %5078 = vmatprep.subr.mxu0 0.0
        %5079 = vmatpush1.msra.mxu0 0.0
        %5080 = vmatprep.subr.mxu0 0.0
        %5081 = vmatpush1.msra.mxu0 0.0
        %5082 = vmatprep.subr.mxu0 0.0
        %5083 = vmatpush1.msra.mxu0 0.0
        %5084 = vmatprep.subr.mxu0 0.0
        %5085 = vmatpush1.msra.mxu0 0.0
        %5086 = vmatprep.subr.mxu0 0.0
        %5087 = vmatpush1.msra.mxu0 0.0
        %5088 = vmatprep.subr.mxu0 0.0
        %5089 = vmatpush1.msra.mxu0 0.0
        %5090 = vmatprep.subr.mxu0 0.0
        %5091 = vmatpush1.msra.mxu0 0.0
        %5092 = vmatprep.subr.mxu0 0.0
        %5093 = vmatpush1.msra.mxu0 0.0
        %5094 = vmatprep.mubr.f32.mxu0 0.0
        %5095 = vmatmul.mubr.f32.gmra.mrb[0].mxu0 %v5025
        %v5096 = vpop.f32.mrb[0].mxu0
        %v5097 = vadd.f32 0.0, %v5096
        %v5098 = vpop.f32.mrb[0].mxu0
        %v5099 = vadd.f32 0.0, %v5098
        %5100 = vmatprep.mubr.f32.mxu0 0.0
        %5101 = vmatmul.mubr.f32.gmra.mrb[0].mxu0 %v5028
        %v5102 = vpop.f32.mrb[0].mxu0
        %v5103 = vadd.f32 0.0, %v5102
        %v5104 = vpop.f32.mrb[0].mxu0
        %v5105 = vadd.f32 0.0, %v5104
        %5106 = vdwg.mxu0
        %v5107 = vadd.f32 %v5017, %v5097
        %v5108 = vadd.f32 %v5018, %v5099
        %v5109 = vadd.f32 %v5019, %v5103
        %v5110 = vadd.f32 %v5020, %v5105
        %s5111 = scalar_lea.vmem [#allocation4], 2
        %v5112 = vld [vmem:[%s5111] sm:$0x3]
        %v5114 = vlaneseq
        %v5115 = vshrl.u32 %v5114, 7
        %v5116 = vsub.s32 0, %v5115
        %v5117 = vrot.slane %v5112, %v5116
        %v5118 = vlaneseq
        %v5119 = vshrl.u32 %v5118, 7
        %v5120 = vsub.s32 1, %v5119
        %v5121 = vrot.slane %v5112, %v5120
        %v5124 = vadd.f32 %v5107, %v5117
        %v5125 = vadd.f32 %v5108, %v5121
        %v5126 = vadd.f32 %v5109, %v5117
        %v5127 = vadd.f32 %v5110, %v5121
        %v5128 = vmax.f32 %v5124, 0.0
        %v5129 = vmax.f32 %v5125, 0.0
        %v5130 = vmax.f32 %v5126, 0.0
        %v5131 = vmax.f32 %v5127, 0.0
        %v5132 = vadd.f32 %v4483, %v5128
        %v5133 = vadd.f32 %v4484, %v5129
        %v5134 = vadd.f32 %v4485, %v5130
        %v5135 = vadd.f32 %v4486, %v5131
        %v5136 = vpack.c.bf16 %v5130, %v5128
        %v5137 = vpack.c.bf16 %v5131, %v5129
        %v5138 = vadd.f32 %v5132, %v5134
        %v5139 = vrot.slane %v5138, 4
        %v5140 = vadd.f32 %v5138, %v5139
        %v5141 = vrot.slane %v5140, 2
        %v5142 = vadd.f32 %v5140, %v5141
        %v5143 = vrot.slane %v5142, 1
        %v5144 = vadd.f32 %v5142, %v5143
        %v5145 = vadd.f32 %v5133, %v5135
        %v5146 = vrot.slane %v5145, 4
        %v5147 = vadd.f32 %v5145, %v5146
        %v5148 = vrot.slane %v5147, 2
        %v5149 = vadd.f32 %v5147, %v5148
        %v5150 = vrot.slane %v5149, 1
        %v5151 = vadd.f32 %v5149, %v5150
        %v5152 = vmul.f32 %v5144, 0.00390625
        %v5153 = vmul.f32 %v5151, 0.00390625
        %v5154 = vpack.c.bf16 %v5152, %v5152
        %v5155 = vpack.c.bf16 %v5153, %v5153
        %v5156 = vld [vmem:[%s4] sm:$0xf]
        %v5157 = vld [vmem:[%s4 + $0x4] sm:$0xf]
        %v5158 = vld [vmem:[%s4 + $0x8] sm:$0xf]
        %v5159 = vld [vmem:[%s4 + $0xc] sm:$0xf]
        %v5160 = vld [vmem:[%s4 + $0x10] sm:$0xf]
        %v5161 = vld [vmem:[%s4 + $0x14] sm:$0xf]
        %v5162 = vld [vmem:[%s4 + $0x18] sm:$0xf]
        %v5163 = vld [vmem:[%s4 + $0x1c] sm:$0xf]
        %v5164 = vld [vmem:[%s4 + $0x20] sm:$0xf]
        %v5165 = vld [vmem:[%s4 + $0x24] sm:$0xf]
        %v5166 = vld [vmem:[%s4 + $0x28] sm:$0xf]
        %v5167 = vld [vmem:[%s4 + $0x2c] sm:$0xf]
        %v5168 = vld [vmem:[%s4 + $0x30] sm:$0xf]
        %v5169 = vld [vmem:[%s4 + $0x34] sm:$0xf]
        %v5170 = vld [vmem:[%s4 + $0x38] sm:$0xf]
        %v5171 = vld [vmem:[%s4 + $0x3c] sm:$0xf]
        %v5172 = vld [vmem:[%s4 + $0x40] sm:$0xf]
        %v5173 = vld [vmem:[%s4 + $0x44] sm:$0xf]
        %v5174 = vld [vmem:[%s4 + $0x48] sm:$0xf]
        %v5175 = vld [vmem:[%s4 + $0x4c] sm:$0xf]
        %v5176 = vld [vmem:[%s4 + $0x50] sm:$0xf]
        %v5177 = vld [vmem:[%s4 + $0x54] sm:$0xf]
        %v5178 = vld [vmem:[%s4 + $0x58] sm:$0xf]
        %v5179 = vld [vmem:[%s4 + $0x5c] sm:$0xf]
        %v5180 = vld [vmem:[%s4 + $0x60] sm:$0xf]
        %v5181 = vld [vmem:[%s4 + $0x64] sm:$0xf]
        %v5182 = vld [vmem:[%s4 + $0x68] sm:$0xf]
        %v5183 = vld [vmem:[%s4 + $0x6c] sm:$0xf]
        %v5184 = vld [vmem:[%s4 + $0x70] sm:$0xf]
        %v5185 = vld [vmem:[%s4 + $0x74] sm:$0xf]
        %v5186 = vld [vmem:[%s4 + $0x78] sm:$0xf]
        %v5187 = vld [vmem:[%s4 + $0x7c] sm:$0xf]
        %v5188 = vld [vmem:[#allocation7] sm:$0x1]
        %v5221 = vunpack.c.l.b16 %v5156
        %v5222 = vunpack.c.l.b16 %v5157
        %v5223 = vunpack.c.l.b16 %v5158
        %v5224 = vunpack.c.l.b16 %v5159
        %v5225 = vunpack.c.l.b16 %v5160
        %v5226 = vunpack.c.l.b16 %v5161
        %v5227 = vunpack.c.l.b16 %v5162
        %v5228 = vunpack.c.l.b16 %v5163
        %v5229 = vunpack.c.l.b16 %v5164
        %v5230 = vunpack.c.l.b16 %v5165
        %v5231 = vunpack.c.l.b16 %v5166
        %v5232 = vunpack.c.l.b16 %v5167
        %v5233 = vunpack.c.l.b16 %v5168
        %v5234 = vunpack.c.l.b16 %v5169
        %v5235 = vunpack.c.l.b16 %v5170
        %v5236 = vunpack.c.l.b16 %v5171
        %v5237 = vunpack.c.l.b16 %v5172
        %v5238 = vunpack.c.l.b16 %v5173
        %v5239 = vunpack.c.l.b16 %v5174
        %v5240 = vunpack.c.l.b16 %v5175
        %v5241 = vunpack.c.l.b16 %v5176
        %v5242 = vunpack.c.l.b16 %v5177
        %v5243 = vunpack.c.l.b16 %v5178
        %v5244 = vunpack.c.l.b16 %v5179
        %v5245 = vunpack.c.l.b16 %v5180
        %v5246 = vunpack.c.l.b16 %v5181
        %v5247 = vunpack.c.l.b16 %v5182
        %v5248 = vunpack.c.l.b16 %v5183
        %v5249 = vunpack.c.l.b16 %v5184
        %v5250 = vunpack.c.l.b16 %v5185
        %v5251 = vunpack.c.l.b16 %v5186
        %v5252 = vunpack.c.l.b16 %v5187
        %v5253 = vpack.c.b16 %v5222, %v5221
        %v5254 = vpack.c.b16 %v5224, %v5223
        %v5255 = vpack.c.b16 %v5226, %v5225
        %v5256 = vpack.c.b16 %v5228, %v5227
        %v5257 = vpack.c.b16 %v5230, %v5229
        %v5258 = vpack.c.b16 %v5232, %v5231
        %v5259 = vpack.c.b16 %v5234, %v5233
        %v5260 = vpack.c.b16 %v5236, %v5235
        %v5261 = vpack.c.b16 %v5238, %v5237
        %v5262 = vpack.c.b16 %v5240, %v5239
        %v5263 = vpack.c.b16 %v5242, %v5241
        %v5264 = vpack.c.b16 %v5244, %v5243
        %v5265 = vpack.c.b16 %v5246, %v5245
        %v5266 = vpack.c.b16 %v5248, %v5247
        %v5267 = vpack.c.b16 %v5250, %v5249
        %v5268 = vpack.c.b16 %v5252, %v5251
        %5285 = vmatprep.subr.bf16.mxu0 0
        %5286 = vmatpush1.bf16.msra.mxu0 %v5253
        %5287 = vmatprep.subr.bf16.mxu0 0
        %5288 = vmatpush1.bf16.msra.mxu0 %v5254
        %5289 = vmatprep.subr.bf16.mxu0 0
        %5290 = vmatpush1.bf16.msra.mxu0 %v5255
        %5291 = vmatprep.subr.bf16.mxu0 0
        %5292 = vmatpush1.bf16.msra.mxu0 %v5256
        %5293 = vmatprep.subr.bf16.mxu0 0
        %5294 = vmatpush1.bf16.msra.mxu0 %v5257
        %5295 = vmatprep.subr.bf16.mxu0 0
        %5296 = vmatpush1.bf16.msra.mxu0 %v5258
        %5297 = vmatprep.subr.bf16.mxu0 0
        %5298 = vmatpush1.bf16.msra.mxu0 %v5259
        %5299 = vmatprep.subr.bf16.mxu0 0
        %5300 = vmatpush1.bf16.msra.mxu0 %v5260
        %5301 = vmatprep.subr.bf16.mxu0 0
        %5302 = vmatpush1.bf16.msra.mxu0 %v5261
        %5303 = vmatprep.subr.bf16.mxu0 0
        %5304 = vmatpush1.bf16.msra.mxu0 %v5262
        %5305 = vmatprep.subr.bf16.mxu0 0
        %5306 = vmatpush1.bf16.msra.mxu0 %v5263
        %5307 = vmatprep.subr.bf16.mxu0 0
        %5308 = vmatpush1.bf16.msra.mxu0 %v5264
        %5309 = vmatprep.subr.bf16.mxu0 0
        %5310 = vmatpush1.bf16.msra.mxu0 %v5265
        %5311 = vmatprep.subr.bf16.mxu0 0
        %5312 = vmatpush1.bf16.msra.mxu0 %v5266
        %5313 = vmatprep.subr.bf16.mxu0 0
        %5314 = vmatpush1.bf16.msra.mxu0 %v5267
        %5315 = vmatprep.subr.bf16.mxu0 0
        %5316 = vmatpush1.bf16.msra.mxu0 %v5268
        %5317 = vmatprep.mubr.bf16.mxu0 %v5155
        %5318 = vmatmul.mubr.bf16.gmra.mrb[0].mxu0 %v5154
        %v5319 = vpop.f32.mrb[0].mxu0
        %v5320 = vadd.f32 %v5188, %v5319
        %v5321 = vpop.f32.mrb[0].mxu0
        %v5322 = vpop.f32.mrb[0].mxu0
        %v5323 = vpop.f32.mrb[0].mxu0
        %5324 = vdwg.mxu0
        %v5325 = vmax.f32 %v5320, 0.0
        %v5326 = vpack.c.bf16 %v5325, %v5325
        %v5327 = vld [vmem:[#allocation9] sm:$0xff]
        %v5328 = vld [vmem:[#allocation9 + $0x8] sm:$0xff]
        %v5329 = vld [vmem:[#allocation9 + $0x10] sm:$0xff]
        %v5330 = vld [vmem:[#allocation9 + $0x18] sm:$0xff]
        %v5331 = vld [vmem:[#allocation9 + $0x20] sm:$0xff]
        %v5332 = vld [vmem:[#allocation9 + $0x28] sm:$0xff]
        %v5333 = vld [vmem:[#allocation9 + $0x30] sm:$0xff]
        %v5334 = vld [vmem:[#allocation9 + $0x38] sm:$0xff]
        %v5335 = vld [vmem:[#allocation10] sm:$0xf]
        %v5344 = vunpack.c.l.b16 %v5327
        %v5345 = vunpack.c.h.b16 %v5327
        %v5346 = vunpack.c.l.b16 %v5328
        %v5347 = vunpack.c.h.b16 %v5328
        %v5348 = vunpack.c.l.b16 %v5329
        %v5349 = vunpack.c.h.b16 %v5329
        %v5350 = vunpack.c.l.b16 %v5330
        %v5351 = vunpack.c.h.b16 %v5330
        %v5352 = vunpack.c.l.b16 %v5331
        %v5353 = vunpack.c.h.b16 %v5331
        %v5354 = vunpack.c.l.b16 %v5332
        %v5355 = vunpack.c.h.b16 %v5332
        %v5356 = vunpack.c.l.b16 %v5333
        %v5357 = vunpack.c.h.b16 %v5333
        %v5358 = vunpack.c.l.b16 %v5334
        %v5359 = vunpack.c.h.b16 %v5334
        %v5360 = vpack.c.b16 %v5348, %v5344
        %v5361 = vpack.c.b16 %v5349, %v5345
        %v5362 = vpack.c.b16 %v5350, %v5346
        %v5363 = vpack.c.b16 %v5351, %v5347
        %v5364 = vpack.c.b16 %v5356, %v5352
        %v5365 = vpack.c.b16 %v5357, %v5353
        %v5366 = vpack.c.b16 %v5358, %v5354
        %v5367 = vpack.c.b16 %v5359, %v5355
        %v5377 = vlaneseq
        %v5378 = vshrl.u32 %v5377, 7
        %v5379 = vsub.s32 0, %v5378
        %v5380 = vrot.slane %v5335, %v5379
        %v5381 = vlaneseq
        %v5382 = vshrl.u32 %v5381, 7
        %v5383 = vsub.s32 1, %v5382
        %v5384 = vrot.slane %v5335, %v5383
        %v5385 = vlaneseq
        %v5386 = vshrl.u32 %v5385, 7
        %v5387 = vsub.s32 2, %v5386
        %v5388 = vrot.slane %v5335, %v5387
        %v5389 = vlaneseq
        %v5390 = vshrl.u32 %v5389, 7
        %v5391 = vsub.s32 3, %v5390
        %v5392 = vrot.slane %v5335, %v5391
        %v5398 = vsel %vm3850, %v5326, 0
        %5400 = vmatprep.subr.bf16.mxu0 %v5361
        %5401 = vmatpush1.bf16.msra.mxu0 %v5360
        %5402 = vmatprep.subr.bf16.mxu0 %v5365
        %5403 = vmatpush1.bf16.msra.mxu0 %v5364
        %5404 = vmatprep.subr.bf16.mxu0 0
        %5405 = vmatpush1.bf16.msra.mxu0 0
        %5406 = vmatprep.subr.bf16.mxu0 0
        %5407 = vmatpush1.bf16.msra.mxu0 0
        %5408 = vmatprep.subr.bf16.mxu0 0
        %5409 = vmatpush1.bf16.msra.mxu0 0
        %5410 = vmatprep.subr.bf16.mxu0 0
        %5411 = vmatpush1.bf16.msra.mxu0 0
        %5412 = vmatprep.subr.bf16.mxu0 0
        %5413 = vmatpush1.bf16.msra.mxu0 0
        %5414 = vmatprep.subr.bf16.mxu0 0
        %5415 = vmatpush1.bf16.msra.mxu0 0
        %5416 = vmatprep.subr.bf16.mxu0 0
        %5417 = vmatpush1.bf16.msra.mxu0 0
        %5418 = vmatprep.subr.bf16.mxu0 0
        %5419 = vmatpush1.bf16.msra.mxu0 0
        %5420 = vmatprep.subr.bf16.mxu0 0
        %5421 = vmatpush1.bf16.msra.mxu0 0
        %5422 = vmatprep.subr.bf16.mxu0 0
        %5423 = vmatpush1.bf16.msra.mxu0 0
        %5424 = vmatprep.subr.bf16.mxu0 0
        %5425 = vmatpush1.bf16.msra.mxu0 0
        %5426 = vmatprep.subr.bf16.mxu0 0
        %5427 = vmatpush1.bf16.msra.mxu0 0
        %5428 = vmatprep.subr.bf16.mxu0 0
        %5429 = vmatpush1.bf16.msra.mxu0 0
        %5430 = vmatprep.subr.bf16.mxu0 0
        %5431 = vmatpush1.bf16.msra.mxu0 0
        %5432 = vmatprep.mubr.bf16.mxu0 0
        %5433 = vmatmul.mubr.bf16.gmra.mrb[0].mxu0 %v5398
        %v5434 = vpop.f32.mrb[0].mxu0
        %v5435 = vadd.f32 %v5380, %v5434
        %v5436 = vpop.f32.mrb[0].mxu0
        %v5437 = vadd.f32 %v5384, %v5436
        %v5438 = vpop.f32.mrb[0].mxu0
        %v5439 = vpop.f32.mrb[0].mxu0
        %5440 = vdwg.mxu0
        %5441 = vmatprep.subr.bf16.mxu0 %v5363
        %5442 = vmatpush1.bf16.msra.mxu0 %v5362
        %5443 = vmatprep.subr.bf16.mxu0 %v5367
        %5444 = vmatpush1.bf16.msra.mxu0 %v5366
        %5445 = vmatprep.subr.bf16.mxu0 0
        %5446 = vmatpush1.bf16.msra.mxu0 0
        %5447 = vmatprep.subr.bf16.mxu0 0
        %5448 = vmatpush1.bf16.msra.mxu0 0
        %5449 = vmatprep.subr.bf16.mxu0 0
        %5450 = vmatpush1.bf16.msra.mxu0 0
        %5451 = vmatprep.subr.bf16.mxu0 0
        %5452 = vmatpush1.bf16.msra.mxu0 0
        %5453 = vmatprep.subr.bf16.mxu0 0
        %5454 = vmatpush1.bf16.msra.mxu0 0
        %5455 = vmatprep.subr.bf16.mxu0 0
        %5456 = vmatpush1.bf16.msra.mxu0 0
        %5457 = vmatprep.subr.bf16.mxu0 0
        %5458 = vmatpush1.bf16.msra.mxu0 0
        %5459 = vmatprep.subr.bf16.mxu0 0
        %5460 = vmatpush1.bf16.msra.mxu0 0
        %5461 = vmatprep.subr.bf16.mxu0 0
        %5462 = vmatpush1.bf16.msra.mxu0 0
        %5463 = vmatprep.subr.bf16.mxu0 0
        %5464 = vmatpush1.bf16.msra.mxu0 0
        %5465 = vmatprep.subr.bf16.mxu0 0
        %5466 = vmatpush1.bf16.msra.mxu0 0
        %5467 = vmatprep.subr.bf16.mxu0 0
        %5468 = vmatpush1.bf16.msra.mxu0 0
        %5469 = vmatprep.subr.bf16.mxu0 0
        %5470 = vmatpush1.bf16.msra.mxu0 0
        %5471 = vmatprep.subr.bf16.mxu0 0
        %5472 = vmatpush1.bf16.msra.mxu0 0
        %5473 = vmatprep.mubr.bf16.mxu0 0
        %5474 = vmatmul.mubr.bf16.gmra.mrb[0].mxu0 %v5398
        %v5475 = vpop.f32.mrb[0].mxu0
        %v5476 = vadd.f32 %v5388, %v5475
        %v5477 = vpop.f32.mrb[0].mxu0
        %v5478 = vadd.f32 %v5392, %v5477
        %v5479 = vpop.f32.mrb[0].mxu0
        %v5480 = vpop.f32.mrb[0].mxu0
        %5481 = vdwg.mxu0
        %v5482 = vmax.f32 %v5435, %v5476
        %v5483 = vmax.f32 %v5437, %v5478
        %v5484 = vsub.f32 %v5435, %v5482
        %v5485 = vsub.f32 %v5437, %v5483
        %v5486 = vmul.f32 %v5484, 1.442695
        %v5487 = vpow.pop %v5486
        %v5488 = vmul.f32 %v5485, 1.442695
        %v5489 = vpow.pop %v5488
        %v5490 = vsub.f32 %v5476, %v5482
        %v5491 = vsub.f32 %v5478, %v5483
        %v5492 = vmul.f32 %v5490, 1.442695
        %v5493 = vpow.pop %v5492
        %v5494 = vmul.f32 %v5491, 1.442695
        %v5495 = vpow.pop %v5494
        %v5496 = vadd.f32 %v5487, %v5493
        %v5497 = vadd.f32 %v5489, %v5495
        %v5498 = vrcp.pop %v5496
        %v5499 = vrcp.pop %v5497
        %v5500 = vmul.f32 %v5487, %v5498
        %v5501 = vmul.f32 %v5489, %v5499
        %v5502 = vunpack.c.l.bf16 %v4487
        %v5503 = vunpack.c.l.bf16 %v4488
        %v5504 = vunpack.c.h.bf16 %v4487
        %v5505 = vunpack.c.h.bf16 %v4488
        %v5506 = vlaneseq
        %v5507 = vshrl.u32 %v5506, 7
        %v5508 = vsub.s32 0, %v5507
        %v5509 = vrot.slane %v5500, %v5508
        %v5510 = vlaneseq
        %v5511 = vshrl.u32 %v5510, 7
        %v5512 = vsub.s32 0, %v5511
        %v5513 = vrot.slane %v5501, %v5512
        %v5514 = vmul.f32 %v5502, %v5509
        %v5515 = vmul.f32 %v5503, %v5513
        %v5516 = vmul.f32 %v5504, %v5509
        %v5517 = vmul.f32 %v5505, %v5513
        %v5518 = vmul.f32 %v5493, %v5498
        %v5519 = vmul.f32 %v5495, %v5499
        %v5520 = vunpack.c.l.bf16 %v5136
        %v5521 = vunpack.c.l.bf16 %v5137
        %v5522 = vunpack.c.h.bf16 %v5136
        %v5523 = vunpack.c.h.bf16 %v5137
        %v5524 = vlaneseq
        %v5525 = vshrl.u32 %v5524, 7
        %v5526 = vsub.s32 0, %v5525
        %v5527 = vrot.slane %v5518, %v5526
        %v5528 = vlaneseq
        %v5529 = vshrl.u32 %v5528, 7
        %v5530 = vsub.s32 0, %v5529
        %v5531 = vrot.slane %v5519, %v5530
        %v5532 = vmul.f32 %v5520, %v5527
        %v5533 = vmul.f32 %v5521, %v5531
        %v5534 = vmul.f32 %v5522, %v5527
        %v5535 = vmul.f32 %v5523, %v5531
        %v5536 = vadd.f32 %v5514, %v5532
        %v5537 = vadd.f32 %v5515, %v5533
        %v5538 = vadd.f32 %v5516, %v5534
        %v5539 = vadd.f32 %v5517, %v5535
        %v5540 = vpack.c.bf16 %v5538, %v5536
        %v5541 = vpack.c.bf16 %v5539, %v5537
        %v5544 = vunpack.c.l.b16 %v5540
        %v5545 = vunpack.c.l.b16 %v5541
        %v5546 = vunpack.c.h.b16 %v5540
        %v5547 = vunpack.c.h.b16 %v5541
        %v5548 = vpack.c.b16 %v5545, %v5544
        %v5549 = vpack.c.b16 %v5547, %v5546
        %5552 = vst [vmem:[%s389] sm:$0xff] %v5548
        %5553 = vst [vmem:[%s389 + $0x8] sm:$0xff] %v5549
        %p5554 = scmp.lt.s32.totalorder %s23, 1
        %s5555 = scalar_select %p5554, %s23, 1
        %s5556 = smul.addr %s5555, 4
        %s5557 = smul.addr %s5556, 4
        %s5558 = scalar_lea.vmem %s8, %s5557
        // Predicated region
        $region77: #{skconv_pallas.1} parent=51 // pred_check
          %p5559 = pneg %p214
        $region78: #{skconv_pallas.1} parent=51 // pred_check_branch
          %5561 = sbr.rel (%p5559) target = $region80
        $region79: #{skconv_pallas.1} parent=51 // pred_region
          _
        $region80: #{skconv_pallas.1} parent=51 // pred_fallthru
          _
      $region52: #{skconv_pallas.1} parent=5 // pred_fallthru
        _
      %p5562 = scmp.le.s32.totalorder 2, %s18
      // Predicated region
      $region81: #{skconv_pallas.1} parent=5 // pred_check
        %p5563 = pneg %p5562
      $region82: #{skconv_pallas.1} parent=5 // pred_check_branch
        %5565 = sbr.rel (%p5563) target = $region84
      $region83: #{skconv_pallas.1} parent=5 // pred_region
        %s5566 = ssub.s32 %s18, 2
        // Predicated region
        $region85: #{skconv_pallas.1} parent=83 // pred_check
          %p5567 = pneg %p220
        $region86: #{skconv_pallas.1} parent=83 // pred_check_branch
          %5569 = sbr.rel (%p5567) target = $region88
        $region87: #{skconv_pallas.1} parent=83 // pred_region
          %p5570 = scmp.lt.s32.totalorder %s24, 1
          %s5571 = scalar_select %p5570, %s24, 1
          %s5572 = smul.addr %s5571, 4
          %s5573 = smul.addr %s5572, 4
          %s5574 = scalar_lea.vmem %s8, %s5573
        $region88: #{skconv_pallas.1} parent=83 // pred_fallthru
          _
      $region84: #{skconv_pallas.1} parent=5 // pred_fallthru
        _
    $region6: #{skconv_pallas.1} parent=1 // loop_footer
      %s22 = sadd.s32 1, %s18
    $region7: #{skconv_pallas.1} parent=1 // loop_footer_branch
      %17 = sbr.rel target = $region3
    $region8: #{skconv_pallas.1} parent=1 // loop_exit
      _
    %5575 = vsyncpa [#allocation3], 1
    %s5576 = scalar_lea.sflag [#allocation3], 1
    %5577 = vsyncpa %s5576, 1
    %5578 = vsyncpa [#allocation5], 1
    %5579 = vsyncpa [#allocation8], 1
    %5580 = vsyncpa [#allocation11], 1

</llo_original>
